<compile_context>
chip_gen: v5e
topology: v5e:2x2
jax: 0.10.0
libtpu: 0.0.40
codegen_flags: <defaults>
</compile_context>

<pallas_src>
import math
from functools import partial

import jax
import jax.numpy as jnp
from jax import lax
from jax.experimental import pallas as pl
from jax.experimental.pallas import tpu as pltpu


# ----------------------------------------------------------------------------
# Fused kernel: one grid step = TB folded batch elements.
#   qkv  = x @ Wqkv + bqkv                       (Wq/bq pre-scaled by `scale`)
#   per head h (batched over the TB folded batch elements):
#     dots = q_h k_h^T + pos_bias_h              (pos_bias pre-divided by scale)
#     attn = softmax(dots)
#     out_h = attn @ v_h
#   y = GELU(concat_h out_h) @ Wo_pad + bo_pad   (lane-dense padded output)
# ----------------------------------------------------------------------------
def _levit_attn_kernel(x_ref, wqkv_ref, bqkv_ref, pb_ref, wo_ref, bo_ref,
                       o_ref, *, tb, n_tok, heads, dim_key, dim_value):
    # x_ref    : (TB*N, C)        bf16
    # wqkv_ref : (C, T)           bf16  packed [Wq*scale | Wk | Wv], head-major
    # bqkv_ref : (1, T)           f32   packed [bq*scale | bk | bv]
    # pb_ref   : (H, N, N)        bf16  positional bias, already divided by scale
    # wo_ref   : (H*DV, DOUT_PAD) bf16  output 1x1 conv (BN folded), zero-padded
    # bo_ref   : (1, DOUT_PAD)    f32
    # o_ref    : (TB*N, DOUT_PAD) f32
    hk = heads * dim_key

    # One wide packed QKV matmul for all TB folded batch elements
    # (M = TB*N rows, T lane-dense columns; bf16 operands, f32 accumulate).
    qkv = jnp.dot(x_ref[...], wqkv_ref[...],
                  preferred_element_type=jnp.float32) + bqkv_ref[...]

    outs = []
    for h in range(heads):                    # heads small -> static unroll
        # Per-head lane slices (amortized over the TB folded batch elements);
        # leading-axis reshape (TB, N, .) is a free vreg re-grouping.
        q = qkv[:, h * dim_key:(h + 1) * dim_key].reshape(tb, n_tok, dim_key)
        k = qkv[:, hk + h * dim_key:
                   hk + (h + 1) * dim_key].reshape(tb, n_tok, dim_key)
        v = qkv[:, 2 * hk + h * dim_value:
                   2 * hk + (h + 1) * dim_value].reshape(tb, n_tok, dim_value)

        # Attention for this head, batched over the TB folded batch elements.
        dots = jnp.einsum("bid,bjd->bij",
                          q.astype(jnp.bfloat16), k.astype(jnp.bfloat16),
                          preferred_element_type=jnp.float32)
        dots = dots + pb_ref[h].astype(jnp.float32)   # scale already folded

        # f32 softmax (v5e VPU/EUP have no bf16 path).
        dots = dots - jnp.max(dots, axis=-1, keepdims=True)
        e = jnp.exp(dots)
        attn = e * pl.reciprocal(jnp.sum(e, axis=-1, keepdims=True), approx=True)

        outs.append(jnp.einsum("bij,bjd->bid",
                               attn.astype(jnp.bfloat16), v.astype(jnp.bfloat16),
                               preferred_element_type=jnp.float32))

    # Head-major concat -> lane-dense (TB*N, H*DV) value; no scratch round-trip.
    a = jnp.concatenate(outs, axis=-1).reshape(tb * n_tok, heads * dim_value)

    # GELU (exact erf, f32) + padded lane-dense output projection + bias.
    g = 0.5 * a * (1.0 + lax.erf(a * (1.0 / math.sqrt(2.0))))
    o_ref[...] = jnp.dot(g.astype(jnp.bfloat16), wo_ref[...],
                         preferred_element_type=jnp.float32) + bo_ref[...]


def _pick_tb(batch, n_tok, target_rows=256):
    """Largest batch fold TB that (a) divides `batch`, (b) keeps TB*N at
    ~256 MXU rows (v6e/v7x; v5e only needs 128 and benefits equally), and
    (c) leaves >= 2 grid steps whenever batch >= 2 (v7x has 2 TensorCores)."""
    best = 1
    for tb in range(1, batch + 1):
        if batch % tb:
            continue
        if tb * n_tok > max(target_rows, n_tok):
            continue
        if batch >= 2 and batch // tb < 2:
            continue
        best = tb
    return best


def levit_attention_forward(x_nchw, kparams, *, heads, dim_key, dim_value,
                            dim_out):
    """x_nchw: (B, C, H, W) float32. Returns (B, dim_out, H, W) float32."""
    B, C, Hs, Ws = x_nchw.shape
    N = Hs * Ws
    wqkv, bqkv, pb, wo, bo = (kparams["wqkv"], kparams["bqkv"],
                              kparams["pos_bias"], kparams["wo"], kparams["bo"])
    T = wqkv.shape[1]
    hv = heads * dim_value
    dout_pad = wo.shape[1]

    tb = _pick_tb(B, N)
    grid_len = B // tb
    rows = tb * N

    # NCHW -> flattened tokens (B*N, C), bf16 (halves the per-step x DMA).
    x_tok = (jnp.transpose(x_nchw, (0, 2, 3, 1))
             .reshape(B * N, C).astype(jnp.bfloat16))

    flops = B * (2 * N * C * T
                 + heads * (2 * N * N * dim_key + 2 * N * N * dim_value)
                 + 2 * N * hv * dout_pad)
    transcendentals = B * (heads * N * N + N * hv)        # exp + erf
    bytes_accessed = (x_tok.size * 2 + wqkv.size * 2 + bqkv.size * 4
                      + pb.size * 2 + wo.size * 2 + bo.size * 4
                      + B * N * dout_pad * 4)

    y_flat = pl.pallas_call(
        partial(_levit_attn_kernel, tb=tb, n_tok=N, heads=heads,
                dim_key=dim_key, dim_value=dim_value),
        out_shape=jax.ShapeDtypeStruct((B * N, dout_pad), jnp.float32),
        grid=(grid_len,),
        in_specs=[
            pl.BlockSpec((rows, C), lambda g: (g, 0)),           # x tokens
            pl.BlockSpec((C, T), lambda g: (0, 0)),              # Wqkv
            pl.BlockSpec((1, T), lambda g: (0, 0)),              # bqkv
            pl.BlockSpec((heads, N, N), lambda g: (0, 0, 0)),    # pos bias
            pl.BlockSpec((hv, dout_pad), lambda g: (0, 0)),      # Wo (padded)
            pl.BlockSpec((1, dout_pad), lambda g: (0, 0)),       # bo (padded)
        ],
        out_specs=pl.BlockSpec((rows, dout_pad), lambda g: (g, 0)),
        compiler_params=pltpu.CompilerParams(
            dimension_semantics=("parallel",),
            vmem_limit_bytes=32 * 1024 * 1024),
        cost_estimate=pl.CostEstimate(flops=flops,
                                      transcendentals=transcendentals,
                                      bytes_accessed=bytes_accessed),
    )(x_tok, wqkv, bqkv, pb, wo, bo)

    # Un-pad the lane-dense output, tokens -> NCHW.
    y = y_flat[:, :dim_out].reshape(B, Hs, Ws, dim_out)
    return jnp.transpose(y, (0, 3, 1, 2))


# ----------------------------------------------------------------------------
# Parameter construction (deterministic, synthetic).  BatchNorm (eval mode) is
# folded into the 1x1 convs.  NOTE: the PyTorch module zero-inits the output
# BatchNorm gamma, which would make the forward output identically zero; here
# we use nonzero synthetic values so the kernel compute is actually exercised.
# ----------------------------------------------------------------------------
def _fold_bn(conv_w, conv_b, gamma, beta, mean, var, eps=1e-5):
    # conv_w: (out_c, in_c) for a 1x1 conv; returns W (in_c, out_c), b (out_c,)
    s = gamma / jnp.sqrt(var + eps)
    w = conv_w * s[:, None]
    b = (0.0 if conv_b is None else conv_b) * s + beta - mean * s
    return w.T, b


def make_raw_params(key, *, dim, fmap_size, heads, dim_key, dim_value, dim_out):
    inner_k, inner_v = dim_key * heads, dim_value * heads
    ks = jax.random.split(key, 10)

    def bn(k, c):
        k1, k2, k3, k4 = jax.random.split(k, 4)
        gamma = jax.random.uniform(k1, (c,), minval=0.5, maxval=1.5)
        beta = jax.random.normal(k2, (c,)) * 0.1
        mean = jax.random.normal(k3, (c,)) * 0.1
        var = jax.random.uniform(k4, (c,), minval=0.5, maxval=1.5)
        return gamma, beta, mean, var

    # to_q / to_k / to_v: Conv2d(dim -> inner, 1x1, bias=False) + BN
    wq_c = jax.random.normal(ks[0], (inner_k, dim)) * 0.1
    wk_c = jax.random.normal(ks[1], (inner_k, dim)) * 0.1
    wv_c = jax.random.normal(ks[2], (inner_v, dim)) * 0.1
    wq, bq = _fold_bn(wq_c, None, *bn(ks[3], inner_k))
    wk, bk = _fold_bn(wk_c, None, *bn(ks[4], inner_k))
    wv, bv = _fold_bn(wv_c, None, *bn(ks[5], inner_v))

    # per-head layout (channels are head-major: c = h*dk + d)
    wq = wq.reshape(dim, heads, dim_key).transpose(1, 0, 2)        # (H, D, DK)
    wk = wk.reshape(dim, heads, dim_key).transpose(1, 0, 2)
    wv = wv.reshape(dim, heads, dim_value).transpose(1, 0, 2)      # (H, D, DV)
    bq = bq.reshape(heads, dim_key)
    bk = bk.reshape(heads, dim_key)
    bv = bv.reshape(heads, dim_value)

    # to_out: GELU -> Conv2d(inner_v -> dim_out, 1x1, bias=True) -> BN
    wo_c = jax.random.normal(ks[6], (dim_out, inner_v)) * 0.1
    bo_c = jax.random.normal(ks[7], (dim_out,)) * 0.1
    wo, bo = _fold_bn(wo_c, bo_c, *bn(ks[8], dim_out))             # (H*DV, DOUT)

    # positional bias: Embedding(fmap*fmap, heads) gathered by |rel| indices
    emb = jax.random.normal(ks[9], (fmap_size * fmap_size, heads)) * 0.1
    r = jnp.arange(fmap_size)
    qp = jnp.stack(jnp.meshgrid(r, r, indexing="ij"), axis=-1).reshape(-1, 2)
    rel = jnp.abs(qp[:, None, :] - qp[None, :, :])
    idx = rel[..., 0] * fmap_size + rel[..., 1]                    # (N, N)
    pos_bias = jnp.transpose(emb[idx], (2, 0, 1))                  # (H, N, N)

    return dict(wq=wq, bq=bq, wk=wk, bk=bk, wv=wv, bv=bv,
                pos_bias=pos_bias, wo=wo, bo=bo)


def pack_params(raw, *, heads, dim_key, dim_value, scale, lane_pad=128):
    """Pack raw per-head params into the fused-kernel layout (one-time fold)."""
    D = raw["wq"].shape[1]
    # scale folded into the q projection; pos_bias pre-divided by scale
    # (vit-pytorch apply_pos_bias adds `bias / self.scale` to the scaled dots).
    wq = (raw["wq"] * scale).transpose(1, 0, 2).reshape(D, heads * dim_key)
    wk = raw["wk"].transpose(1, 0, 2).reshape(D, heads * dim_key)
    wv = raw["wv"].transpose(1, 0, 2).reshape(D, heads * dim_value)
    wqkv = jnp.concatenate([wq, wk, wv], axis=1).astype(jnp.bfloat16)
    bqkv = jnp.concatenate([(raw["bq"] * scale).reshape(-1),
                            raw["bk"].reshape(-1),
                            raw["bv"].reshape(-1)]).reshape(1, -1)

    # Output projection zero-padded to a lane-dense (>=128-wide) column count so
    # the kernel's final store is an unmasked, lane-dense vst.
    wo, bo = raw["wo"], raw["bo"]
    hv, dout = wo.shape
    dout_pad = max(lane_pad, -(-dout // lane_pad) * lane_pad)
    wo_p = jnp.zeros((hv, dout_pad), jnp.float32).at[:, :dout].set(wo)
    bo_p = jnp.zeros((1, dout_pad), jnp.float32).at[0, :dout].set(bo)

    return dict(wqkv=wqkv,
                bqkv=bqkv.astype(jnp.float32),
                pos_bias=(raw["pos_bias"] / scale).astype(jnp.bfloat16),
                wo=wo_p.astype(jnp.bfloat16),
                bo=bo_p.astype(jnp.float32))


# ----------------------------------------------------------------------------
# Pure-JAX f32 reference (same math as the PyTorch module, eval mode).
# ----------------------------------------------------------------------------
def reference(x_nchw, raw, *, heads, dim_key, dim_value):
    B, C, Hs, Ws = x_nchw.shape
    N = Hs * Ws
    scale = dim_key ** -0.5
    x = jnp.transpose(x_nchw, (0, 2, 3, 1)).reshape(B, N, C)
    q = jnp.einsum("bnd,hdk->bhnk", x, raw["wq"]) + raw["bq"][None, :, None, :]
    k = jnp.einsum("bnd,hdk->bhnk", x, raw["wk"]) + raw["bk"][None, :, None, :]
    v = jnp.einsum("bnd,hdk->bhnk", x, raw["wv"]) + raw["bv"][None, :, None, :]
    dots = jnp.einsum("bhik,bhjk->bhij", q, k) * scale
    dots = dots + raw["pos_bias"][None] / scale
    attn = jax.nn.softmax(dots, axis=-1)
    out = jnp.einsum("bhij,bhjd->bhid", attn, v)
    out = jnp.transpose(out, (0, 2, 1, 3)).reshape(B, N, heads * dim_value)
    g = jax.nn.gelu(out, approximate=False)
    y = g @ raw["wo"] + raw["bo"]
    return jnp.transpose(y.reshape(B, Hs, Ws, -1), (0, 3, 1, 2))


if __name__ == "__main__":
    # Small config (downsample=False, dropout=0.0).  heads*DV = 128 keeps the
    # attention intermediate lane-dense; B=8 lets the wrapper fold TB=4 batch
    # elements per grid step (M = 256 MXU rows) while keeping 2 grid steps so
    # the batch axis can still be split across the two v7x TensorCores.
    dim, fmap_size, heads, dim_key, dim_value = 16, 8, 4, 16, 32
    dim_out = dim
    B = 8
    scale = dim_key ** -0.5

    key = jax.random.PRNGKey(0)
    kx, kp = jax.random.split(key)
    x = jax.random.normal(kx, (B, dim, fmap_size, fmap_size), dtype=jnp.float32)
    raw = make_raw_params(kp, dim=dim, fmap_size=fmap_size, heads=heads,
                          dim_key=dim_key, dim_value=dim_value, dim_out=dim_out)
    kparams = pack_params(raw, heads=heads, dim_key=dim_key,
                          dim_value=dim_value, scale=scale)

    fwd = jax.jit(partial(levit_attention_forward, heads=heads,
                          dim_key=dim_key, dim_value=dim_value,
                          dim_out=dim_out))
    y = jax.block_until_ready(fwd(x, kparams))

    y_ref = reference(x, raw, heads=heads,
                      dim_key=dim_key, dim_value=dim_value)
    assert y.shape == (B, dim_out, fmap_size, fmap_size)
    # bf16 MXU operands / bf16 x & pos_bias (f32 accumulate) vs a pure-f32
    # reference -> loose tolerance.
    assert jnp.allclose(y, y_ref, atol=5e-2, rtol=5e-2), "mismatch vs reference"

    # TODO(synk): downsample=True (strided 1x1 conv for q) not implemented;
    # it would only change the q-token subsampling / pos_bias rows in glue code.
    print("KERNEL_OK")
</pallas_src>

<mosaic_0001>
module attributes {stable_mosaic.version = 11 : i64} {
  func.func @_levit_attn_kernel(%arg0: i32, %arg1: memref<256x16xbf16, #tpu.memory_space<vmem>>, %arg2: memref<16x256xbf16, #tpu.memory_space<vmem>>, %arg3: memref<1x256xf32, #tpu.memory_space<vmem>>, %arg4: memref<4x64x64xbf16, #tpu.memory_space<vmem>>, %arg5: memref<128x128xbf16, #tpu.memory_space<vmem>>, %arg6: memref<1x128xf32, #tpu.memory_space<vmem>>, %arg7: memref<256x128xf32, #tpu.memory_space<vmem>>) attributes {dimension_semantics = [#tpu.dimension_semantics<parallel>], iteration_bounds = array<i64: 2>, scalar_prefetch = 0 : i64, scratch_operands = 0 : i64, tpu.core_type = #tpu.core_type<tc>, window_params = [{transform_indices = @transform_0, window_bounds = array<i64: 256, 16>}, {pipeline_mode = #tpu.pipeline_mode<synchronous>, transform_indices = @transform_1, window_bounds = array<i64: 16, 256>}, {pipeline_mode = #tpu.pipeline_mode<synchronous>, transform_indices = @transform_2, window_bounds = array<i64: 1, 256>}, {pipeline_mode = #tpu.pipeline_mode<synchronous>, transform_indices = @transform_3, window_bounds = array<i64: 4, 64, 64>}, {pipeline_mode = #tpu.pipeline_mode<synchronous>, transform_indices = @transform_4, window_bounds = array<i64: 128, 128>}, {pipeline_mode = #tpu.pipeline_mode<synchronous>, transform_indices = @transform_5, window_bounds = array<i64: 1, 128>}, {transform_indices = @transform_6, window_bounds = array<i64: 256, 128>}]} {
    %c0 = arith.constant 0 : index
    %c0_0 = arith.constant 0 : index
    %0 = vector.load %arg1[%c0, %c0_0] : memref<256x16xbf16, #tpu.memory_space<vmem>>, vector<256x16xbf16>
    %c0_1 = arith.constant 0 : index
    %c0_2 = arith.constant 0 : index
    %1 = vector.load %arg2[%c0_1, %c0_2] : memref<16x256xbf16, #tpu.memory_space<vmem>>, vector<16x256xbf16>
    %cst = arith.constant dense<0.000000e+00> : vector<256x256xf32>
    %2 = tpu.matmul %0, %1, %cst {dimension_numbers = #tpu.dot_dimension_numbers<[1], [0], [0], [1], [0, 0, 1, 1], [], []>} : vector<256x16xbf16>, vector<16x256xbf16>, vector<256x256xf32> -> vector<256x256xf32>
    %c0_3 = arith.constant 0 : index
    %c0_4 = arith.constant 0 : index
    %3 = vector.load %arg3[%c0_3, %c0_4] : memref<1x256xf32, #tpu.memory_space<vmem>>, vector<1x256xf32>
    %4 = vector.broadcast %3 : vector<1x256xf32> to vector<256x256xf32>
    %5 = arith.addf %2, %4 : vector<256x256xf32>
    %6 = vector.extract_strided_slice %5 {offsets = [0, 0], sizes = [256, 16], strides = [1, 1]} : vector<256x256xf32> to vector<256x16xf32>
    %7 = vector.shape_cast %6 : vector<256x16xf32> to vector<4x64x16xf32>
    %8 = vector.extract_strided_slice %5 {offsets = [0, 64], sizes = [256, 16], strides = [1, 1]} : vector<256x256xf32> to vector<256x16xf32>
    %9 = vector.shape_cast %8 : vector<256x16xf32> to vector<4x64x16xf32>
    %10 = vector.extract_strided_slice %5 {offsets = [0, 128], sizes = [256, 32], strides = [1, 1]} : vector<256x256xf32> to vector<256x32xf32>
    %11 = vector.shape_cast %10 : vector<256x32xf32> to vector<4x64x32xf32>
    %12 = arith.truncf %7 : vector<4x64x16xf32> to vector<4x64x16xbf16>
    %13 = arith.truncf %9 : vector<4x64x16xf32> to vector<4x64x16xbf16>
    "tpu.trace_start"() <{level = 10 : i32, message = "bid,bjd->bij"}> : () -> ()
    %cst_5 = arith.constant dense<0.000000e+00> : vector<4x64x64xf32>
    %14 = tpu.matmul %12, %13, %cst_5 {dimension_numbers = #tpu.dot_dimension_numbers<[2], [2], [1], [1], [0, 0, 0, 1, 1, 1], [0], [0]>} : vector<4x64x16xbf16>, vector<4x64x16xbf16>, vector<4x64x64xf32> -> vector<4x64x64xf32>
    "tpu.trace_stop"() : () -> ()
    %c0_6 = arith.constant 0 : index
    %c0_7 = arith.constant 0 : index
    %c0_8 = arith.constant 0 : index
    %15 = vector.load %arg4[%c0_6, %c0_7, %c0_8] : memref<4x64x64xbf16, #tpu.memory_space<vmem>>, vector<1x64x64xbf16>
    %16 = vector.shape_cast %15 : vector<1x64x64xbf16> to vector<64x64xbf16>
    %17 = arith.extf %16 : vector<64x64xbf16> to vector<64x64xf32>
    %18 = vector.shape_cast %17 : vector<64x64xf32> to vector<1x64x64xf32>
    %19 = vector.broadcast %18 : vector<1x64x64xf32> to vector<4x64x64xf32>
    %20 = arith.addf %14, %19 : vector<4x64x64xf32>
    %cst_9 = arith.constant dense<0xFF800000> : vector<4x64xf32>
    %21 = vector.multi_reduction <maximumf>, %20, %cst_9 [2] : vector<4x64x64xf32> to vector<4x64xf32>
    %22 = vector.shape_cast %21 : vector<4x64xf32> to vector<4x64x1xf32>
    %23 = vector.broadcast %22 : vector<4x64x1xf32> to vector<4x64x64xf32>
    %24 = arith.subf %20, %23 : vector<4x64x64xf32>
    %25 = math.exp %24 : vector<4x64x64xf32>
    %cst_10 = arith.constant dense<0.000000e+00> : vector<4x64xf32>
    %26 = vector.multi_reduction <add>, %25, %cst_10 [2] : vector<4x64x64xf32> to vector<4x64xf32>
    %27 = vector.shape_cast %26 : vector<4x64xf32> to vector<4x64x1xf32>
    %28 = tpu.reciprocal %27 {approx = true} : vector<4x64x1xf32> -> vector<4x64x1xf32>
    %29 = vector.broadcast %28 : vector<4x64x1xf32> to vector<4x64x64xf32>
    %30 = arith.mulf %25, %29 : vector<4x64x64xf32>
    %31 = arith.truncf %30 : vector<4x64x64xf32> to vector<4x64x64xbf16>
    %32 = arith.truncf %11 : vector<4x64x32xf32> to vector<4x64x32xbf16>
    "tpu.trace_start"() <{level = 10 : i32, message = "bij,bjd->bid"}> : () -> ()
    %cst_11 = arith.constant dense<0.000000e+00> : vector<4x64x32xf32>
    %33 = tpu.matmul %31, %32, %cst_11 {dimension_numbers = #tpu.dot_dimension_numbers<[2], [1], [1], [2], [0, 0, 0, 1, 1, 2], [0], [0]>} : vector<4x64x64xbf16>, vector<4x64x32xbf16>, vector<4x64x32xf32> -> vector<4x64x32xf32>
    "tpu.trace_stop"() : () -> ()
    %34 = vector.extract_strided_slice %5 {offsets = [0, 16], sizes = [256, 16], strides = [1, 1]} : vector<256x256xf32> to vector<256x16xf32>
    %35 = vector.shape_cast %34 : vector<256x16xf32> to vector<4x64x16xf32>
    %36 = vector.extract_strided_slice %5 {offsets = [0, 80], sizes = [256, 16], strides = [1, 1]} : vector<256x256xf32> to vector<256x16xf32>
    %37 = vector.shape_cast %36 : vector<256x16xf32> to vector<4x64x16xf32>
    %38 = vector.extract_strided_slice %5 {offsets = [0, 160], sizes = [256, 32], strides = [1, 1]} : vector<256x256xf32> to vector<256x32xf32>
    %39 = vector.shape_cast %38 : vector<256x32xf32> to vector<4x64x32xf32>
    %40 = arith.truncf %35 : vector<4x64x16xf32> to vector<4x64x16xbf16>
    %41 = arith.truncf %37 : vector<4x64x16xf32> to vector<4x64x16xbf16>
    "tpu.trace_start"() <{level = 10 : i32, message = "bid,bjd->bij"}> : () -> ()
    %cst_12 = arith.constant dense<0.000000e+00> : vector<4x64x64xf32>
    %42 = tpu.matmul %40, %41, %cst_12 {dimension_numbers = #tpu.dot_dimension_numbers<[2], [2], [1], [1], [0, 0, 0, 1, 1, 1], [0], [0]>} : vector<4x64x16xbf16>, vector<4x64x16xbf16>, vector<4x64x64xf32> -> vector<4x64x64xf32>
    "tpu.trace_stop"() : () -> ()
    %c1 = arith.constant 1 : index
    %c0_13 = arith.constant 0 : index
    %c0_14 = arith.constant 0 : index
    %43 = vector.load %arg4[%c1, %c0_13, %c0_14] : memref<4x64x64xbf16, #tpu.memory_space<vmem>>, vector<1x64x64xbf16>
    %44 = vector.shape_cast %43 : vector<1x64x64xbf16> to vector<64x64xbf16>
    %45 = arith.extf %44 : vector<64x64xbf16> to vector<64x64xf32>
    %46 = vector.shape_cast %45 : vector<64x64xf32> to vector<1x64x64xf32>
    %47 = vector.broadcast %46 : vector<1x64x64xf32> to vector<4x64x64xf32>
    %48 = arith.addf %42, %47 : vector<4x64x64xf32>
    %cst_15 = arith.constant dense<0xFF800000> : vector<4x64xf32>
    %49 = vector.multi_reduction <maximumf>, %48, %cst_15 [2] : vector<4x64x64xf32> to vector<4x64xf32>
    %50 = vector.shape_cast %49 : vector<4x64xf32> to vector<4x64x1xf32>
    %51 = vector.broadcast %50 : vector<4x64x1xf32> to vector<4x64x64xf32>
    %52 = arith.subf %48, %51 : vector<4x64x64xf32>
    %53 = math.exp %52 : vector<4x64x64xf32>
    %cst_16 = arith.constant dense<0.000000e+00> : vector<4x64xf32>
    %54 = vector.multi_reduction <add>, %53, %cst_16 [2] : vector<4x64x64xf32> to vector<4x64xf32>
    %55 = vector.shape_cast %54 : vector<4x64xf32> to vector<4x64x1xf32>
    %56 = tpu.reciprocal %55 {approx = true} : vector<4x64x1xf32> -> vector<4x64x1xf32>
    %57 = vector.broadcast %56 : vector<4x64x1xf32> to vector<4x64x64xf32>
    %58 = arith.mulf %53, %57 : vector<4x64x64xf32>
    %59 = arith.truncf %58 : vector<4x64x64xf32> to vector<4x64x64xbf16>
    %60 = arith.truncf %39 : vector<4x64x32xf32> to vector<4x64x32xbf16>
    "tpu.trace_start"() <{level = 10 : i32, message = "bij,bjd->bid"}> : () -> ()
    %cst_17 = arith.constant dense<0.000000e+00> : vector<4x64x32xf32>
    %61 = tpu.matmul %59, %60, %cst_17 {dimension_numbers = #tpu.dot_dimension_numbers<[2], [1], [1], [2], [0, 0, 0, 1, 1, 2], [0], [0]>} : vector<4x64x64xbf16>, vector<4x64x32xbf16>, vector<4x64x32xf32> -> vector<4x64x32xf32>
    "tpu.trace_stop"() : () -> ()
    %62 = vector.extract_strided_slice %5 {offsets = [0, 32], sizes = [256, 16], strides = [1, 1]} : vector<256x256xf32> to vector<256x16xf32>
    %63 = vector.shape_cast %62 : vector<256x16xf32> to vector<4x64x16xf32>
    %64 = vector.extract_strided_slice %5 {offsets = [0, 96], sizes = [256, 16], strides = [1, 1]} : vector<256x256xf32> to vector<256x16xf32>
    %65 = vector.shape_cast %64 : vector<256x16xf32> to vector<4x64x16xf32>
    %66 = vector.extract_strided_slice %5 {offsets = [0, 192], sizes = [256, 32], strides = [1, 1]} : vector<256x256xf32> to vector<256x32xf32>
    %67 = vector.shape_cast %66 : vector<256x32xf32> to vector<4x64x32xf32>
    %68 = arith.truncf %63 : vector<4x64x16xf32> to vector<4x64x16xbf16>
    %69 = arith.truncf %65 : vector<4x64x16xf32> to vector<4x64x16xbf16>
    "tpu.trace_start"() <{level = 10 : i32, message = "bid,bjd->bij"}> : () -> ()
    %cst_18 = arith.constant dense<0.000000e+00> : vector<4x64x64xf32>
    %70 = tpu.matmul %68, %69, %cst_18 {dimension_numbers = #tpu.dot_dimension_numbers<[2], [2], [1], [1], [0, 0, 0, 1, 1, 1], [0], [0]>} : vector<4x64x16xbf16>, vector<4x64x16xbf16>, vector<4x64x64xf32> -> vector<4x64x64xf32>
    "tpu.trace_stop"() : () -> ()
    %c2 = arith.constant 2 : index
    %c0_19 = arith.constant 0 : index
    %c0_20 = arith.constant 0 : index
    %71 = vector.load %arg4[%c2, %c0_19, %c0_20] : memref<4x64x64xbf16, #tpu.memory_space<vmem>>, vector<1x64x64xbf16>
    %72 = vector.shape_cast %71 : vector<1x64x64xbf16> to vector<64x64xbf16>
    %73 = arith.extf %72 : vector<64x64xbf16> to vector<64x64xf32>
    %74 = vector.shape_cast %73 : vector<64x64xf32> to vector<1x64x64xf32>
    %75 = vector.broadcast %74 : vector<1x64x64xf32> to vector<4x64x64xf32>
    %76 = arith.addf %70, %75 : vector<4x64x64xf32>
    %cst_21 = arith.constant dense<0xFF800000> : vector<4x64xf32>
    %77 = vector.multi_reduction <maximumf>, %76, %cst_21 [2] : vector<4x64x64xf32> to vector<4x64xf32>
    %78 = vector.shape_cast %77 : vector<4x64xf32> to vector<4x64x1xf32>
    %79 = vector.broadcast %78 : vector<4x64x1xf32> to vector<4x64x64xf32>
    %80 = arith.subf %76, %79 : vector<4x64x64xf32>
    %81 = math.exp %80 : vector<4x64x64xf32>
    %cst_22 = arith.constant dense<0.000000e+00> : vector<4x64xf32>
    %82 = vector.multi_reduction <add>, %81, %cst_22 [2] : vector<4x64x64xf32> to vector<4x64xf32>
    %83 = vector.shape_cast %82 : vector<4x64xf32> to vector<4x64x1xf32>
    %84 = tpu.reciprocal %83 {approx = true} : vector<4x64x1xf32> -> vector<4x64x1xf32>
    %85 = vector.broadcast %84 : vector<4x64x1xf32> to vector<4x64x64xf32>
    %86 = arith.mulf %81, %85 : vector<4x64x64xf32>
    %87 = arith.truncf %86 : vector<4x64x64xf32> to vector<4x64x64xbf16>
    %88 = arith.truncf %67 : vector<4x64x32xf32> to vector<4x64x32xbf16>
    "tpu.trace_start"() <{level = 10 : i32, message = "bij,bjd->bid"}> : () -> ()
    %cst_23 = arith.constant dense<0.000000e+00> : vector<4x64x32xf32>
    %89 = tpu.matmul %87, %88, %cst_23 {dimension_numbers = #tpu.dot_dimension_numbers<[2], [1], [1], [2], [0, 0, 0, 1, 1, 2], [0], [0]>} : vector<4x64x64xbf16>, vector<4x64x32xbf16>, vector<4x64x32xf32> -> vector<4x64x32xf32>
    "tpu.trace_stop"() : () -> ()
    %90 = vector.extract_strided_slice %5 {offsets = [0, 48], sizes = [256, 16], strides = [1, 1]} : vector<256x256xf32> to vector<256x16xf32>
    %91 = vector.shape_cast %90 : vector<256x16xf32> to vector<4x64x16xf32>
    %92 = vector.extract_strided_slice %5 {offsets = [0, 112], sizes = [256, 16], strides = [1, 1]} : vector<256x256xf32> to vector<256x16xf32>
    %93 = vector.shape_cast %92 : vector<256x16xf32> to vector<4x64x16xf32>
    %94 = vector.extract_strided_slice %5 {offsets = [0, 224], sizes = [256, 32], strides = [1, 1]} : vector<256x256xf32> to vector<256x32xf32>
    %95 = vector.shape_cast %94 : vector<256x32xf32> to vector<4x64x32xf32>
    %96 = arith.truncf %91 : vector<4x64x16xf32> to vector<4x64x16xbf16>
    %97 = arith.truncf %93 : vector<4x64x16xf32> to vector<4x64x16xbf16>
    "tpu.trace_start"() <{level = 10 : i32, message = "bid,bjd->bij"}> : () -> ()
    %cst_24 = arith.constant dense<0.000000e+00> : vector<4x64x64xf32>
    %98 = tpu.matmul %96, %97, %cst_24 {dimension_numbers = #tpu.dot_dimension_numbers<[2], [2], [1], [1], [0, 0, 0, 1, 1, 1], [0], [0]>} : vector<4x64x16xbf16>, vector<4x64x16xbf16>, vector<4x64x64xf32> -> vector<4x64x64xf32>
    "tpu.trace_stop"() : () -> ()
    %c3 = arith.constant 3 : index
    %c0_25 = arith.constant 0 : index
    %c0_26 = arith.constant 0 : index
    %99 = vector.load %arg4[%c3, %c0_25, %c0_26] : memref<4x64x64xbf16, #tpu.memory_space<vmem>>, vector<1x64x64xbf16>
    %100 = vector.shape_cast %99 : vector<1x64x64xbf16> to vector<64x64xbf16>
    %101 = arith.extf %100 : vector<64x64xbf16> to vector<64x64xf32>
    %102 = vector.shape_cast %101 : vector<64x64xf32> to vector<1x64x64xf32>
    %103 = vector.broadcast %102 : vector<1x64x64xf32> to vector<4x64x64xf32>
    %104 = arith.addf %98, %103 : vector<4x64x64xf32>
    %cst_27 = arith.constant dense<0xFF800000> : vector<4x64xf32>
    %105 = vector.multi_reduction <maximumf>, %104, %cst_27 [2] : vector<4x64x64xf32> to vector<4x64xf32>
    %106 = vector.shape_cast %105 : vector<4x64xf32> to vector<4x64x1xf32>
    %107 = vector.broadcast %106 : vector<4x64x1xf32> to vector<4x64x64xf32>
    %108 = arith.subf %104, %107 : vector<4x64x64xf32>
    %109 = math.exp %108 : vector<4x64x64xf32>
    %cst_28 = arith.constant dense<0.000000e+00> : vector<4x64xf32>
    %110 = vector.multi_reduction <add>, %109, %cst_28 [2] : vector<4x64x64xf32> to vector<4x64xf32>
    %111 = vector.shape_cast %110 : vector<4x64xf32> to vector<4x64x1xf32>
    %112 = tpu.reciprocal %111 {approx = true} : vector<4x64x1xf32> -> vector<4x64x1xf32>
    %113 = vector.broadcast %112 : vector<4x64x1xf32> to vector<4x64x64xf32>
    %114 = arith.mulf %109, %113 : vector<4x64x64xf32>
    %115 = arith.truncf %114 : vector<4x64x64xf32> to vector<4x64x64xbf16>
    %116 = arith.truncf %95 : vector<4x64x32xf32> to vector<4x64x32xbf16>
    "tpu.trace_start"() <{level = 10 : i32, message = "bij,bjd->bid"}> : () -> ()
    %cst_29 = arith.constant dense<0.000000e+00> : vector<4x64x32xf32>
    %117 = tpu.matmul %115, %116, %cst_29 {dimension_numbers = #tpu.dot_dimension_numbers<[2], [1], [1], [2], [0, 0, 0, 1, 1, 2], [0], [0]>} : vector<4x64x64xbf16>, vector<4x64x32xbf16>, vector<4x64x32xf32> -> vector<4x64x32xf32>
    "tpu.trace_stop"() : () -> ()
    %118 = tpu.concatenate %33, %61, %89, %117 in 2 : vector<4x64x32xf32>, vector<4x64x32xf32>, vector<4x64x32xf32>, vector<4x64x32xf32> -> vector<4x64x128xf32>
    %119 = vector.shape_cast %118 : vector<4x64x128xf32> to vector<256x128xf32>
    %cst_30 = arith.constant 5.000000e-01 : f32
    %120 = vector.broadcast %cst_30 : f32 to vector<256x128xf32>
    %121 = arith.mulf %120, %119 : vector<256x128xf32>
    %cst_31 = arith.constant 0.707106769 : f32
    %122 = vector.broadcast %cst_31 : f32 to vector<256x128xf32>
    %123 = arith.mulf %119, %122 : vector<256x128xf32>
    %124 = math.erf %123 : vector<256x128xf32>
    %cst_32 = arith.constant 1.000000e+00 : f32
    %125 = vector.broadcast %cst_32 : f32 to vector<256x128xf32>
    %126 = arith.addf %125, %124 : vector<256x128xf32>
    %127 = arith.mulf %121, %126 : vector<256x128xf32>
    %128 = arith.truncf %127 : vector<256x128xf32> to vector<256x128xbf16>
    %c0_33 = arith.constant 0 : index
    %c0_34 = arith.constant 0 : index
    %129 = vector.load %arg5[%c0_33, %c0_34] : memref<128x128xbf16, #tpu.memory_space<vmem>>, vector<128x128xbf16>
    %cst_35 = arith.constant dense<0.000000e+00> : vector<256x128xf32>
    %130 = tpu.matmul %128, %129, %cst_35 {dimension_numbers = #tpu.dot_dimension_numbers<[1], [0], [0], [1], [0, 0, 1, 1], [], []>} : vector<256x128xbf16>, vector<128x128xbf16>, vector<256x128xf32> -> vector<256x128xf32>
    %c0_36 = arith.constant 0 : index
    %c0_37 = arith.constant 0 : index
    %131 = vector.load %arg6[%c0_36, %c0_37] : memref<1x128xf32, #tpu.memory_space<vmem>>, vector<1x128xf32>
    %132 = vector.broadcast %131 : vector<1x128xf32> to vector<256x128xf32>
    %133 = arith.addf %130, %132 : vector<256x128xf32>
    %c0_38 = arith.constant 0 : index
    %c0_39 = arith.constant 0 : index
    %134 = vector.load %arg7[%c0_38, %c0_39] : memref<256x128xf32, #tpu.memory_space<vmem>>, vector<256x128xf32>
    tpu.vector_store %arg7[%c0_38, %c0_39], %133 {strides = array<i32>} : memref<256x128xf32, #tpu.memory_space<vmem>>, vector<256x128xf32>,
    return
  }
  func.func @transform_0(%arg0: i32) -> (i32, i32) {
    %c0_i32 = arith.constant 0 : i32
    %c0_i32_0 = arith.constant 0 : i32
    return %arg0, %c0_i32 : i32, i32
  }
  func.func @transform_1(%arg0: i32) -> (i32, i32) {
    %c0_i32 = arith.constant 0 : i32
    %c0_i32_0 = arith.constant 0 : i32
    %c0_i32_1 = arith.constant 0 : i32
    return %c0_i32, %c0_i32_0 : i32, i32
  }
  func.func @transform_2(%arg0: i32) -> (i32, i32) {
    %c0_i32 = arith.constant 0 : i32
    %c0_i32_0 = arith.constant 0 : i32
    %c0_i32_1 = arith.constant 0 : i32
    return %c0_i32, %c0_i32_0 : i32, i32
  }
  func.func @transform_3(%arg0: i32) -> (i32, i32, i32) {
    %c0_i32 = arith.constant 0 : i32
    %c0_i32_0 = arith.constant 0 : i32
    %c0_i32_1 = arith.constant 0 : i32
    %c0_i32_2 = arith.constant 0 : i32
    return %c0_i32, %c0_i32_0, %c0_i32_1 : i32, i32, i32
  }
  func.func @transform_4(%arg0: i32) -> (i32, i32) {
    %c0_i32 = arith.constant 0 : i32
    %c0_i32_0 = arith.constant 0 : i32
    %c0_i32_1 = arith.constant 0 : i32
    return %c0_i32, %c0_i32_0 : i32, i32
  }
  func.func @transform_5(%arg0: i32) -> (i32, i32) {
    %c0_i32 = arith.constant 0 : i32
    %c0_i32_0 = arith.constant 0 : i32
    %c0_i32_1 = arith.constant 0 : i32
    return %c0_i32, %c0_i32_0 : i32, i32
  }
  func.func @transform_6(%arg0: i32) -> (i32, i32) {
    %c0_i32 = arith.constant 0 : i32
    %c0_i32_0 = arith.constant 0 : i32
    return %arg0, %c0_i32 : i32, i32
  }
}

</mosaic_0001>

<llo_original>
// kernel: levit_attention_forward.1
$region0: #{levit_attention_forward.1}
  #allocation0 [shape = 'u32[]', space=smem, size = 0x4, offset = 0x4, fixed_abs, tag = 'smem constant byte address 0x4 - core index']
  #allocation1 [shape = 'u32[72,128]{1,0:T(1,128)}', space=vmem, size = 0x9000, scoped, tag = 'internal scratch']
  %s0 = inlined_call_operand.vmem [shape: bf16[512,16], index: 0, kind: input, shape index: {}]
  %s1 = inlined_call_operand.vmem [shape: bf16[16,256], index: 1, kind: input, shape index: {}]
  %s2 = inlined_call_operand.vmem [shape: f32[1,256], index: 2, kind: input, shape index: {}]
  %s3 = inlined_call_operand.vmem [shape: bf16[4,64,64], index: 3, kind: input, shape index: {}]
  %s4 = inlined_call_operand.vmem [shape: bf16[128,128], index: 4, kind: input, shape index: {}]
  %s5 = inlined_call_operand.vmem [shape: f32[1,128], index: 5, kind: input, shape index: {}]
  %s6 = inlined_call_operand.hbm [shape: f32[512,128], index: 6, kind: output, shape index: {}]
  %s7 = sld [smem:[#allocation0]]
  $region57: #{levit_attention_forward.1} parent=0
    _
  %s9 = ssub.s32 1, %s7
  %s10 = scalar_select 0, %s9, %s7
  $region1: #{levit_attention_forward.1} parent=0
    #allocation2 [shape = 'u8[262144]{0}', space=vmem, size = 0x40000, scoped, tag = 'output window, operand 0']
    #allocation3 [shape = 's32[2]{0}', space=sflag, size = 0x8, scoped, tag = 'scoped memory for levit_attention_forward.1']
    %11 = vsyncpa [#allocation3], 0
    %s12 = scalar_lea.sflag [#allocation3], 1
    %13 = vsyncpa %s12, 0
    loop: start=0, step=1, limit=4
    $region2: #{levit_attention_forward.1} parent=1 // loop_pre_header
      _
    $region3: #{levit_attention_forward.1} parent=1 // loop_header
      %s15 = sphi 0, %s19
      %p16 = scmp.ge.s32.totalorder %s15, 4
      %s25 = sphi 0, %s27
      %s28 = sphi 0, %s25
      %s29 = sphi 0, %s28
      %s45 = sphi 0, %s29
      %s49 = sphi 0, %s49
      %s51 = sphi 0, %s49
      %s52 = sphi 0, %s51
      %s66 = sphi 0, %s52
      %s70 = sphi 0, %s70
      %s72 = sphi 0, %s70
      %s73 = sphi 0, %s72
      %s87 = sphi 0, %s73
      %s91 = sphi 0, %s91
      %s93 = sphi 0, %s91
      %s94 = sphi 0, %s93
      %s108 = sphi 0, %s94
      %s112 = sphi 0, %s112
      %s114 = sphi 0, %s112
      %s115 = sphi 0, %s114
      %s129 = sphi 0, %s115
      %s133 = sphi 0, %s133
      %s135 = sphi 0, %s133
      %s136 = sphi 0, %s135
      %s150 = sphi 0, %s136
      %s156 = sphi 0, %s158
      %s159 = sphi 0, %s156
      %s160 = sphi 0, %s159
      %s176 = sphi 0, %s160
    $region4: #{levit_attention_forward.1} parent=1 // loop_header_branch
      %18 = sbr.rel (%p16) target = $region8
    $region5: #{levit_attention_forward.1} parent=1 // loop_body
      %s20 = ssub.s32 %s15, 1
      %s21 = ssub.s32 %s15, 2
      %s22 = sadd.s32 %s15, 1
      %s23 = ssub.s32 %s15, %s22
      %p24 = scmp.eq.s32.totalorder %s23, 0
      %s26 = sadd.s32 %s25, 1
      %s27 = scalar_select %p24, %s25, %s26
      %p30 = pneg %p24
      %p31 = scmp.eq.s32.totalorder %s15, 1
      %p32 = por %p30, %p31
      %p33 = scmp.ne.s32.totalorder %s25, %s28
      %p34 = scmp.eq.s32.totalorder %s15, 0
      %p35 = por %p33, %p34
      %p36 = scmp.ne.s32.totalorder %s25, %s28
      %p37 = scmp.eq.s32.totalorder %s20, 1
      %p38 = por %p36, %p37
      %p39 = scmp.ne.s32.totalorder %s28, %s29
      %p40 = scmp.eq.s32.totalorder %s20, 0
      %p41 = por %p39, %p40
      %p42 = scmp.ne.s32.totalorder %s28, %s29
      %p43 = scmp.eq.s32.totalorder %s21, 1
      %p44 = por %p42, %p43
      %p46 = scmp.ne.s32.totalorder %s29, %s45
      %p47 = scmp.eq.s32.totalorder %s21, 0
      %p48 = por %p46, %p47
      %s50 = sadd.s32 %s49, 1
      %p53 = scmp.eq.s32.totalorder %s15, 1
      %p54 = scmp.ne.s32.totalorder %s49, %s51
      %p55 = scmp.eq.s32.totalorder %s15, 0
      %p56 = por %p54, %p55
      %p57 = scmp.ne.s32.totalorder %s49, %s51
      %p58 = scmp.eq.s32.totalorder %s20, 1
      %p59 = por %p57, %p58
      %p60 = scmp.ne.s32.totalorder %s51, %s52
      %p61 = scmp.eq.s32.totalorder %s20, 0
      %p62 = por %p60, %p61
      %p63 = scmp.ne.s32.totalorder %s51, %s52
      %p64 = scmp.eq.s32.totalorder %s21, 1
      %p65 = por %p63, %p64
      %p67 = scmp.ne.s32.totalorder %s52, %s66
      %p68 = scmp.eq.s32.totalorder %s21, 0
      %p69 = por %p67, %p68
      %s71 = sadd.s32 %s70, 1
      %p74 = scmp.eq.s32.totalorder %s15, 1
      %p75 = scmp.ne.s32.totalorder %s70, %s72
      %p76 = scmp.eq.s32.totalorder %s15, 0
      %p77 = por %p75, %p76
      %p78 = scmp.ne.s32.totalorder %s70, %s72
      %p79 = scmp.eq.s32.totalorder %s20, 1
      %p80 = por %p78, %p79
      %p81 = scmp.ne.s32.totalorder %s72, %s73
      %p82 = scmp.eq.s32.totalorder %s20, 0
      %p83 = por %p81, %p82
      %p84 = scmp.ne.s32.totalorder %s72, %s73
      %p85 = scmp.eq.s32.totalorder %s21, 1
      %p86 = por %p84, %p85
      %p88 = scmp.ne.s32.totalorder %s73, %s87
      %p89 = scmp.eq.s32.totalorder %s21, 0
      %p90 = por %p88, %p89
      %s92 = sadd.s32 %s91, 1
      %p95 = scmp.eq.s32.totalorder %s15, 1
      %p96 = scmp.ne.s32.totalorder %s91, %s93
      %p97 = scmp.eq.s32.totalorder %s15, 0
      %p98 = por %p96, %p97
      %p99 = scmp.ne.s32.totalorder %s91, %s93
      %p100 = scmp.eq.s32.totalorder %s20, 1
      %p101 = por %p99, %p100
      %p102 = scmp.ne.s32.totalorder %s93, %s94
      %p103 = scmp.eq.s32.totalorder %s20, 0
      %p104 = por %p102, %p103
      %p105 = scmp.ne.s32.totalorder %s93, %s94
      %p106 = scmp.eq.s32.totalorder %s21, 1
      %p107 = por %p105, %p106
      %p109 = scmp.ne.s32.totalorder %s94, %s108
      %p110 = scmp.eq.s32.totalorder %s21, 0
      %p111 = por %p109, %p110
      %s113 = sadd.s32 %s112, 1
      %p116 = scmp.eq.s32.totalorder %s15, 1
      %p117 = scmp.ne.s32.totalorder %s112, %s114
      %p118 = scmp.eq.s32.totalorder %s15, 0
      %p119 = por %p117, %p118
      %p120 = scmp.ne.s32.totalorder %s112, %s114
      %p121 = scmp.eq.s32.totalorder %s20, 1
      %p122 = por %p120, %p121
      %p123 = scmp.ne.s32.totalorder %s114, %s115
      %p124 = scmp.eq.s32.totalorder %s20, 0
      %p125 = por %p123, %p124
      %p126 = scmp.ne.s32.totalorder %s114, %s115
      %p127 = scmp.eq.s32.totalorder %s21, 1
      %p128 = por %p126, %p127
      %p130 = scmp.ne.s32.totalorder %s115, %s129
      %p131 = scmp.eq.s32.totalorder %s21, 0
      %p132 = por %p130, %p131
      %s134 = sadd.s32 %s133, 1
      %p137 = scmp.eq.s32.totalorder %s15, 1
      %p138 = scmp.ne.s32.totalorder %s133, %s135
      %p139 = scmp.eq.s32.totalorder %s15, 0
      %p140 = por %p138, %p139
      %p141 = scmp.ne.s32.totalorder %s133, %s135
      %p142 = scmp.eq.s32.totalorder %s20, 1
      %p143 = por %p141, %p142
      %p144 = scmp.ne.s32.totalorder %s135, %s136
      %p145 = scmp.eq.s32.totalorder %s20, 0
      %p146 = por %p144, %p145
      %p147 = scmp.ne.s32.totalorder %s135, %s136
      %p148 = scmp.eq.s32.totalorder %s21, 1
      %p149 = por %p147, %p148
      %p151 = scmp.ne.s32.totalorder %s136, %s150
      %p152 = scmp.eq.s32.totalorder %s21, 0
      %p153 = por %p151, %p152
      %s154 = ssub.s32 %s15, %s22
      %p155 = scmp.eq.s32.totalorder %s154, 0
      %s157 = sadd.s32 %s156, 1
      %s158 = scalar_select %p155, %s156, %s157
      %p161 = pneg %p155
      %p162 = scmp.eq.s32.totalorder %s15, 1
      %p163 = por %p161, %p162
      %p164 = scmp.ne.s32.totalorder %s156, %s159
      %p165 = scmp.eq.s32.totalorder %s15, 0
      %p166 = por %p164, %p165
      %p167 = scmp.ne.s32.totalorder %s156, %s159
      %p168 = scmp.eq.s32.totalorder %s20, 1
      %p169 = por %p167, %p168
      %p170 = scmp.ne.s32.totalorder %s159, %s160
      %p171 = scmp.eq.s32.totalorder %s20, 0
      %p172 = por %p170, %p171
      %p173 = scmp.ne.s32.totalorder %s159, %s160
      %p174 = scmp.eq.s32.totalorder %s21, 1
      %p175 = por %p173, %p174
      %p177 = scmp.ne.s32.totalorder %s160, %s176
      %p178 = scmp.eq.s32.totalorder %s21, 0
      %p179 = por %p177, %p178
      %p180 = scmp.le.s32.totalorder 1, %s15
      %p181 = scmp.lt.s32.totalorder %s15, 3
      %p182 = pnand %p180, %p181
      %p183 = pneg %p182
      // Predicated region
      $region9: #{levit_attention_forward.1} parent=5 // pred_check
        _
      $region10: #{levit_attention_forward.1} parent=5 // pred_check_branch
        %185 = sbr.rel (%p182) target = $region12
      $region11: #{levit_attention_forward.1} parent=5 // pred_region
        %s186 = ssub.s32 %s15, 1
        // Predicated region
        $region13: #{levit_attention_forward.1} parent=11 // pred_check
          %p187 = pneg %p62
        $region14: #{levit_attention_forward.1} parent=11 // pred_check_branch
          %189 = sbr.rel (%p187) target = $region16
        $region15: #{levit_attention_forward.1} parent=11 // pred_region
          _
        $region16: #{levit_attention_forward.1} parent=11 // pred_fallthru
          _
        // Predicated region
        $region17: #{levit_attention_forward.1} parent=11 // pred_check
          %p190 = pneg %p83
        $region18: #{levit_attention_forward.1} parent=11 // pred_check_branch
          %192 = sbr.rel (%p190) target = $region20
        $region19: #{levit_attention_forward.1} parent=11 // pred_region
          _
        $region20: #{levit_attention_forward.1} parent=11 // pred_fallthru
          _
        // Predicated region
        $region21: #{levit_attention_forward.1} parent=11 // pred_check
          %p193 = pneg %p104
        $region22: #{levit_attention_forward.1} parent=11 // pred_check_branch
          %195 = sbr.rel (%p193) target = $region24
        $region23: #{levit_attention_forward.1} parent=11 // pred_region
          _
        $region24: #{levit_attention_forward.1} parent=11 // pred_fallthru
          _
        // Predicated region
        $region25: #{levit_attention_forward.1} parent=11 // pred_check
          %p196 = pneg %p125
        $region26: #{levit_attention_forward.1} parent=11 // pred_check_branch
          %198 = sbr.rel (%p196) target = $region28
        $region27: #{levit_attention_forward.1} parent=11 // pred_region
          _
        $region28: #{levit_attention_forward.1} parent=11 // pred_fallthru
          _
        // Predicated region
        $region29: #{levit_attention_forward.1} parent=11 // pred_check
          %p199 = pneg %p146
        $region30: #{levit_attention_forward.1} parent=11 // pred_check_branch
          %201 = sbr.rel (%p199) target = $region32
        $region31: #{levit_attention_forward.1} parent=11 // pred_region
          _
        $region32: #{levit_attention_forward.1} parent=11 // pred_fallthru
          _
      $region12: #{levit_attention_forward.1} parent=5 // pred_fallthru
        _
      %p202 = scmp.lt.s32.totalorder %s15, 2
      // Predicated region
      $region33: #{levit_attention_forward.1} parent=5 // pred_check
        %p203 = pneg %p202
      $region34: #{levit_attention_forward.1} parent=5 // pred_check_branch
        %205 = sbr.rel (%p203) target = $region36
      $region35: #{levit_attention_forward.1} parent=5 // pred_region
        // Predicated region
        $region37: #{levit_attention_forward.1} parent=35 // pred_check
          %p206 = pneg %p35
        $region38: #{levit_attention_forward.1} parent=35 // pred_check_branch
          %208 = sbr.rel (%p206) target = $region40
        $region39: #{levit_attention_forward.1} parent=35 // pred_region
          %s209 = smul.u32 32, %s15
          %p210 = scmp.lt.s32.totalorder %s209, 63
          %s211 = scalar_select %p210, %s209, 63
          %s212 = smul.addr %s211, 4
          %s213 = scalar_lea.vmem %s0, %s212
          %s214 = smul.u32 32, %s15
        $region40: #{levit_attention_forward.1} parent=35 // pred_fallthru
          _
      $region36: #{levit_attention_forward.1} parent=5 // pred_fallthru
        _
      %p215 = scmp.le.s32.totalorder 1, %s15
      %p216 = scmp.lt.s32.totalorder %s15, 3
      %p217 = pnand %p215, %p216
      %p218 = pneg %p217
      // Predicated region
      $region41: #{levit_attention_forward.1} parent=5 // pred_check
        _
      $region42: #{levit_attention_forward.1} parent=5 // pred_check_branch
        %220 = sbr.rel (%p217) target = $region44
      $region43: #{levit_attention_forward.1} parent=5 // pred_region
        %s221 = ssub.s32 %s15, 1
        %s222 = smul.u32 32, %s20
        %p223 = scmp.lt.s32.totalorder %s222, 63
        %s224 = scalar_select %p223, %s222, 63
        %s225 = smul.addr %s224, 4
        %s226 = scalar_lea.vmem %s0, %s225
        %p227 = pneg %p41
        %p228 = pneg %p38
        %p229 = pneg %p62
        %p230 = pneg %p59
        %p231 = pneg %p83
        %p232 = pneg %p80
        %p233 = pneg %p104
        %p234 = pneg %p101
        %p235 = pneg %p125
        %p236 = pneg %p122
        %p237 = pneg %p146
        %p238 = pneg %p143
        %p239 = pneg %p172
        %p240 = pneg %p169
        %s241 = sand.u32 %s159, 1
        %s242 = scalar_lea.sflag [#allocation3], %s241
        %s243 = sand.u32 %s159, 1
        %s244 = smul.addr %s243, 256
        %s245 = scalar_lea.vmem [#allocation2], %s244
        %s246 = smul.u32 32, %s20
        %p247 = scmp.lt.s32.totalorder %s246, 63
        %s248 = scalar_select %p247, %s246, 63
        %s249 = smul.addr %s248, 4
        %s250 = scalar_lea.vmem %s0, %s249
        %s251 = smul.u32 32, %s20
        %s252 = smul.u32 32, %s20
        %v254 = vld [vmem:[%s250] sm:$0xf]
        %v255 = vld [vmem:[%s250 + $0x4] sm:$0xf]
        %v256 = vld [vmem:[%s250 + $0x8] sm:$0xf]
        %v257 = vld [vmem:[%s250 + $0xc] sm:$0xf]
        %v258 = vld [vmem:[%s250 + $0x10] sm:$0xf]
        %v259 = vld [vmem:[%s250 + $0x14] sm:$0xf]
        %v260 = vld [vmem:[%s250 + $0x18] sm:$0xf]
        %v261 = vld [vmem:[%s250 + $0x1c] sm:$0xf]
        %v262 = vld [vmem:[%s250 + $0x20] sm:$0xf]
        %v263 = vld [vmem:[%s250 + $0x24] sm:$0xf]
        %v264 = vld [vmem:[%s250 + $0x28] sm:$0xf]
        %v265 = vld [vmem:[%s250 + $0x2c] sm:$0xf]
        %v266 = vld [vmem:[%s250 + $0x30] sm:$0xf]
        %v267 = vld [vmem:[%s250 + $0x34] sm:$0xf]
        %v268 = vld [vmem:[%s250 + $0x38] sm:$0xf]
        %v269 = vld [vmem:[%s250 + $0x3c] sm:$0xf]
        %v270 = vld [vmem:[%s250 + $0x40] sm:$0xf]
        %v271 = vld [vmem:[%s250 + $0x44] sm:$0xf]
        %v272 = vld [vmem:[%s250 + $0x48] sm:$0xf]
        %v273 = vld [vmem:[%s250 + $0x4c] sm:$0xf]
        %v274 = vld [vmem:[%s250 + $0x50] sm:$0xf]
        %v275 = vld [vmem:[%s250 + $0x54] sm:$0xf]
        %v276 = vld [vmem:[%s250 + $0x58] sm:$0xf]
        %v277 = vld [vmem:[%s250 + $0x5c] sm:$0xf]
        %v278 = vld [vmem:[%s250 + $0x60] sm:$0xf]
        %v279 = vld [vmem:[%s250 + $0x64] sm:$0xf]
        %v280 = vld [vmem:[%s250 + $0x68] sm:$0xf]
        %v281 = vld [vmem:[%s250 + $0x6c] sm:$0xf]
        %v282 = vld [vmem:[%s250 + $0x70] sm:$0xf]
        %v283 = vld [vmem:[%s250 + $0x74] sm:$0xf]
        %v284 = vld [vmem:[%s250 + $0x78] sm:$0xf]
        %v285 = vld [vmem:[%s250 + $0x7c] sm:$0xf]
        %v286 = vld [vmem:[%s1] sm:$0xff]
        %v287 = vld [vmem:[%s1 + $0x8] sm:$0xff]
        %v288 = vld [vmem:[%s2] sm:$0x3]
        %v290 = vperm.slane %v288, 0
        %v291 = vperm.slane %v288, 1
        %v326 = vunpack.c.l.b16 %v254
        %v327 = vunpack.c.l.b16 %v255
        %v328 = vunpack.c.l.b16 %v256
        %v329 = vunpack.c.l.b16 %v257
        %v330 = vunpack.c.l.b16 %v258
        %v331 = vunpack.c.l.b16 %v259
        %v332 = vunpack.c.l.b16 %v260
        %v333 = vunpack.c.l.b16 %v261
        %v334 = vunpack.c.l.b16 %v262
        %v335 = vunpack.c.l.b16 %v263
        %v336 = vunpack.c.l.b16 %v264
        %v337 = vunpack.c.l.b16 %v265
        %v338 = vunpack.c.l.b16 %v266
        %v339 = vunpack.c.l.b16 %v267
        %v340 = vunpack.c.l.b16 %v268
        %v341 = vunpack.c.l.b16 %v269
        %v342 = vunpack.c.l.b16 %v270
        %v343 = vunpack.c.l.b16 %v271
        %v344 = vunpack.c.l.b16 %v272
        %v345 = vunpack.c.l.b16 %v273
        %v346 = vunpack.c.l.b16 %v274
        %v347 = vunpack.c.l.b16 %v275
        %v348 = vunpack.c.l.b16 %v276
        %v349 = vunpack.c.l.b16 %v277
        %v350 = vunpack.c.l.b16 %v278
        %v351 = vunpack.c.l.b16 %v279
        %v352 = vunpack.c.l.b16 %v280
        %v353 = vunpack.c.l.b16 %v281
        %v354 = vunpack.c.l.b16 %v282
        %v355 = vunpack.c.l.b16 %v283
        %v356 = vunpack.c.l.b16 %v284
        %v357 = vunpack.c.l.b16 %v285
        %v358 = vpack.c.b16 %v327, %v326
        %v359 = vpack.c.b16 %v329, %v328
        %v360 = vpack.c.b16 %v331, %v330
        %v361 = vpack.c.b16 %v333, %v332
        %v362 = vpack.c.b16 %v335, %v334
        %v363 = vpack.c.b16 %v337, %v336
        %v364 = vpack.c.b16 %v339, %v338
        %v365 = vpack.c.b16 %v341, %v340
        %v366 = vpack.c.b16 %v343, %v342
        %v367 = vpack.c.b16 %v345, %v344
        %v368 = vpack.c.b16 %v347, %v346
        %v369 = vpack.c.b16 %v349, %v348
        %v370 = vpack.c.b16 %v351, %v350
        %v371 = vpack.c.b16 %v353, %v352
        %v372 = vpack.c.b16 %v355, %v354
        %v373 = vpack.c.b16 %v357, %v356
        %v376 = vunpack.c.l.b16 %v286
        %v377 = vunpack.c.h.b16 %v286
        %v378 = vunpack.c.l.b16 %v287
        %v379 = vunpack.c.h.b16 %v287
        %v380 = vpack.c.b16 %v378, %v376
        %v381 = vpack.c.b16 %v379, %v377
        %vm384 = vcmask 130048
        %v386 = vsel %vm384, %v358, 0
        %v389 = vsel %vm384, %v359, 0
        %v392 = vsel %vm384, %v360, 0
        %v395 = vsel %vm384, %v361, 0
        %v398 = vsel %vm384, %v362, 0
        %v401 = vsel %vm384, %v363, 0
        %v404 = vsel %vm384, %v364, 0
        %v407 = vsel %vm384, %v365, 0
        %v410 = vsel %vm384, %v366, 0
        %v413 = vsel %vm384, %v367, 0
        %v416 = vsel %vm384, %v368, 0
        %v419 = vsel %vm384, %v369, 0
        %v422 = vsel %vm384, %v370, 0
        %v425 = vsel %vm384, %v371, 0
        %v428 = vsel %vm384, %v372, 0
        %v431 = vsel %vm384, %v373, 0
        %433 = vmatpush.bf16.msra.mxu0 0
        %434 = vmatpush.bf16.msra.mxu0 0
        %435 = vmatpush.bf16.msra.mxu0 0
        %436 = vmatpush.bf16.msra.mxu0 0
        %437 = vmatpush.bf16.msra.mxu0 0
        %438 = vmatpush.bf16.msra.mxu0 0
        %439 = vmatpush.bf16.msra.mxu0 0
        %440 = vmatpush.bf16.msra.mxu0 %v380
        %441 = vmatmul.bf16.gmra.mxu0 %v386
        %v442 = vpop.f32.mrf.mxu0
        %v443 = vadd.f32 %v290, %v442
        %v444 = vpop.f32.mrf.mxu0
        %v445 = vadd.f32 %v290, %v444
        %446 = vmatmul.bf16.gmra.mxu0 %v389
        %v447 = vpop.f32.mrf.mxu0
        %v448 = vadd.f32 %v290, %v447
        %v449 = vpop.f32.mrf.mxu0
        %v450 = vadd.f32 %v290, %v449
        %451 = vmatmul.bf16.gmra.mxu0 %v392
        %v452 = vpop.f32.mrf.mxu0
        %v453 = vadd.f32 %v290, %v452
        %v454 = vpop.f32.mrf.mxu0
        %v455 = vadd.f32 %v290, %v454
        %456 = vmatmul.bf16.gmra.mxu0 %v395
        %v457 = vpop.f32.mrf.mxu0
        %v458 = vadd.f32 %v290, %v457
        %v459 = vpop.f32.mrf.mxu0
        %v460 = vadd.f32 %v290, %v459
        %461 = vmatmul.bf16.gmra.mxu0 %v398
        %v462 = vpop.f32.mrf.mxu0
        %v463 = vadd.f32 %v290, %v462
        %v464 = vpop.f32.mrf.mxu0
        %v465 = vadd.f32 %v290, %v464
        %466 = vmatmul.bf16.gmra.mxu0 %v401
        %v467 = vpop.f32.mrf.mxu0
        %v468 = vadd.f32 %v290, %v467
        %v469 = vpop.f32.mrf.mxu0
        %v470 = vadd.f32 %v290, %v469
        %471 = vmatmul.bf16.gmra.mxu0 %v404
        %v472 = vpop.f32.mrf.mxu0
        %v473 = vadd.f32 %v290, %v472
        %v474 = vpop.f32.mrf.mxu0
        %v475 = vadd.f32 %v290, %v474
        %476 = vmatmul.bf16.gmra.mxu0 %v407
        %v477 = vpop.f32.mrf.mxu0
        %v478 = vadd.f32 %v290, %v477
        %v479 = vpop.f32.mrf.mxu0
        %v480 = vadd.f32 %v290, %v479
        %481 = vmatmul.bf16.gmra.mxu0 %v410
        %v482 = vpop.f32.mrf.mxu0
        %v483 = vadd.f32 %v290, %v482
        %v484 = vpop.f32.mrf.mxu0
        %v485 = vadd.f32 %v290, %v484
        %486 = vmatmul.bf16.gmra.mxu0 %v413
        %v487 = vpop.f32.mrf.mxu0
        %v488 = vadd.f32 %v290, %v487
        %v489 = vpop.f32.mrf.mxu0
        %v490 = vadd.f32 %v290, %v489
        %491 = vmatmul.bf16.gmra.mxu0 %v416
        %v492 = vpop.f32.mrf.mxu0
        %v493 = vadd.f32 %v290, %v492
        %v494 = vpop.f32.mrf.mxu0
        %v495 = vadd.f32 %v290, %v494
        %496 = vmatmul.bf16.gmra.mxu0 %v419
        %v497 = vpop.f32.mrf.mxu0
        %v498 = vadd.f32 %v290, %v497
        %v499 = vpop.f32.mrf.mxu0
        %v500 = vadd.f32 %v290, %v499
        %501 = vmatmul.bf16.gmra.mxu0 %v422
        %v502 = vpop.f32.mrf.mxu0
        %v503 = vadd.f32 %v290, %v502
        %v504 = vpop.f32.mrf.mxu0
        %v505 = vadd.f32 %v290, %v504
        %506 = vmatmul.bf16.gmra.mxu0 %v425
        %v507 = vpop.f32.mrf.mxu0
        %v508 = vadd.f32 %v290, %v507
        %v509 = vpop.f32.mrf.mxu0
        %v510 = vadd.f32 %v290, %v509
        %511 = vmatmul.bf16.gmra.mxu0 %v428
        %v512 = vpop.f32.mrf.mxu0
        %v513 = vadd.f32 %v290, %v512
        %v514 = vpop.f32.mrf.mxu0
        %v515 = vadd.f32 %v290, %v514
        %516 = vmatmul.bf16.gmra.mxu0 %v431
        %v517 = vpop.f32.mrf.mxu0
        %v518 = vadd.f32 %v290, %v517
        %v519 = vpop.f32.mrf.mxu0
        %v520 = vadd.f32 %v290, %v519
        %521 = vdwg.mxu0
        %522 = vmatpush.bf16.msra.mxu0 0
        %523 = vmatpush.bf16.msra.mxu0 0
        %524 = vmatpush.bf16.msra.mxu0 0
        %525 = vmatpush.bf16.msra.mxu0 0
        %526 = vmatpush.bf16.msra.mxu0 0
        %527 = vmatpush.bf16.msra.mxu0 0
        %528 = vmatpush.bf16.msra.mxu0 0
        %529 = vmatpush.bf16.msra.mxu0 %v381
        %530 = vmatmul.bf16.gmra.mxu0 %v386
        %v531 = vpop.f32.mrf.mxu0
        %v532 = vadd.f32 %v291, %v531
        %v533 = vpop.f32.mrf.mxu0
        %v534 = vadd.f32 %v291, %v533
        %535 = vmatmul.bf16.gmra.mxu0 %v389
        %v536 = vpop.f32.mrf.mxu0
        %v537 = vadd.f32 %v291, %v536
        %v538 = vpop.f32.mrf.mxu0
        %v539 = vadd.f32 %v291, %v538
        %540 = vmatmul.bf16.gmra.mxu0 %v392
        %v541 = vpop.f32.mrf.mxu0
        %v542 = vadd.f32 %v291, %v541
        %v543 = vpop.f32.mrf.mxu0
        %v544 = vadd.f32 %v291, %v543
        %545 = vmatmul.bf16.gmra.mxu0 %v395
        %v546 = vpop.f32.mrf.mxu0
        %v547 = vadd.f32 %v291, %v546
        %v548 = vpop.f32.mrf.mxu0
        %v549 = vadd.f32 %v291, %v548
        %550 = vmatmul.bf16.gmra.mxu0 %v398
        %v551 = vpop.f32.mrf.mxu0
        %v552 = vadd.f32 %v291, %v551
        %v553 = vpop.f32.mrf.mxu0
        %v554 = vadd.f32 %v291, %v553
        %555 = vmatmul.bf16.gmra.mxu0 %v401
        %v556 = vpop.f32.mrf.mxu0
        %v557 = vadd.f32 %v291, %v556
        %v558 = vpop.f32.mrf.mxu0
        %v559 = vadd.f32 %v291, %v558
        %560 = vmatmul.bf16.gmra.mxu0 %v404
        %v561 = vpop.f32.mrf.mxu0
        %v562 = vadd.f32 %v291, %v561
        %v563 = vpop.f32.mrf.mxu0
        %v564 = vadd.f32 %v291, %v563
        %565 = vmatmul.bf16.gmra.mxu0 %v407
        %v566 = vpop.f32.mrf.mxu0
        %v567 = vadd.f32 %v291, %v566
        %v568 = vpop.f32.mrf.mxu0
        %v569 = vadd.f32 %v291, %v568
        %570 = vmatmul.bf16.gmra.mxu0 %v410
        %v571 = vpop.f32.mrf.mxu0
        %v572 = vadd.f32 %v291, %v571
        %v573 = vpop.f32.mrf.mxu0
        %v574 = vadd.f32 %v291, %v573
        %575 = vmatmul.bf16.gmra.mxu0 %v413
        %v576 = vpop.f32.mrf.mxu0
        %v577 = vadd.f32 %v291, %v576
        %v578 = vpop.f32.mrf.mxu0
        %v579 = vadd.f32 %v291, %v578
        %580 = vmatmul.bf16.gmra.mxu0 %v416
        %v581 = vpop.f32.mrf.mxu0
        %v582 = vadd.f32 %v291, %v581
        %v583 = vpop.f32.mrf.mxu0
        %v584 = vadd.f32 %v291, %v583
        %585 = vmatmul.bf16.gmra.mxu0 %v419
        %v586 = vpop.f32.mrf.mxu0
        %v587 = vadd.f32 %v291, %v586
        %v588 = vpop.f32.mrf.mxu0
        %v589 = vadd.f32 %v291, %v588
        %590 = vmatmul.bf16.gmra.mxu0 %v422
        %v591 = vpop.f32.mrf.mxu0
        %v592 = vadd.f32 %v291, %v591
        %v593 = vpop.f32.mrf.mxu0
        %v594 = vadd.f32 %v291, %v593
        %595 = vmatmul.bf16.gmra.mxu0 %v425
        %v596 = vpop.f32.mrf.mxu0
        %v597 = vadd.f32 %v291, %v596
        %v598 = vpop.f32.mrf.mxu0
        %v599 = vadd.f32 %v291, %v598
        %600 = vmatmul.bf16.gmra.mxu0 %v428
        %v601 = vpop.f32.mrf.mxu0
        %v602 = vadd.f32 %v291, %v601
        %v603 = vpop.f32.mrf.mxu0
        %v604 = vadd.f32 %v291, %v603
        %605 = vmatmul.bf16.gmra.mxu0 %v431
        %v606 = vpop.f32.mrf.mxu0
        %v607 = vadd.f32 %v291, %v606
        %v608 = vpop.f32.mrf.mxu0
        %v609 = vadd.f32 %v291, %v608
        %610 = vdwg.mxu0
        %v611 = vpack.c.bf16 %v443, %v443
        %v612 = vpack.c.bf16 %v445, %v445
        %v613 = vpack.c.bf16 %v448, %v448
        %v614 = vpack.c.bf16 %v450, %v450
        %v615 = vpack.c.bf16 %v453, %v453
        %v616 = vpack.c.bf16 %v455, %v455
        %v617 = vpack.c.bf16 %v458, %v458
        %v618 = vpack.c.bf16 %v460, %v460
        %v619 = vpack.c.bf16 %v463, %v463
        %v620 = vpack.c.bf16 %v465, %v465
        %v621 = vpack.c.bf16 %v468, %v468
        %v622 = vpack.c.bf16 %v470, %v470
        %v623 = vpack.c.bf16 %v473, %v473
        %v624 = vpack.c.bf16 %v475, %v475
        %v625 = vpack.c.bf16 %v478, %v478
        %v626 = vpack.c.bf16 %v480, %v480
        %v627 = vpack.c.bf16 %v483, %v483
        %v628 = vpack.c.bf16 %v485, %v485
        %v629 = vpack.c.bf16 %v488, %v488
        %v630 = vpack.c.bf16 %v490, %v490
        %v631 = vpack.c.bf16 %v493, %v493
        %v632 = vpack.c.bf16 %v495, %v495
        %v633 = vpack.c.bf16 %v498, %v498
        %v634 = vpack.c.bf16 %v500, %v500
        %v635 = vpack.c.bf16 %v503, %v503
        %v636 = vpack.c.bf16 %v505, %v505
        %v637 = vpack.c.bf16 %v508, %v508
        %v638 = vpack.c.bf16 %v510, %v510
        %v639 = vpack.c.bf16 %v513, %v513
        %v640 = vpack.c.bf16 %v515, %v515
        %v641 = vpack.c.bf16 %v518, %v518
        %v642 = vpack.c.bf16 %v520, %v520
        %v643 = vld [vmem:[%s3] sm:$0xf]
        %v644 = vld [vmem:[%s3 + $0x4] sm:$0xf]
        %v645 = vld [vmem:[%s3 + $0x8] sm:$0xf]
        %v646 = vld [vmem:[%s3 + $0xc] sm:$0xf]
        %v647 = vld [vmem:[%s3 + $0x10] sm:$0xf]
        %v648 = vld [vmem:[%s3 + $0x14] sm:$0xf]
        %v649 = vld [vmem:[%s3 + $0x18] sm:$0xf]
        %v650 = vld [vmem:[%s3 + $0x1c] sm:$0xf]
        %v651 = vunpack.c.l.bf16 %v643
        %v652 = vunpack.c.l.bf16 %v644
        %v653 = vunpack.c.l.bf16 %v645
        %v654 = vunpack.c.l.bf16 %v646
        %v655 = vunpack.c.l.bf16 %v647
        %v656 = vunpack.c.l.bf16 %v648
        %v657 = vunpack.c.l.bf16 %v649
        %v658 = vunpack.c.l.bf16 %v650
        %v667 = vunpack.c.l.b16 %v611
        %v668 = vunpack.c.l.b16 %v612
        %v669 = vunpack.c.l.b16 %v613
        %v670 = vunpack.c.l.b16 %v614
        %v671 = vunpack.c.l.b16 %v615
        %v672 = vunpack.c.l.b16 %v616
        %v673 = vunpack.c.l.b16 %v617
        %v674 = vunpack.c.l.b16 %v618
        %v675 = vpack.c.b16 %v668, %v667
        %v676 = vpack.c.b16 %v670, %v669
        %v677 = vpack.c.b16 %v672, %v671
        %v678 = vpack.c.b16 %v674, %v673
        %679 = vrot.lane.b32.xlu0 %v675, 64
        %v680 = vpop.permute.xlu0 %679
        %681 = vrot.lane.b32.xlu0 %v676, 64
        %v682 = vpop.permute.xlu0 %681
        %683 = vrot.lane.b32.xlu0 %v677, 64
        %v684 = vpop.permute.xlu0 %683
        %685 = vrot.lane.b32.xlu0 %v678, 64
        %v686 = vpop.permute.xlu0 %685
        %v688 = vsel %vm384, %v675, 0
        %v691 = vsel %vm384, %v676, 0
        %v694 = vsel %vm384, %v677, 0
        %v697 = vsel %vm384, %v678, 0
        %v700 = vsel %vm384, %v680, 0
        %v703 = vsel %vm384, %v682, 0
        %v706 = vsel %vm384, %v684, 0
        %v709 = vsel %vm384, %v686, 0
        %711 = vmatpush.bf16.xpose.msra.mxu0 0
        %712 = vmatpush.bf16.xpose.msra.mxu0 0
        %713 = vmatpush.bf16.xpose.msra.mxu0 0
        %714 = vmatpush.bf16.xpose.msra.mxu0 0
        %715 = vmatpush.bf16.xpose.msra.mxu0 %v709
        %716 = vmatpush.bf16.xpose.msra.mxu0 %v706
        %717 = vmatpush.bf16.xpose.msra.mxu0 %v703
        %718 = vmatpush.bf16.xpose.msra.mxu0 %v700
        %719 = vmatmul.bf16.gmra.mxu0 %v688
        %v720 = vpop.f32.mrf.mxu0
        %v721 = vadd.f32 %v651, %v720
        %v722 = vpop.f32.mrf.mxu0
        %v723 = vadd.f32 %v652, %v722
        %724 = vmatmul.bf16.gmra.mxu0 %v691
        %v725 = vpop.f32.mrf.mxu0
        %v726 = vadd.f32 %v653, %v725
        %v727 = vpop.f32.mrf.mxu0
        %v728 = vadd.f32 %v654, %v727
        %729 = vmatmul.bf16.gmra.mxu0 %v694
        %v730 = vpop.f32.mrf.mxu0
        %v731 = vadd.f32 %v655, %v730
        %v732 = vpop.f32.mrf.mxu0
        %v733 = vadd.f32 %v656, %v732
        %734 = vmatmul.bf16.gmra.mxu0 %v697
        %v735 = vpop.f32.mrf.mxu0
        %v736 = vadd.f32 %v657, %v735
        %v737 = vpop.f32.mrf.mxu0
        %v738 = vadd.f32 %v658, %v737
        %739 = vdwg.mxu0
        %v748 = vunpack.c.l.b16 %v619
        %v749 = vunpack.c.l.b16 %v620
        %v750 = vunpack.c.l.b16 %v621
        %v751 = vunpack.c.l.b16 %v622
        %v752 = vunpack.c.l.b16 %v623
        %v753 = vunpack.c.l.b16 %v624
        %v754 = vunpack.c.l.b16 %v625
        %v755 = vunpack.c.l.b16 %v626
        %v756 = vpack.c.b16 %v749, %v748
        %v757 = vpack.c.b16 %v751, %v750
        %v758 = vpack.c.b16 %v753, %v752
        %v759 = vpack.c.b16 %v755, %v754
        %760 = vrot.lane.b32.xlu0 %v756, 64
        %v761 = vpop.permute.xlu0 %760
        %762 = vrot.lane.b32.xlu0 %v757, 64
        %v763 = vpop.permute.xlu0 %762
        %764 = vrot.lane.b32.xlu0 %v758, 64
        %v765 = vpop.permute.xlu0 %764
        %766 = vrot.lane.b32.xlu0 %v759, 64
        %v767 = vpop.permute.xlu0 %766
        %v769 = vsel %vm384, %v756, 0
        %v772 = vsel %vm384, %v757, 0
        %v775 = vsel %vm384, %v758, 0
        %v778 = vsel %vm384, %v759, 0
        %v781 = vsel %vm384, %v761, 0
        %v784 = vsel %vm384, %v763, 0
        %v787 = vsel %vm384, %v765, 0
        %v790 = vsel %vm384, %v767, 0
        %792 = vmatpush.bf16.xpose.msra.mxu0 0
        %793 = vmatpush.bf16.xpose.msra.mxu0 0
        %794 = vmatpush.bf16.xpose.msra.mxu0 0
        %795 = vmatpush.bf16.xpose.msra.mxu0 0
        %796 = vmatpush.bf16.xpose.msra.mxu0 %v790
        %797 = vmatpush.bf16.xpose.msra.mxu0 %v787
        %798 = vmatpush.bf16.xpose.msra.mxu0 %v784
        %799 = vmatpush.bf16.xpose.msra.mxu0 %v781
        %800 = vmatmul.bf16.gmra.mxu0 %v769
        %v801 = vpop.f32.mrf.mxu0
        %v802 = vadd.f32 %v651, %v801
        %v803 = vpop.f32.mrf.mxu0
        %v804 = vadd.f32 %v652, %v803
        %805 = vmatmul.bf16.gmra.mxu0 %v772
        %v806 = vpop.f32.mrf.mxu0
        %v807 = vadd.f32 %v653, %v806
        %v808 = vpop.f32.mrf.mxu0
        %v809 = vadd.f32 %v654, %v808
        %810 = vmatmul.bf16.gmra.mxu0 %v775
        %v811 = vpop.f32.mrf.mxu0
        %v812 = vadd.f32 %v655, %v811
        %v813 = vpop.f32.mrf.mxu0
        %v814 = vadd.f32 %v656, %v813
        %815 = vmatmul.bf16.gmra.mxu0 %v778
        %v816 = vpop.f32.mrf.mxu0
        %v817 = vadd.f32 %v657, %v816
        %v818 = vpop.f32.mrf.mxu0
        %v819 = vadd.f32 %v658, %v818
        %820 = vdwg.mxu0
        %v829 = vunpack.c.l.b16 %v627
        %v830 = vunpack.c.l.b16 %v628
        %v831 = vunpack.c.l.b16 %v629
        %v832 = vunpack.c.l.b16 %v630
        %v833 = vunpack.c.l.b16 %v631
        %v834 = vunpack.c.l.b16 %v632
        %v835 = vunpack.c.l.b16 %v633
        %v836 = vunpack.c.l.b16 %v634
        %v837 = vpack.c.b16 %v830, %v829
        %v838 = vpack.c.b16 %v832, %v831
        %v839 = vpack.c.b16 %v834, %v833
        %v840 = vpack.c.b16 %v836, %v835
        %841 = vrot.lane.b32.xlu0 %v837, 64
        %v842 = vpop.permute.xlu0 %841
        %843 = vrot.lane.b32.xlu0 %v838, 64
        %v844 = vpop.permute.xlu0 %843
        %845 = vrot.lane.b32.xlu0 %v839, 64
        %v846 = vpop.permute.xlu0 %845
        %847 = vrot.lane.b32.xlu0 %v840, 64
        %v848 = vpop.permute.xlu0 %847
        %v850 = vsel %vm384, %v837, 0
        %v853 = vsel %vm384, %v838, 0
        %v856 = vsel %vm384, %v839, 0
        %v859 = vsel %vm384, %v840, 0
        %v862 = vsel %vm384, %v842, 0
        %v865 = vsel %vm384, %v844, 0
        %v868 = vsel %vm384, %v846, 0
        %v871 = vsel %vm384, %v848, 0
        %873 = vmatpush.bf16.xpose.msra.mxu0 0
        %874 = vmatpush.bf16.xpose.msra.mxu0 0
        %875 = vmatpush.bf16.xpose.msra.mxu0 0
        %876 = vmatpush.bf16.xpose.msra.mxu0 0
        %877 = vmatpush.bf16.xpose.msra.mxu0 %v871
        %878 = vmatpush.bf16.xpose.msra.mxu0 %v868
        %879 = vmatpush.bf16.xpose.msra.mxu0 %v865
        %880 = vmatpush.bf16.xpose.msra.mxu0 %v862
        %881 = vmatmul.bf16.gmra.mxu0 %v850
        %v882 = vpop.f32.mrf.mxu0
        %v883 = vadd.f32 %v651, %v882
        %v884 = vpop.f32.mrf.mxu0
        %v885 = vadd.f32 %v652, %v884
        %886 = vmatmul.bf16.gmra.mxu0 %v853
        %v887 = vpop.f32.mrf.mxu0
        %v888 = vadd.f32 %v653, %v887
        %v889 = vpop.f32.mrf.mxu0
        %v890 = vadd.f32 %v654, %v889
        %891 = vmatmul.bf16.gmra.mxu0 %v856
        %v892 = vpop.f32.mrf.mxu0
        %v893 = vadd.f32 %v655, %v892
        %v894 = vpop.f32.mrf.mxu0
        %v895 = vadd.f32 %v656, %v894
        %896 = vmatmul.bf16.gmra.mxu0 %v859
        %v897 = vpop.f32.mrf.mxu0
        %v898 = vadd.f32 %v657, %v897
        %v899 = vpop.f32.mrf.mxu0
        %v900 = vadd.f32 %v658, %v899
        %901 = vdwg.mxu0
        %v910 = vunpack.c.l.b16 %v635
        %v911 = vunpack.c.l.b16 %v636
        %v912 = vunpack.c.l.b16 %v637
        %v913 = vunpack.c.l.b16 %v638
        %v914 = vunpack.c.l.b16 %v639
        %v915 = vunpack.c.l.b16 %v640
        %v916 = vunpack.c.l.b16 %v641
        %v917 = vunpack.c.l.b16 %v642
        %v918 = vpack.c.b16 %v911, %v910
        %v919 = vpack.c.b16 %v913, %v912
        %v920 = vpack.c.b16 %v915, %v914
        %v921 = vpack.c.b16 %v917, %v916
        %922 = vrot.lane.b32.xlu0 %v918, 64
        %v923 = vpop.permute.xlu0 %922
        %924 = vrot.lane.b32.xlu0 %v919, 64
        %v925 = vpop.permute.xlu0 %924
        %926 = vrot.lane.b32.xlu0 %v920, 64
        %v927 = vpop.permute.xlu0 %926
        %928 = vrot.lane.b32.xlu0 %v921, 64
        %v929 = vpop.permute.xlu0 %928
        %v931 = vsel %vm384, %v918, 0
        %v934 = vsel %vm384, %v919, 0
        %v937 = vsel %vm384, %v920, 0
        %v940 = vsel %vm384, %v921, 0
        %v943 = vsel %vm384, %v923, 0
        %v946 = vsel %vm384, %v925, 0
        %v949 = vsel %vm384, %v927, 0
        %v952 = vsel %vm384, %v929, 0
        %954 = vmatpush.bf16.xpose.msra.mxu0 0
        %955 = vmatpush.bf16.xpose.msra.mxu0 0
        %956 = vmatpush.bf16.xpose.msra.mxu0 0
        %957 = vmatpush.bf16.xpose.msra.mxu0 0
        %958 = vmatpush.bf16.xpose.msra.mxu0 %v952
        %959 = vmatpush.bf16.xpose.msra.mxu0 %v949
        %960 = vmatpush.bf16.xpose.msra.mxu0 %v946
        %961 = vmatpush.bf16.xpose.msra.mxu0 %v943
        %962 = vmatmul.bf16.gmra.mxu0 %v931
        %v963 = vpop.f32.mrf.mxu0
        %v964 = vadd.f32 %v651, %v963
        %v965 = vpop.f32.mrf.mxu0
        %v966 = vadd.f32 %v652, %v965
        %967 = vmatmul.bf16.gmra.mxu0 %v934
        %v968 = vpop.f32.mrf.mxu0
        %v969 = vadd.f32 %v653, %v968
        %v970 = vpop.f32.mrf.mxu0
        %v971 = vadd.f32 %v654, %v970
        %972 = vmatmul.bf16.gmra.mxu0 %v937
        %v973 = vpop.f32.mrf.mxu0
        %v974 = vadd.f32 %v655, %v973
        %v975 = vpop.f32.mrf.mxu0
        %v976 = vadd.f32 %v656, %v975
        %977 = vmatmul.bf16.gmra.mxu0 %v940
        %v978 = vpop.f32.mrf.mxu0
        %v979 = vadd.f32 %v657, %v978
        %v980 = vpop.f32.mrf.mxu0
        %v981 = vadd.f32 %v658, %v980
        %982 = vdwg.mxu0
        %vm983 = vcmask 523264
        %v984 = vsel %vm983, %v721, -inf
        %985 = vmax.xlane.f32.xlu0 %v984
        %v986 = vpop.xlane.xlu0 %985
        %v987 = vsel %vm983, %v723, -inf
        %988 = vmax.xlane.f32.xlu0 %v987
        %v989 = vpop.xlane.xlu0 %988
        %v990 = vsel %vm983, %v726, -inf
        %991 = vmax.xlane.f32.xlu0 %v990
        %v992 = vpop.xlane.xlu0 %991
        %v993 = vsel %vm983, %v728, -inf
        %994 = vmax.xlane.f32.xlu0 %v993
        %v995 = vpop.xlane.xlu0 %994
        %v996 = vsel %vm983, %v731, -inf
        %997 = vmax.xlane.f32.xlu0 %v996
        %v998 = vpop.xlane.xlu0 %997
        %v999 = vsel %vm983, %v733, -inf
        %1000 = vmax.xlane.f32.xlu0 %v999
        %v1001 = vpop.xlane.xlu0 %1000
        %v1002 = vsel %vm983, %v736, -inf
        %1003 = vmax.xlane.f32.xlu0 %v1002
        %v1004 = vpop.xlane.xlu0 %1003
        %v1005 = vsel %vm983, %v738, -inf
        %1006 = vmax.xlane.f32.xlu0 %v1005
        %v1007 = vpop.xlane.xlu0 %1006
        %v1008 = vsel %vm983, %v802, -inf
        %1009 = vmax.xlane.f32.xlu0 %v1008
        %v1010 = vpop.xlane.xlu0 %1009
        %v1011 = vsel %vm983, %v804, -inf
        %1012 = vmax.xlane.f32.xlu0 %v1011
        %v1013 = vpop.xlane.xlu0 %1012
        %v1014 = vsel %vm983, %v807, -inf
        %1015 = vmax.xlane.f32.xlu0 %v1014
        %v1016 = vpop.xlane.xlu0 %1015
        %v1017 = vsel %vm983, %v809, -inf
        %1018 = vmax.xlane.f32.xlu0 %v1017
        %v1019 = vpop.xlane.xlu0 %1018
        %v1020 = vsel %vm983, %v812, -inf
        %1021 = vmax.xlane.f32.xlu0 %v1020
        %v1022 = vpop.xlane.xlu0 %1021
        %v1023 = vsel %vm983, %v814, -inf
        %1024 = vmax.xlane.f32.xlu0 %v1023
        %v1025 = vpop.xlane.xlu0 %1024
        %v1026 = vsel %vm983, %v817, -inf
        %1027 = vmax.xlane.f32.xlu0 %v1026
        %v1028 = vpop.xlane.xlu0 %1027
        %v1029 = vsel %vm983, %v819, -inf
        %1030 = vmax.xlane.f32.xlu0 %v1029
        %v1031 = vpop.xlane.xlu0 %1030
        %v1032 = vsel %vm983, %v883, -inf
        %1033 = vmax.xlane.f32.xlu0 %v1032
        %v1034 = vpop.xlane.xlu0 %1033
        %v1035 = vsel %vm983, %v885, -inf
        %1036 = vmax.xlane.f32.xlu0 %v1035
        %v1037 = vpop.xlane.xlu0 %1036
        %v1038 = vsel %vm983, %v888, -inf
        %1039 = vmax.xlane.f32.xlu0 %v1038
        %v1040 = vpop.xlane.xlu0 %1039
        %v1041 = vsel %vm983, %v890, -inf
        %1042 = vmax.xlane.f32.xlu0 %v1041
        %v1043 = vpop.xlane.xlu0 %1042
        %v1044 = vsel %vm983, %v893, -inf
        %1045 = vmax.xlane.f32.xlu0 %v1044
        %v1046 = vpop.xlane.xlu0 %1045
        %v1047 = vsel %vm983, %v895, -inf
        %1048 = vmax.xlane.f32.xlu0 %v1047
        %v1049 = vpop.xlane.xlu0 %1048
        %v1050 = vsel %vm983, %v898, -inf
        %1051 = vmax.xlane.f32.xlu0 %v1050
        %v1052 = vpop.xlane.xlu0 %1051
        %v1053 = vsel %vm983, %v900, -inf
        %1054 = vmax.xlane.f32.xlu0 %v1053
        %v1055 = vpop.xlane.xlu0 %1054
        %v1056 = vsel %vm983, %v964, -inf
        %1057 = vmax.xlane.f32.xlu0 %v1056
        %v1058 = vpop.xlane.xlu0 %1057
        %v1059 = vsel %vm983, %v966, -inf
        %1060 = vmax.xlane.f32.xlu0 %v1059
        %v1061 = vpop.xlane.xlu0 %1060
        %v1062 = vsel %vm983, %v969, -inf
        %1063 = vmax.xlane.f32.xlu0 %v1062
        %v1064 = vpop.xlane.xlu0 %1063
        %v1065 = vsel %vm983, %v971, -inf
        %1066 = vmax.xlane.f32.xlu0 %v1065
        %v1067 = vpop.xlane.xlu0 %1066
        %v1068 = vsel %vm983, %v974, -inf
        %1069 = vmax.xlane.f32.xlu0 %v1068
        %v1070 = vpop.xlane.xlu0 %1069
        %v1071 = vsel %vm983, %v976, -inf
        %1072 = vmax.xlane.f32.xlu0 %v1071
        %v1073 = vpop.xlane.xlu0 %1072
        %v1074 = vsel %vm983, %v979, -inf
        %1075 = vmax.xlane.f32.xlu0 %v1074
        %v1076 = vpop.xlane.xlu0 %1075
        %v1077 = vsel %vm983, %v981, -inf
        %1078 = vmax.xlane.f32.xlu0 %v1077
        %v1079 = vpop.xlane.xlu0 %1078
        %v1080 = vsub.f32 %v721, %v986
        %v1081 = vsub.f32 %v723, %v989
        %v1082 = vsub.f32 %v726, %v992
        %v1083 = vsub.f32 %v728, %v995
        %v1084 = vsub.f32 %v731, %v998
        %v1085 = vsub.f32 %v733, %v1001
        %v1086 = vsub.f32 %v736, %v1004
        %v1087 = vsub.f32 %v738, %v1007
        %v1088 = vsub.f32 %v802, %v1010
        %v1089 = vsub.f32 %v804, %v1013
        %v1090 = vsub.f32 %v807, %v1016
        %v1091 = vsub.f32 %v809, %v1019
        %v1092 = vsub.f32 %v812, %v1022
        %v1093 = vsub.f32 %v814, %v1025
        %v1094 = vsub.f32 %v817, %v1028
        %v1095 = vsub.f32 %v819, %v1031
        %v1096 = vsub.f32 %v883, %v1034
        %v1097 = vsub.f32 %v885, %v1037
        %v1098 = vsub.f32 %v888, %v1040
        %v1099 = vsub.f32 %v890, %v1043
        %v1100 = vsub.f32 %v893, %v1046
        %v1101 = vsub.f32 %v895, %v1049
        %v1102 = vsub.f32 %v898, %v1052
        %v1103 = vsub.f32 %v900, %v1055
        %v1104 = vsub.f32 %v964, %v1058
        %v1105 = vsub.f32 %v966, %v1061
        %v1106 = vsub.f32 %v969, %v1064
        %v1107 = vsub.f32 %v971, %v1067
        %v1108 = vsub.f32 %v974, %v1070
        %v1109 = vsub.f32 %v976, %v1073
        %v1110 = vsub.f32 %v979, %v1076
        %v1111 = vsub.f32 %v981, %v1079
        %v1112 = vmul.f32 %v1080, 1.442695
        %v1113 = vpow.pop %v1112
        %v1114 = vmul.f32 %v1081, 1.442695
        %v1115 = vpow.pop %v1114
        %v1116 = vmul.f32 %v1082, 1.442695
        %v1117 = vpow.pop %v1116
        %v1118 = vmul.f32 %v1083, 1.442695
        %v1119 = vpow.pop %v1118
        %v1120 = vmul.f32 %v1084, 1.442695
        %v1121 = vpow.pop %v1120
        %v1122 = vmul.f32 %v1085, 1.442695
        %v1123 = vpow.pop %v1122
        %v1124 = vmul.f32 %v1086, 1.442695
        %v1125 = vpow.pop %v1124
        %v1126 = vmul.f32 %v1087, 1.442695
        %v1127 = vpow.pop %v1126
        %v1128 = vmul.f32 %v1088, 1.442695
        %v1129 = vpow.pop %v1128
        %v1130 = vmul.f32 %v1089, 1.442695
        %v1131 = vpow.pop %v1130
        %v1132 = vmul.f32 %v1090, 1.442695
        %v1133 = vpow.pop %v1132
        %v1134 = vmul.f32 %v1091, 1.442695
        %v1135 = vpow.pop %v1134
        %v1136 = vmul.f32 %v1092, 1.442695
        %v1137 = vpow.pop %v1136
        %v1138 = vmul.f32 %v1093, 1.442695
        %v1139 = vpow.pop %v1138
        %v1140 = vmul.f32 %v1094, 1.442695
        %v1141 = vpow.pop %v1140
        %v1142 = vmul.f32 %v1095, 1.442695
        %v1143 = vpow.pop %v1142
        %v1144 = vmul.f32 %v1096, 1.442695
        %v1145 = vpow.pop %v1144
        %v1146 = vmul.f32 %v1097, 1.442695
        %v1147 = vpow.pop %v1146
        %v1148 = vmul.f32 %v1098, 1.442695
        %v1149 = vpow.pop %v1148
        %v1150 = vmul.f32 %v1099, 1.442695
        %v1151 = vpow.pop %v1150
        %v1152 = vmul.f32 %v1100, 1.442695
        %v1153 = vpow.pop %v1152
        %v1154 = vmul.f32 %v1101, 1.442695
        %v1155 = vpow.pop %v1154
        %v1156 = vmul.f32 %v1102, 1.442695
        %v1157 = vpow.pop %v1156
        %v1158 = vmul.f32 %v1103, 1.442695
        %v1159 = vpow.pop %v1158
        %v1160 = vmul.f32 %v1104, 1.442695
        %v1161 = vpow.pop %v1160
        %v1162 = vmul.f32 %v1105, 1.442695
        %v1163 = vpow.pop %v1162
        %v1164 = vmul.f32 %v1106, 1.442695
        %v1165 = vpow.pop %v1164
        %v1166 = vmul.f32 %v1107, 1.442695
        %v1167 = vpow.pop %v1166
        %v1168 = vmul.f32 %v1108, 1.442695
        %v1169 = vpow.pop %v1168
        %v1170 = vmul.f32 %v1109, 1.442695
        %v1171 = vpow.pop %v1170
        %v1172 = vmul.f32 %v1110, 1.442695
        %v1173 = vpow.pop %v1172
        %v1174 = vmul.f32 %v1111, 1.442695
        %v1175 = vpow.pop %v1174
        %v1176 = vsel %vm983, %v1113, 0.0
        %1177 = vadd.xlane.f32.xlu0 %v1176
        %v1178 = vpop.xlane.xlu0 %1177
        %v1179 = vsel %vm983, %v1115, 0.0
        %1180 = vadd.xlane.f32.xlu0 %v1179
        %v1181 = vpop.xlane.xlu0 %1180
        %v1182 = vsel %vm983, %v1117, 0.0
        %1183 = vadd.xlane.f32.xlu0 %v1182
        %v1184 = vpop.xlane.xlu0 %1183
        %v1185 = vsel %vm983, %v1119, 0.0
        %1186 = vadd.xlane.f32.xlu0 %v1185
        %v1187 = vpop.xlane.xlu0 %1186
        %v1188 = vsel %vm983, %v1121, 0.0
        %1189 = vadd.xlane.f32.xlu0 %v1188
        %v1190 = vpop.xlane.xlu0 %1189
        %v1191 = vsel %vm983, %v1123, 0.0
        %1192 = vadd.xlane.f32.xlu0 %v1191
        %v1193 = vpop.xlane.xlu0 %1192
        %v1194 = vsel %vm983, %v1125, 0.0
        %1195 = vadd.xlane.f32.xlu0 %v1194
        %v1196 = vpop.xlane.xlu0 %1195
        %v1197 = vsel %vm983, %v1127, 0.0
        %1198 = vadd.xlane.f32.xlu0 %v1197
        %v1199 = vpop.xlane.xlu0 %1198
        %v1200 = vsel %vm983, %v1129, 0.0
        %1201 = vadd.xlane.f32.xlu0 %v1200
        %v1202 = vpop.xlane.xlu0 %1201
        %v1203 = vsel %vm983, %v1131, 0.0
        %1204 = vadd.xlane.f32.xlu0 %v1203
        %v1205 = vpop.xlane.xlu0 %1204
        %v1206 = vsel %vm983, %v1133, 0.0
        %1207 = vadd.xlane.f32.xlu0 %v1206
        %v1208 = vpop.xlane.xlu0 %1207
        %v1209 = vsel %vm983, %v1135, 0.0
        %1210 = vadd.xlane.f32.xlu0 %v1209
        %v1211 = vpop.xlane.xlu0 %1210
        %v1212 = vsel %vm983, %v1137, 0.0
        %1213 = vadd.xlane.f32.xlu0 %v1212
        %v1214 = vpop.xlane.xlu0 %1213
        %v1215 = vsel %vm983, %v1139, 0.0
        %1216 = vadd.xlane.f32.xlu0 %v1215
        %v1217 = vpop.xlane.xlu0 %1216
        %v1218 = vsel %vm983, %v1141, 0.0
        %1219 = vadd.xlane.f32.xlu0 %v1218
        %v1220 = vpop.xlane.xlu0 %1219
        %v1221 = vsel %vm983, %v1143, 0.0
        %1222 = vadd.xlane.f32.xlu0 %v1221
        %v1223 = vpop.xlane.xlu0 %1222
        %v1224 = vsel %vm983, %v1145, 0.0
        %1225 = vadd.xlane.f32.xlu0 %v1224
        %v1226 = vpop.xlane.xlu0 %1225
        %v1227 = vsel %vm983, %v1147, 0.0
        %1228 = vadd.xlane.f32.xlu0 %v1227
        %v1229 = vpop.xlane.xlu0 %1228
        %v1230 = vsel %vm983, %v1149, 0.0
        %1231 = vadd.xlane.f32.xlu0 %v1230
        %v1232 = vpop.xlane.xlu0 %1231
        %v1233 = vsel %vm983, %v1151, 0.0
        %1234 = vadd.xlane.f32.xlu0 %v1233
        %v1235 = vpop.xlane.xlu0 %1234
        %v1236 = vsel %vm983, %v1153, 0.0
        %1237 = vadd.xlane.f32.xlu0 %v1236
        %v1238 = vpop.xlane.xlu0 %1237
        %v1239 = vsel %vm983, %v1155, 0.0
        %1240 = vadd.xlane.f32.xlu0 %v1239
        %v1241 = vpop.xlane.xlu0 %1240
        %v1242 = vsel %vm983, %v1157, 0.0
        %1243 = vadd.xlane.f32.xlu0 %v1242
        %v1244 = vpop.xlane.xlu0 %1243
        %v1245 = vsel %vm983, %v1159, 0.0
        %1246 = vadd.xlane.f32.xlu0 %v1245
        %v1247 = vpop.xlane.xlu0 %1246
        %v1248 = vsel %vm983, %v1161, 0.0
        %1249 = vadd.xlane.f32.xlu0 %v1248
        %v1250 = vpop.xlane.xlu0 %1249
        %v1251 = vsel %vm983, %v1163, 0.0
        %1252 = vadd.xlane.f32.xlu0 %v1251
        %v1253 = vpop.xlane.xlu0 %1252
        %v1254 = vsel %vm983, %v1165, 0.0
        %1255 = vadd.xlane.f32.xlu0 %v1254
        %v1256 = vpop.xlane.xlu0 %1255
        %v1257 = vsel %vm983, %v1167, 0.0
        %1258 = vadd.xlane.f32.xlu0 %v1257
        %v1259 = vpop.xlane.xlu0 %1258
        %v1260 = vsel %vm983, %v1169, 0.0
        %1261 = vadd.xlane.f32.xlu0 %v1260
        %v1262 = vpop.xlane.xlu0 %1261
        %v1263 = vsel %vm983, %v1171, 0.0
        %1264 = vadd.xlane.f32.xlu0 %v1263
        %v1265 = vpop.xlane.xlu0 %1264
        %v1266 = vsel %vm983, %v1173, 0.0
        %1267 = vadd.xlane.f32.xlu0 %v1266
        %v1268 = vpop.xlane.xlu0 %1267
        %v1269 = vsel %vm983, %v1175, 0.0
        %1270 = vadd.xlane.f32.xlu0 %v1269
        %v1271 = vpop.xlane.xlu0 %1270
        %v1272 = vrcp.pop %v1178
        %v1273 = vrcp.pop %v1181
        %v1274 = vrcp.pop %v1184
        %v1275 = vrcp.pop %v1187
        %v1276 = vrcp.pop %v1190
        %v1277 = vrcp.pop %v1193
        %v1278 = vrcp.pop %v1196
        %v1279 = vrcp.pop %v1199
        %v1280 = vrcp.pop %v1202
        %v1281 = vrcp.pop %v1205
        %v1282 = vrcp.pop %v1208
        %v1283 = vrcp.pop %v1211
        %v1284 = vrcp.pop %v1214
        %v1285 = vrcp.pop %v1217
        %v1286 = vrcp.pop %v1220
        %v1287 = vrcp.pop %v1223
        %v1288 = vrcp.pop %v1226
        %v1289 = vrcp.pop %v1229
        %v1290 = vrcp.pop %v1232
        %v1291 = vrcp.pop %v1235
        %v1292 = vrcp.pop %v1238
        %v1293 = vrcp.pop %v1241
        %v1294 = vrcp.pop %v1244
        %v1295 = vrcp.pop %v1247
        %v1296 = vrcp.pop %v1250
        %v1297 = vrcp.pop %v1253
        %v1298 = vrcp.pop %v1256
        %v1299 = vrcp.pop %v1259
        %v1300 = vrcp.pop %v1262
        %v1301 = vrcp.pop %v1265
        %v1302 = vrcp.pop %v1268
        %v1303 = vrcp.pop %v1271
        %v1304 = vmul.f32 %v1113, %v1272
        %v1305 = vmul.f32 %v1115, %v1273
        %v1306 = vmul.f32 %v1117, %v1274
        %v1307 = vmul.f32 %v1119, %v1275
        %v1308 = vmul.f32 %v1121, %v1276
        %v1309 = vmul.f32 %v1123, %v1277
        %v1310 = vmul.f32 %v1125, %v1278
        %v1311 = vmul.f32 %v1127, %v1279
        %v1312 = vmul.f32 %v1129, %v1280
        %v1313 = vmul.f32 %v1131, %v1281
        %v1314 = vmul.f32 %v1133, %v1282
        %v1315 = vmul.f32 %v1135, %v1283
        %v1316 = vmul.f32 %v1137, %v1284
        %v1317 = vmul.f32 %v1139, %v1285
        %v1318 = vmul.f32 %v1141, %v1286
        %v1319 = vmul.f32 %v1143, %v1287
        %v1320 = vmul.f32 %v1145, %v1288
        %v1321 = vmul.f32 %v1147, %v1289
        %v1322 = vmul.f32 %v1149, %v1290
        %v1323 = vmul.f32 %v1151, %v1291
        %v1324 = vmul.f32 %v1153, %v1292
        %v1325 = vmul.f32 %v1155, %v1293
        %v1326 = vmul.f32 %v1157, %v1294
        %v1327 = vmul.f32 %v1159, %v1295
        %v1328 = vmul.f32 %v1161, %v1296
        %v1329 = vmul.f32 %v1163, %v1297
        %v1330 = vmul.f32 %v1165, %v1298
        %v1331 = vmul.f32 %v1167, %v1299
        %v1332 = vmul.f32 %v1169, %v1300
        %v1333 = vmul.f32 %v1171, %v1301
        %v1334 = vmul.f32 %v1173, %v1302
        %v1335 = vmul.f32 %v1175, %v1303
        %v1336 = vpack.c.bf16 %v1304, %v1304
        %v1337 = vpack.c.bf16 %v1305, %v1305
        %v1338 = vpack.c.bf16 %v1306, %v1306
        %v1339 = vpack.c.bf16 %v1307, %v1307
        %v1340 = vpack.c.bf16 %v1308, %v1308
        %v1341 = vpack.c.bf16 %v1309, %v1309
        %v1342 = vpack.c.bf16 %v1310, %v1310
        %v1343 = vpack.c.bf16 %v1311, %v1311
        %v1344 = vpack.c.bf16 %v1312, %v1312
        %v1345 = vpack.c.bf16 %v1313, %v1313
        %v1346 = vpack.c.bf16 %v1314, %v1314
        %v1347 = vpack.c.bf16 %v1315, %v1315
        %v1348 = vpack.c.bf16 %v1316, %v1316
        %v1349 = vpack.c.bf16 %v1317, %v1317
        %v1350 = vpack.c.bf16 %v1318, %v1318
        %v1351 = vpack.c.bf16 %v1319, %v1319
        %v1352 = vpack.c.bf16 %v1320, %v1320
        %v1353 = vpack.c.bf16 %v1321, %v1321
        %v1354 = vpack.c.bf16 %v1322, %v1322
        %v1355 = vpack.c.bf16 %v1323, %v1323
        %v1356 = vpack.c.bf16 %v1324, %v1324
        %v1357 = vpack.c.bf16 %v1325, %v1325
        %v1358 = vpack.c.bf16 %v1326, %v1326
        %v1359 = vpack.c.bf16 %v1327, %v1327
        %v1360 = vpack.c.bf16 %v1328, %v1328
        %v1361 = vpack.c.bf16 %v1329, %v1329
        %v1362 = vpack.c.bf16 %v1330, %v1330
        %v1363 = vpack.c.bf16 %v1331, %v1331
        %v1364 = vpack.c.bf16 %v1332, %v1332
        %v1365 = vpack.c.bf16 %v1333, %v1333
        %v1366 = vpack.c.bf16 %v1334, %v1334
        %v1367 = vpack.c.bf16 %v1335, %v1335
        %v1368 = vpack.c.bf16 %v532, %v532
        %v1369 = vpack.c.bf16 %v534, %v534
        %v1370 = vpack.c.bf16 %v537, %v537
        %v1371 = vpack.c.bf16 %v539, %v539
        %v1372 = vpack.c.bf16 %v542, %v542
        %v1373 = vpack.c.bf16 %v544, %v544
        %v1374 = vpack.c.bf16 %v547, %v547
        %v1375 = vpack.c.bf16 %v549, %v549
        %v1376 = vpack.c.bf16 %v552, %v552
        %v1377 = vpack.c.bf16 %v554, %v554
        %v1378 = vpack.c.bf16 %v557, %v557
        %v1379 = vpack.c.bf16 %v559, %v559
        %v1380 = vpack.c.bf16 %v562, %v562
        %v1381 = vpack.c.bf16 %v564, %v564
        %v1382 = vpack.c.bf16 %v567, %v567
        %v1383 = vpack.c.bf16 %v569, %v569
        %v1384 = vpack.c.bf16 %v572, %v572
        %v1385 = vpack.c.bf16 %v574, %v574
        %v1386 = vpack.c.bf16 %v577, %v577
        %v1387 = vpack.c.bf16 %v579, %v579
        %v1388 = vpack.c.bf16 %v582, %v582
        %v1389 = vpack.c.bf16 %v584, %v584
        %v1390 = vpack.c.bf16 %v587, %v587
        %v1391 = vpack.c.bf16 %v589, %v589
        %v1392 = vpack.c.bf16 %v592, %v592
        %v1393 = vpack.c.bf16 %v594, %v594
        %v1394 = vpack.c.bf16 %v597, %v597
        %v1395 = vpack.c.bf16 %v599, %v599
        %v1396 = vpack.c.bf16 %v602, %v602
        %v1397 = vpack.c.bf16 %v604, %v604
        %v1398 = vpack.c.bf16 %v607, %v607
        %v1399 = vpack.c.bf16 %v609, %v609
        %v1408 = vunpack.c.l.b16 %v1336
        %v1409 = vunpack.c.l.b16 %v1337
        %v1410 = vunpack.c.l.b16 %v1338
        %v1411 = vunpack.c.l.b16 %v1339
        %v1412 = vunpack.c.l.b16 %v1340
        %v1413 = vunpack.c.l.b16 %v1341
        %v1414 = vunpack.c.l.b16 %v1342
        %v1415 = vunpack.c.l.b16 %v1343
        %v1416 = vpack.c.b16 %v1409, %v1408
        %v1417 = vpack.c.b16 %v1411, %v1410
        %v1418 = vpack.c.b16 %v1413, %v1412
        %v1419 = vpack.c.b16 %v1415, %v1414
        %v1428 = vunpack.c.l.b16 %v1368
        %v1429 = vunpack.c.l.b16 %v1369
        %v1430 = vunpack.c.l.b16 %v1370
        %v1431 = vunpack.c.l.b16 %v1371
        %v1432 = vunpack.c.l.b16 %v1372
        %v1433 = vunpack.c.l.b16 %v1373
        %v1434 = vunpack.c.l.b16 %v1374
        %v1435 = vunpack.c.l.b16 %v1375
        %v1436 = vpack.c.b16 %v1429, %v1428
        %v1437 = vpack.c.b16 %v1431, %v1430
        %v1438 = vpack.c.b16 %v1433, %v1432
        %v1439 = vpack.c.b16 %v1435, %v1434
        %v1445 = vsel %vm983, %v1416, 0
        %v1448 = vsel %vm983, %v1417, 0
        %v1451 = vsel %vm983, %v1418, 0
        %v1454 = vsel %vm983, %v1419, 0
        %1456 = vmatpush.bf16.msra.mxu0 0
        %1457 = vmatpush.bf16.msra.mxu0 0
        %1458 = vmatpush.bf16.msra.mxu0 0
        %1459 = vmatpush.bf16.msra.mxu0 0
        %1460 = vmatpush.bf16.msra.mxu0 %v1439
        %1461 = vmatpush.bf16.msra.mxu0 %v1438
        %1462 = vmatpush.bf16.msra.mxu0 %v1437
        %1463 = vmatpush.bf16.msra.mxu0 %v1436
        %1464 = vmatmul.bf16.gmra.mxu0 %v1445
        %v1465 = vpop.f32.mrf.mxu0
        %v1466 = vadd.f32 0.0, %v1465
        %v1467 = vpop.f32.mrf.mxu0
        %v1468 = vadd.f32 0.0, %v1467
        %1469 = vmatmul.bf16.gmra.mxu0 %v1448
        %v1470 = vpop.f32.mrf.mxu0
        %v1471 = vadd.f32 0.0, %v1470
        %v1472 = vpop.f32.mrf.mxu0
        %v1473 = vadd.f32 0.0, %v1472
        %1474 = vmatmul.bf16.gmra.mxu0 %v1451
        %v1475 = vpop.f32.mrf.mxu0
        %v1476 = vadd.f32 0.0, %v1475
        %v1477 = vpop.f32.mrf.mxu0
        %v1478 = vadd.f32 0.0, %v1477
        %1479 = vmatmul.bf16.gmra.mxu0 %v1454
        %v1480 = vpop.f32.mrf.mxu0
        %v1481 = vadd.f32 0.0, %v1480
        %v1482 = vpop.f32.mrf.mxu0
        %v1483 = vadd.f32 0.0, %v1482
        %1484 = vdwg.mxu0
        %v1493 = vunpack.c.l.b16 %v1344
        %v1494 = vunpack.c.l.b16 %v1345
        %v1495 = vunpack.c.l.b16 %v1346
        %v1496 = vunpack.c.l.b16 %v1347
        %v1497 = vunpack.c.l.b16 %v1348
        %v1498 = vunpack.c.l.b16 %v1349
        %v1499 = vunpack.c.l.b16 %v1350
        %v1500 = vunpack.c.l.b16 %v1351
        %v1501 = vpack.c.b16 %v1494, %v1493
        %v1502 = vpack.c.b16 %v1496, %v1495
        %v1503 = vpack.c.b16 %v1498, %v1497
        %v1504 = vpack.c.b16 %v1500, %v1499
        %v1513 = vunpack.c.l.b16 %v1376
        %v1514 = vunpack.c.l.b16 %v1377
        %v1515 = vunpack.c.l.b16 %v1378
        %v1516 = vunpack.c.l.b16 %v1379
        %v1517 = vunpack.c.l.b16 %v1380
        %v1518 = vunpack.c.l.b16 %v1381
        %v1519 = vunpack.c.l.b16 %v1382
        %v1520 = vunpack.c.l.b16 %v1383
        %v1521 = vpack.c.b16 %v1514, %v1513
        %v1522 = vpack.c.b16 %v1516, %v1515
        %v1523 = vpack.c.b16 %v1518, %v1517
        %v1524 = vpack.c.b16 %v1520, %v1519
        %v1530 = vsel %vm983, %v1501, 0
        %v1533 = vsel %vm983, %v1502, 0
        %v1536 = vsel %vm983, %v1503, 0
        %v1539 = vsel %vm983, %v1504, 0
        %1541 = vmatpush.bf16.msra.mxu0 0
        %1542 = vmatpush.bf16.msra.mxu0 0
        %1543 = vmatpush.bf16.msra.mxu0 0
        %1544 = vmatpush.bf16.msra.mxu0 0
        %1545 = vmatpush.bf16.msra.mxu0 %v1524
        %1546 = vmatpush.bf16.msra.mxu0 %v1523
        %1547 = vmatpush.bf16.msra.mxu0 %v1522
        %1548 = vmatpush.bf16.msra.mxu0 %v1521
        %1549 = vmatmul.bf16.gmra.mxu0 %v1530
        %v1550 = vpop.f32.mrf.mxu0
        %v1551 = vadd.f32 0.0, %v1550
        %v1552 = vpop.f32.mrf.mxu0
        %v1553 = vadd.f32 0.0, %v1552
        %1554 = vmatmul.bf16.gmra.mxu0 %v1533
        %v1555 = vpop.f32.mrf.mxu0
        %v1556 = vadd.f32 0.0, %v1555
        %v1557 = vpop.f32.mrf.mxu0
        %v1558 = vadd.f32 0.0, %v1557
        %1559 = vmatmul.bf16.gmra.mxu0 %v1536
        %v1560 = vpop.f32.mrf.mxu0
        %v1561 = vadd.f32 0.0, %v1560
        %v1562 = vpop.f32.mrf.mxu0
        %v1563 = vadd.f32 0.0, %v1562
        %1564 = vmatmul.bf16.gmra.mxu0 %v1539
        %v1565 = vpop.f32.mrf.mxu0
        %v1566 = vadd.f32 0.0, %v1565
        %v1567 = vpop.f32.mrf.mxu0
        %v1568 = vadd.f32 0.0, %v1567
        %1569 = vdwg.mxu0
        %v1578 = vunpack.c.l.b16 %v1352
        %v1579 = vunpack.c.l.b16 %v1353
        %v1580 = vunpack.c.l.b16 %v1354
        %v1581 = vunpack.c.l.b16 %v1355
        %v1582 = vunpack.c.l.b16 %v1356
        %v1583 = vunpack.c.l.b16 %v1357
        %v1584 = vunpack.c.l.b16 %v1358
        %v1585 = vunpack.c.l.b16 %v1359
        %v1586 = vpack.c.b16 %v1579, %v1578
        %v1587 = vpack.c.b16 %v1581, %v1580
        %v1588 = vpack.c.b16 %v1583, %v1582
        %v1589 = vpack.c.b16 %v1585, %v1584
        %v1598 = vunpack.c.l.b16 %v1384
        %v1599 = vunpack.c.l.b16 %v1385
        %v1600 = vunpack.c.l.b16 %v1386
        %v1601 = vunpack.c.l.b16 %v1387
        %v1602 = vunpack.c.l.b16 %v1388
        %v1603 = vunpack.c.l.b16 %v1389
        %v1604 = vunpack.c.l.b16 %v1390
        %v1605 = vunpack.c.l.b16 %v1391
        %v1606 = vpack.c.b16 %v1599, %v1598
        %v1607 = vpack.c.b16 %v1601, %v1600
        %v1608 = vpack.c.b16 %v1603, %v1602
        %v1609 = vpack.c.b16 %v1605, %v1604
        %v1615 = vsel %vm983, %v1586, 0
        %v1618 = vsel %vm983, %v1587, 0
        %v1621 = vsel %vm983, %v1588, 0
        %v1624 = vsel %vm983, %v1589, 0
        %1626 = vmatpush.bf16.msra.mxu0 0
        %1627 = vmatpush.bf16.msra.mxu0 0
        %1628 = vmatpush.bf16.msra.mxu0 0
        %1629 = vmatpush.bf16.msra.mxu0 0
        %1630 = vmatpush.bf16.msra.mxu0 %v1609
        %1631 = vmatpush.bf16.msra.mxu0 %v1608
        %1632 = vmatpush.bf16.msra.mxu0 %v1607
        %1633 = vmatpush.bf16.msra.mxu0 %v1606
        %1634 = vmatmul.bf16.gmra.mxu0 %v1615
        %v1635 = vpop.f32.mrf.mxu0
        %v1636 = vadd.f32 0.0, %v1635
        %v1637 = vpop.f32.mrf.mxu0
        %v1638 = vadd.f32 0.0, %v1637
        %1639 = vmatmul.bf16.gmra.mxu0 %v1618
        %v1640 = vpop.f32.mrf.mxu0
        %v1641 = vadd.f32 0.0, %v1640
        %v1642 = vpop.f32.mrf.mxu0
        %v1643 = vadd.f32 0.0, %v1642
        %1644 = vmatmul.bf16.gmra.mxu0 %v1621
        %v1645 = vpop.f32.mrf.mxu0
        %v1646 = vadd.f32 0.0, %v1645
        %v1647 = vpop.f32.mrf.mxu0
        %v1648 = vadd.f32 0.0, %v1647
        %1649 = vmatmul.bf16.gmra.mxu0 %v1624
        %v1650 = vpop.f32.mrf.mxu0
        %v1651 = vadd.f32 0.0, %v1650
        %v1652 = vpop.f32.mrf.mxu0
        %v1653 = vadd.f32 0.0, %v1652
        %1654 = vdwg.mxu0
        %v1663 = vunpack.c.l.b16 %v1360
        %v1664 = vunpack.c.l.b16 %v1361
        %v1665 = vunpack.c.l.b16 %v1362
        %v1666 = vunpack.c.l.b16 %v1363
        %v1667 = vunpack.c.l.b16 %v1364
        %v1668 = vunpack.c.l.b16 %v1365
        %v1669 = vunpack.c.l.b16 %v1366
        %v1670 = vunpack.c.l.b16 %v1367
        %v1671 = vpack.c.b16 %v1664, %v1663
        %v1672 = vpack.c.b16 %v1666, %v1665
        %v1673 = vpack.c.b16 %v1668, %v1667
        %v1674 = vpack.c.b16 %v1670, %v1669
        %v1683 = vunpack.c.l.b16 %v1392
        %v1684 = vunpack.c.l.b16 %v1393
        %v1685 = vunpack.c.l.b16 %v1394
        %v1686 = vunpack.c.l.b16 %v1395
        %v1687 = vunpack.c.l.b16 %v1396
        %v1688 = vunpack.c.l.b16 %v1397
        %v1689 = vunpack.c.l.b16 %v1398
        %v1690 = vunpack.c.l.b16 %v1399
        %v1691 = vpack.c.b16 %v1684, %v1683
        %v1692 = vpack.c.b16 %v1686, %v1685
        %v1693 = vpack.c.b16 %v1688, %v1687
        %v1694 = vpack.c.b16 %v1690, %v1689
        %v1700 = vsel %vm983, %v1671, 0
        %v1703 = vsel %vm983, %v1672, 0
        %v1706 = vsel %vm983, %v1673, 0
        %v1709 = vsel %vm983, %v1674, 0
        %1711 = vmatpush.bf16.msra.mxu0 0
        %1712 = vmatpush.bf16.msra.mxu0 0
        %1713 = vmatpush.bf16.msra.mxu0 0
        %1714 = vmatpush.bf16.msra.mxu0 0
        %1715 = vmatpush.bf16.msra.mxu0 %v1694
        %1716 = vmatpush.bf16.msra.mxu0 %v1693
        %1717 = vmatpush.bf16.msra.mxu0 %v1692
        %1718 = vmatpush.bf16.msra.mxu0 %v1691
        %1719 = vmatmul.bf16.gmra.mxu0 %v1700
        %v1720 = vpop.f32.mrf.mxu0
        %v1721 = vadd.f32 0.0, %v1720
        %v1722 = vpop.f32.mrf.mxu0
        %v1723 = vadd.f32 0.0, %v1722
        %1724 = vmatmul.bf16.gmra.mxu0 %v1703
        %v1725 = vpop.f32.mrf.mxu0
        %v1726 = vadd.f32 0.0, %v1725
        %v1727 = vpop.f32.mrf.mxu0
        %v1728 = vadd.f32 0.0, %v1727
        %1729 = vmatmul.bf16.gmra.mxu0 %v1706
        %v1730 = vpop.f32.mrf.mxu0
        %v1731 = vadd.f32 0.0, %v1730
        %v1732 = vpop.f32.mrf.mxu0
        %v1733 = vadd.f32 0.0, %v1732
        %1734 = vmatmul.bf16.gmra.mxu0 %v1709
        %v1735 = vpop.f32.mrf.mxu0
        %v1736 = vadd.f32 0.0, %v1735
        %v1737 = vpop.f32.mrf.mxu0
        %v1738 = vadd.f32 0.0, %v1737
        %1739 = vdwg.mxu0
        %s1740 = scalar_lea.vmem %s3, 32
        %v1741 = vld [vmem:[%s1740] sm:$0xf]
        %v1742 = vld [vmem:[%s1740 + $0x4] sm:$0xf]
        %v1743 = vld [vmem:[%s1740 + $0x8] sm:$0xf]
        %v1744 = vld [vmem:[%s1740 + $0xc] sm:$0xf]
        %v1745 = vld [vmem:[%s1740 + $0x10] sm:$0xf]
        %v1746 = vld [vmem:[%s1740 + $0x14] sm:$0xf]
        %v1747 = vld [vmem:[%s1740 + $0x18] sm:$0xf]
        %v1748 = vld [vmem:[%s1740 + $0x1c] sm:$0xf]
        %v1749 = vunpack.c.l.bf16 %v1741
        %v1750 = vunpack.c.l.bf16 %v1742
        %v1751 = vunpack.c.l.bf16 %v1743
        %v1752 = vunpack.c.l.bf16 %v1744
        %v1753 = vunpack.c.l.bf16 %v1745
        %v1754 = vunpack.c.l.bf16 %v1746
        %v1755 = vunpack.c.l.bf16 %v1747
        %v1756 = vunpack.c.l.bf16 %v1748
        %1757 = vrot.lane.b32.xlu0 %v675, 112
        %v1758 = vpop.permute.xlu0 %1757
        %1759 = vrot.lane.b32.xlu0 %v676, 112
        %v1760 = vpop.permute.xlu0 %1759
        %1761 = vrot.lane.b32.xlu0 %v677, 112
        %v1762 = vpop.permute.xlu0 %1761
        %1763 = vrot.lane.b32.xlu0 %v678, 112
        %v1764 = vpop.permute.xlu0 %1763
        %1765 = vrot.lane.b32.xlu0 %v675, 48
        %v1766 = vpop.permute.xlu0 %1765
        %1767 = vrot.lane.b32.xlu0 %v676, 48
        %v1768 = vpop.permute.xlu0 %1767
        %1769 = vrot.lane.b32.xlu0 %v677, 48
        %v1770 = vpop.permute.xlu0 %1769
        %1771 = vrot.lane.b32.xlu0 %v678, 48
        %v1772 = vpop.permute.xlu0 %1771
        %v1774 = vsel %vm384, %v1758, 0
        %v1777 = vsel %vm384, %v1760, 0
        %v1780 = vsel %vm384, %v1762, 0
        %v1783 = vsel %vm384, %v1764, 0
        %v1786 = vsel %vm384, %v1766, 0
        %v1789 = vsel %vm384, %v1768, 0
        %v1792 = vsel %vm384, %v1770, 0
        %v1795 = vsel %vm384, %v1772, 0
        %1797 = vmatpush.bf16.xpose.msra.mxu0 0
        %1798 = vmatpush.bf16.xpose.msra.mxu0 0
        %1799 = vmatpush.bf16.xpose.msra.mxu0 0
        %1800 = vmatpush.bf16.xpose.msra.mxu0 0
        %1801 = vmatpush.bf16.xpose.msra.mxu0 %v1795
        %1802 = vmatpush.bf16.xpose.msra.mxu0 %v1792
        %1803 = vmatpush.bf16.xpose.msra.mxu0 %v1789
        %1804 = vmatpush.bf16.xpose.msra.mxu0 %v1786
        %1805 = vmatmul.bf16.gmra.mxu0 %v1774
        %v1806 = vpop.f32.mrf.mxu0
        %v1807 = vadd.f32 %v1749, %v1806
        %v1808 = vpop.f32.mrf.mxu0
        %v1809 = vadd.f32 %v1750, %v1808
        %1810 = vmatmul.bf16.gmra.mxu0 %v1777
        %v1811 = vpop.f32.mrf.mxu0
        %v1812 = vadd.f32 %v1751, %v1811
        %v1813 = vpop.f32.mrf.mxu0
        %v1814 = vadd.f32 %v1752, %v1813
        %1815 = vmatmul.bf16.gmra.mxu0 %v1780
        %v1816 = vpop.f32.mrf.mxu0
        %v1817 = vadd.f32 %v1753, %v1816
        %v1818 = vpop.f32.mrf.mxu0
        %v1819 = vadd.f32 %v1754, %v1818
        %1820 = vmatmul.bf16.gmra.mxu0 %v1783
        %v1821 = vpop.f32.mrf.mxu0
        %v1822 = vadd.f32 %v1755, %v1821
        %v1823 = vpop.f32.mrf.mxu0
        %v1824 = vadd.f32 %v1756, %v1823
        %1825 = vdwg.mxu0
        %1826 = vrot.lane.b32.xlu0 %v756, 112
        %v1827 = vpop.permute.xlu0 %1826
        %1828 = vrot.lane.b32.xlu0 %v757, 112
        %v1829 = vpop.permute.xlu0 %1828
        %1830 = vrot.lane.b32.xlu0 %v758, 112
        %v1831 = vpop.permute.xlu0 %1830
        %1832 = vrot.lane.b32.xlu0 %v759, 112
        %v1833 = vpop.permute.xlu0 %1832
        %1834 = vrot.lane.b32.xlu0 %v756, 48
        %v1835 = vpop.permute.xlu0 %1834
        %1836 = vrot.lane.b32.xlu0 %v757, 48
        %v1837 = vpop.permute.xlu0 %1836
        %1838 = vrot.lane.b32.xlu0 %v758, 48
        %v1839 = vpop.permute.xlu0 %1838
        %1840 = vrot.lane.b32.xlu0 %v759, 48
        %v1841 = vpop.permute.xlu0 %1840
        %v1843 = vsel %vm384, %v1827, 0
        %v1846 = vsel %vm384, %v1829, 0
        %v1849 = vsel %vm384, %v1831, 0
        %v1852 = vsel %vm384, %v1833, 0
        %v1855 = vsel %vm384, %v1835, 0
        %v1858 = vsel %vm384, %v1837, 0
        %v1861 = vsel %vm384, %v1839, 0
        %v1864 = vsel %vm384, %v1841, 0
        %1866 = vmatpush.bf16.xpose.msra.mxu0 0
        %1867 = vmatpush.bf16.xpose.msra.mxu0 0
        %1868 = vmatpush.bf16.xpose.msra.mxu0 0
        %1869 = vmatpush.bf16.xpose.msra.mxu0 0
        %1870 = vmatpush.bf16.xpose.msra.mxu0 %v1864
        %1871 = vmatpush.bf16.xpose.msra.mxu0 %v1861
        %1872 = vmatpush.bf16.xpose.msra.mxu0 %v1858
        %1873 = vmatpush.bf16.xpose.msra.mxu0 %v1855
        %1874 = vmatmul.bf16.gmra.mxu0 %v1843
        %v1875 = vpop.f32.mrf.mxu0
        %v1876 = vadd.f32 %v1749, %v1875
        %v1877 = vpop.f32.mrf.mxu0
        %v1878 = vadd.f32 %v1750, %v1877
        %1879 = vmatmul.bf16.gmra.mxu0 %v1846
        %v1880 = vpop.f32.mrf.mxu0
        %v1881 = vadd.f32 %v1751, %v1880
        %v1882 = vpop.f32.mrf.mxu0
        %v1883 = vadd.f32 %v1752, %v1882
        %1884 = vmatmul.bf16.gmra.mxu0 %v1849
        %v1885 = vpop.f32.mrf.mxu0
        %v1886 = vadd.f32 %v1753, %v1885
        %v1887 = vpop.f32.mrf.mxu0
        %v1888 = vadd.f32 %v1754, %v1887
        %1889 = vmatmul.bf16.gmra.mxu0 %v1852
        %v1890 = vpop.f32.mrf.mxu0
        %v1891 = vadd.f32 %v1755, %v1890
        %v1892 = vpop.f32.mrf.mxu0
        %v1893 = vadd.f32 %v1756, %v1892
        %1894 = vdwg.mxu0
        %1895 = vrot.lane.b32.xlu0 %v837, 112
        %v1896 = vpop.permute.xlu0 %1895
        %1897 = vrot.lane.b32.xlu0 %v838, 112
        %v1898 = vpop.permute.xlu0 %1897
        %1899 = vrot.lane.b32.xlu0 %v839, 112
        %v1900 = vpop.permute.xlu0 %1899
        %1901 = vrot.lane.b32.xlu0 %v840, 112
        %v1902 = vpop.permute.xlu0 %1901
        %1903 = vrot.lane.b32.xlu0 %v837, 48
        %v1904 = vpop.permute.xlu0 %1903
        %1905 = vrot.lane.b32.xlu0 %v838, 48
        %v1906 = vpop.permute.xlu0 %1905
        %1907 = vrot.lane.b32.xlu0 %v839, 48
        %v1908 = vpop.permute.xlu0 %1907
        %1909 = vrot.lane.b32.xlu0 %v840, 48
        %v1910 = vpop.permute.xlu0 %1909
        %v1912 = vsel %vm384, %v1896, 0
        %v1915 = vsel %vm384, %v1898, 0
        %v1918 = vsel %vm384, %v1900, 0
        %v1921 = vsel %vm384, %v1902, 0
        %v1924 = vsel %vm384, %v1904, 0
        %v1927 = vsel %vm384, %v1906, 0
        %v1930 = vsel %vm384, %v1908, 0
        %v1933 = vsel %vm384, %v1910, 0
        %1935 = vmatpush.bf16.xpose.msra.mxu0 0
        %1936 = vmatpush.bf16.xpose.msra.mxu0 0
        %1937 = vmatpush.bf16.xpose.msra.mxu0 0
        %1938 = vmatpush.bf16.xpose.msra.mxu0 0
        %1939 = vmatpush.bf16.xpose.msra.mxu0 %v1933
        %1940 = vmatpush.bf16.xpose.msra.mxu0 %v1930
        %1941 = vmatpush.bf16.xpose.msra.mxu0 %v1927
        %1942 = vmatpush.bf16.xpose.msra.mxu0 %v1924
        %1943 = vmatmul.bf16.gmra.mxu0 %v1912
        %v1944 = vpop.f32.mrf.mxu0
        %v1945 = vadd.f32 %v1749, %v1944
        %v1946 = vpop.f32.mrf.mxu0
        %v1947 = vadd.f32 %v1750, %v1946
        %1948 = vmatmul.bf16.gmra.mxu0 %v1915
        %v1949 = vpop.f32.mrf.mxu0
        %v1950 = vadd.f32 %v1751, %v1949
        %v1951 = vpop.f32.mrf.mxu0
        %v1952 = vadd.f32 %v1752, %v1951
        %1953 = vmatmul.bf16.gmra.mxu0 %v1918
        %v1954 = vpop.f32.mrf.mxu0
        %v1955 = vadd.f32 %v1753, %v1954
        %v1956 = vpop.f32.mrf.mxu0
        %v1957 = vadd.f32 %v1754, %v1956
        %1958 = vmatmul.bf16.gmra.mxu0 %v1921
        %v1959 = vpop.f32.mrf.mxu0
        %v1960 = vadd.f32 %v1755, %v1959
        %v1961 = vpop.f32.mrf.mxu0
        %v1962 = vadd.f32 %v1756, %v1961
        %1963 = vdwg.mxu0
        %1964 = vrot.lane.b32.xlu0 %v918, 112
        %v1965 = vpop.permute.xlu0 %1964
        %1966 = vrot.lane.b32.xlu0 %v919, 112
        %v1967 = vpop.permute.xlu0 %1966
        %1968 = vrot.lane.b32.xlu0 %v920, 112
        %v1969 = vpop.permute.xlu0 %1968
        %1970 = vrot.lane.b32.xlu0 %v921, 112
        %v1971 = vpop.permute.xlu0 %1970
        %1972 = vrot.lane.b32.xlu0 %v918, 48
        %v1973 = vpop.permute.xlu0 %1972
        %1974 = vrot.lane.b32.xlu0 %v919, 48
        %v1975 = vpop.permute.xlu0 %1974
        %1976 = vrot.lane.b32.xlu0 %v920, 48
        %v1977 = vpop.permute.xlu0 %1976
        %1978 = vrot.lane.b32.xlu0 %v921, 48
        %v1979 = vpop.permute.xlu0 %1978
        %v1981 = vsel %vm384, %v1965, 0
        %v1984 = vsel %vm384, %v1967, 0
        %v1987 = vsel %vm384, %v1969, 0
        %v1990 = vsel %vm384, %v1971, 0
        %v1993 = vsel %vm384, %v1973, 0
        %v1996 = vsel %vm384, %v1975, 0
        %v1999 = vsel %vm384, %v1977, 0
        %v2002 = vsel %vm384, %v1979, 0
        %2004 = vmatpush.bf16.xpose.msra.mxu0 0
        %2005 = vmatpush.bf16.xpose.msra.mxu0 0
        %2006 = vmatpush.bf16.xpose.msra.mxu0 0
        %2007 = vmatpush.bf16.xpose.msra.mxu0 0
        %2008 = vmatpush.bf16.xpose.msra.mxu0 %v2002
        %2009 = vmatpush.bf16.xpose.msra.mxu0 %v1999
        %2010 = vmatpush.bf16.xpose.msra.mxu0 %v1996
        %2011 = vmatpush.bf16.xpose.msra.mxu0 %v1993
        %2012 = vmatmul.bf16.gmra.mxu0 %v1981
        %v2013 = vpop.f32.mrf.mxu0
        %v2014 = vadd.f32 %v1749, %v2013
        %v2015 = vpop.f32.mrf.mxu0
        %v2016 = vadd.f32 %v1750, %v2015
        %2017 = vmatmul.bf16.gmra.mxu0 %v1984
        %v2018 = vpop.f32.mrf.mxu0
        %v2019 = vadd.f32 %v1751, %v2018
        %v2020 = vpop.f32.mrf.mxu0
        %v2021 = vadd.f32 %v1752, %v2020
        %2022 = vmatmul.bf16.gmra.mxu0 %v1987
        %v2023 = vpop.f32.mrf.mxu0
        %v2024 = vadd.f32 %v1753, %v2023
        %v2025 = vpop.f32.mrf.mxu0
        %v2026 = vadd.f32 %v1754, %v2025
        %2027 = vmatmul.bf16.gmra.mxu0 %v1990
        %v2028 = vpop.f32.mrf.mxu0
        %v2029 = vadd.f32 %v1755, %v2028
        %v2030 = vpop.f32.mrf.mxu0
        %v2031 = vadd.f32 %v1756, %v2030
        %2032 = vdwg.mxu0
        %v2033 = vsel %vm983, %v1807, -inf
        %2034 = vmax.xlane.f32.xlu0 %v2033
        %v2035 = vpop.xlane.xlu0 %2034
        %v2036 = vsel %vm983, %v1809, -inf
        %2037 = vmax.xlane.f32.xlu0 %v2036
        %v2038 = vpop.xlane.xlu0 %2037
        %v2039 = vsel %vm983, %v1812, -inf
        %2040 = vmax.xlane.f32.xlu0 %v2039
        %v2041 = vpop.xlane.xlu0 %2040
        %v2042 = vsel %vm983, %v1814, -inf
        %2043 = vmax.xlane.f32.xlu0 %v2042
        %v2044 = vpop.xlane.xlu0 %2043
        %v2045 = vsel %vm983, %v1817, -inf
        %2046 = vmax.xlane.f32.xlu0 %v2045
        %v2047 = vpop.xlane.xlu0 %2046
        %v2048 = vsel %vm983, %v1819, -inf
        %2049 = vmax.xlane.f32.xlu0 %v2048
        %v2050 = vpop.xlane.xlu0 %2049
        %v2051 = vsel %vm983, %v1822, -inf
        %2052 = vmax.xlane.f32.xlu0 %v2051
        %v2053 = vpop.xlane.xlu0 %2052
        %v2054 = vsel %vm983, %v1824, -inf
        %2055 = vmax.xlane.f32.xlu0 %v2054
        %v2056 = vpop.xlane.xlu0 %2055
        %v2057 = vsel %vm983, %v1876, -inf
        %2058 = vmax.xlane.f32.xlu0 %v2057
        %v2059 = vpop.xlane.xlu0 %2058
        %v2060 = vsel %vm983, %v1878, -inf
        %2061 = vmax.xlane.f32.xlu0 %v2060
        %v2062 = vpop.xlane.xlu0 %2061
        %v2063 = vsel %vm983, %v1881, -inf
        %2064 = vmax.xlane.f32.xlu0 %v2063
        %v2065 = vpop.xlane.xlu0 %2064
        %v2066 = vsel %vm983, %v1883, -inf
        %2067 = vmax.xlane.f32.xlu0 %v2066
        %v2068 = vpop.xlane.xlu0 %2067
        %v2069 = vsel %vm983, %v1886, -inf
        %2070 = vmax.xlane.f32.xlu0 %v2069
        %v2071 = vpop.xlane.xlu0 %2070
        %v2072 = vsel %vm983, %v1888, -inf
        %2073 = vmax.xlane.f32.xlu0 %v2072
        %v2074 = vpop.xlane.xlu0 %2073
        %v2075 = vsel %vm983, %v1891, -inf
        %2076 = vmax.xlane.f32.xlu0 %v2075
        %v2077 = vpop.xlane.xlu0 %2076
        %v2078 = vsel %vm983, %v1893, -inf
        %2079 = vmax.xlane.f32.xlu0 %v2078
        %v2080 = vpop.xlane.xlu0 %2079
        %v2081 = vsel %vm983, %v1945, -inf
        %2082 = vmax.xlane.f32.xlu0 %v2081
        %v2083 = vpop.xlane.xlu0 %2082
        %v2084 = vsel %vm983, %v1947, -inf
        %2085 = vmax.xlane.f32.xlu0 %v2084
        %v2086 = vpop.xlane.xlu0 %2085
        %v2087 = vsel %vm983, %v1950, -inf
        %2088 = vmax.xlane.f32.xlu0 %v2087
        %v2089 = vpop.xlane.xlu0 %2088
        %v2090 = vsel %vm983, %v1952, -inf
        %2091 = vmax.xlane.f32.xlu0 %v2090
        %v2092 = vpop.xlane.xlu0 %2091
        %v2093 = vsel %vm983, %v1955, -inf
        %2094 = vmax.xlane.f32.xlu0 %v2093
        %v2095 = vpop.xlane.xlu0 %2094
        %v2096 = vsel %vm983, %v1957, -inf
        %2097 = vmax.xlane.f32.xlu0 %v2096
        %v2098 = vpop.xlane.xlu0 %2097
        %v2099 = vsel %vm983, %v1960, -inf
        %2100 = vmax.xlane.f32.xlu0 %v2099
        %v2101 = vpop.xlane.xlu0 %2100
        %v2102 = vsel %vm983, %v1962, -inf
        %2103 = vmax.xlane.f32.xlu0 %v2102
        %v2104 = vpop.xlane.xlu0 %2103
        %v2105 = vsel %vm983, %v2014, -inf
        %2106 = vmax.xlane.f32.xlu0 %v2105
        %v2107 = vpop.xlane.xlu0 %2106
        %v2108 = vsel %vm983, %v2016, -inf
        %2109 = vmax.xlane.f32.xlu0 %v2108
        %v2110 = vpop.xlane.xlu0 %2109
        %v2111 = vsel %vm983, %v2019, -inf
        %2112 = vmax.xlane.f32.xlu0 %v2111
        %v2113 = vpop.xlane.xlu0 %2112
        %v2114 = vsel %vm983, %v2021, -inf
        %2115 = vmax.xlane.f32.xlu0 %v2114
        %v2116 = vpop.xlane.xlu0 %2115
        %v2117 = vsel %vm983, %v2024, -inf
        %2118 = vmax.xlane.f32.xlu0 %v2117
        %v2119 = vpop.xlane.xlu0 %2118
        %v2120 = vsel %vm983, %v2026, -inf
        %2121 = vmax.xlane.f32.xlu0 %v2120
        %v2122 = vpop.xlane.xlu0 %2121
        %v2123 = vsel %vm983, %v2029, -inf
        %2124 = vmax.xlane.f32.xlu0 %v2123
        %v2125 = vpop.xlane.xlu0 %2124
        %v2126 = vsel %vm983, %v2031, -inf
        %2127 = vmax.xlane.f32.xlu0 %v2126
        %v2128 = vpop.xlane.xlu0 %2127
        %v2129 = vsub.f32 %v1807, %v2035
        %v2130 = vsub.f32 %v1809, %v2038
        %v2131 = vsub.f32 %v1812, %v2041
        %v2132 = vsub.f32 %v1814, %v2044
        %v2133 = vsub.f32 %v1817, %v2047
        %v2134 = vsub.f32 %v1819, %v2050
        %v2135 = vsub.f32 %v1822, %v2053
        %v2136 = vsub.f32 %v1824, %v2056
        %v2137 = vsub.f32 %v1876, %v2059
        %v2138 = vsub.f32 %v1878, %v2062
        %v2139 = vsub.f32 %v1881, %v2065
        %v2140 = vsub.f32 %v1883, %v2068
        %v2141 = vsub.f32 %v1886, %v2071
        %v2142 = vsub.f32 %v1888, %v2074
        %v2143 = vsub.f32 %v1891, %v2077
        %v2144 = vsub.f32 %v1893, %v2080
        %v2145 = vsub.f32 %v1945, %v2083
        %v2146 = vsub.f32 %v1947, %v2086
        %v2147 = vsub.f32 %v1950, %v2089
        %v2148 = vsub.f32 %v1952, %v2092
        %v2149 = vsub.f32 %v1955, %v2095
        %v2150 = vsub.f32 %v1957, %v2098
        %v2151 = vsub.f32 %v1960, %v2101
        %v2152 = vsub.f32 %v1962, %v2104
        %v2153 = vsub.f32 %v2014, %v2107
        %v2154 = vsub.f32 %v2016, %v2110
        %v2155 = vsub.f32 %v2019, %v2113
        %v2156 = vsub.f32 %v2021, %v2116
        %v2157 = vsub.f32 %v2024, %v2119
        %v2158 = vsub.f32 %v2026, %v2122
        %v2159 = vsub.f32 %v2029, %v2125
        %v2160 = vsub.f32 %v2031, %v2128
        %v2161 = vmul.f32 %v2129, 1.442695
        %v2162 = vpow.pop %v2161
        %v2163 = vmul.f32 %v2130, 1.442695
        %v2164 = vpow.pop %v2163
        %v2165 = vmul.f32 %v2131, 1.442695
        %v2166 = vpow.pop %v2165
        %v2167 = vmul.f32 %v2132, 1.442695
        %v2168 = vpow.pop %v2167
        %v2169 = vmul.f32 %v2133, 1.442695
        %v2170 = vpow.pop %v2169
        %v2171 = vmul.f32 %v2134, 1.442695
        %v2172 = vpow.pop %v2171
        %v2173 = vmul.f32 %v2135, 1.442695
        %v2174 = vpow.pop %v2173
        %v2175 = vmul.f32 %v2136, 1.442695
        %v2176 = vpow.pop %v2175
        %v2177 = vmul.f32 %v2137, 1.442695
        %v2178 = vpow.pop %v2177
        %v2179 = vmul.f32 %v2138, 1.442695
        %v2180 = vpow.pop %v2179
        %v2181 = vmul.f32 %v2139, 1.442695
        %v2182 = vpow.pop %v2181
        %v2183 = vmul.f32 %v2140, 1.442695
        %v2184 = vpow.pop %v2183
        %v2185 = vmul.f32 %v2141, 1.442695
        %v2186 = vpow.pop %v2185
        %v2187 = vmul.f32 %v2142, 1.442695
        %v2188 = vpow.pop %v2187
        %v2189 = vmul.f32 %v2143, 1.442695
        %v2190 = vpow.pop %v2189
        %v2191 = vmul.f32 %v2144, 1.442695
        %v2192 = vpow.pop %v2191
        %v2193 = vmul.f32 %v2145, 1.442695
        %v2194 = vpow.pop %v2193
        %v2195 = vmul.f32 %v2146, 1.442695
        %v2196 = vpow.pop %v2195
        %v2197 = vmul.f32 %v2147, 1.442695
        %v2198 = vpow.pop %v2197
        %v2199 = vmul.f32 %v2148, 1.442695
        %v2200 = vpow.pop %v2199
        %v2201 = vmul.f32 %v2149, 1.442695
        %v2202 = vpow.pop %v2201
        %v2203 = vmul.f32 %v2150, 1.442695
        %v2204 = vpow.pop %v2203
        %v2205 = vmul.f32 %v2151, 1.442695
        %v2206 = vpow.pop %v2205
        %v2207 = vmul.f32 %v2152, 1.442695
        %v2208 = vpow.pop %v2207
        %v2209 = vmul.f32 %v2153, 1.442695
        %v2210 = vpow.pop %v2209
        %v2211 = vmul.f32 %v2154, 1.442695
        %v2212 = vpow.pop %v2211
        %v2213 = vmul.f32 %v2155, 1.442695
        %v2214 = vpow.pop %v2213
        %v2215 = vmul.f32 %v2156, 1.442695
        %v2216 = vpow.pop %v2215
        %v2217 = vmul.f32 %v2157, 1.442695
        %v2218 = vpow.pop %v2217
        %v2219 = vmul.f32 %v2158, 1.442695
        %v2220 = vpow.pop %v2219
        %v2221 = vmul.f32 %v2159, 1.442695
        %v2222 = vpow.pop %v2221
        %v2223 = vmul.f32 %v2160, 1.442695
        %v2224 = vpow.pop %v2223
        %v2225 = vsel %vm983, %v2162, 0.0
        %2226 = vadd.xlane.f32.xlu0 %v2225
        %v2227 = vpop.xlane.xlu0 %2226
        %v2228 = vsel %vm983, %v2164, 0.0
        %2229 = vadd.xlane.f32.xlu0 %v2228
        %v2230 = vpop.xlane.xlu0 %2229
        %v2231 = vsel %vm983, %v2166, 0.0
        %2232 = vadd.xlane.f32.xlu0 %v2231
        %v2233 = vpop.xlane.xlu0 %2232
        %v2234 = vsel %vm983, %v2168, 0.0
        %2235 = vadd.xlane.f32.xlu0 %v2234
        %v2236 = vpop.xlane.xlu0 %2235
        %v2237 = vsel %vm983, %v2170, 0.0
        %2238 = vadd.xlane.f32.xlu0 %v2237
        %v2239 = vpop.xlane.xlu0 %2238
        %v2240 = vsel %vm983, %v2172, 0.0
        %2241 = vadd.xlane.f32.xlu0 %v2240
        %v2242 = vpop.xlane.xlu0 %2241
        %v2243 = vsel %vm983, %v2174, 0.0
        %2244 = vadd.xlane.f32.xlu0 %v2243
        %v2245 = vpop.xlane.xlu0 %2244
        %v2246 = vsel %vm983, %v2176, 0.0
        %2247 = vadd.xlane.f32.xlu0 %v2246
        %v2248 = vpop.xlane.xlu0 %2247
        %v2249 = vsel %vm983, %v2178, 0.0
        %2250 = vadd.xlane.f32.xlu0 %v2249
        %v2251 = vpop.xlane.xlu0 %2250
        %v2252 = vsel %vm983, %v2180, 0.0
        %2253 = vadd.xlane.f32.xlu0 %v2252
        %v2254 = vpop.xlane.xlu0 %2253
        %v2255 = vsel %vm983, %v2182, 0.0
        %2256 = vadd.xlane.f32.xlu0 %v2255
        %v2257 = vpop.xlane.xlu0 %2256
        %v2258 = vsel %vm983, %v2184, 0.0
        %2259 = vadd.xlane.f32.xlu0 %v2258
        %v2260 = vpop.xlane.xlu0 %2259
        %v2261 = vsel %vm983, %v2186, 0.0
        %2262 = vadd.xlane.f32.xlu0 %v2261
        %v2263 = vpop.xlane.xlu0 %2262
        %v2264 = vsel %vm983, %v2188, 0.0
        %2265 = vadd.xlane.f32.xlu0 %v2264
        %v2266 = vpop.xlane.xlu0 %2265
        %v2267 = vsel %vm983, %v2190, 0.0
        %2268 = vadd.xlane.f32.xlu0 %v2267
        %v2269 = vpop.xlane.xlu0 %2268
        %v2270 = vsel %vm983, %v2192, 0.0
        %2271 = vadd.xlane.f32.xlu0 %v2270
        %v2272 = vpop.xlane.xlu0 %2271
        %v2273 = vsel %vm983, %v2194, 0.0
        %2274 = vadd.xlane.f32.xlu0 %v2273
        %v2275 = vpop.xlane.xlu0 %2274
        %v2276 = vsel %vm983, %v2196, 0.0
        %2277 = vadd.xlane.f32.xlu0 %v2276
        %v2278 = vpop.xlane.xlu0 %2277
        %v2279 = vsel %vm983, %v2198, 0.0
        %2280 = vadd.xlane.f32.xlu0 %v2279
        %v2281 = vpop.xlane.xlu0 %2280
        %v2282 = vsel %vm983, %v2200, 0.0
        %2283 = vadd.xlane.f32.xlu0 %v2282
        %v2284 = vpop.xlane.xlu0 %2283
        %v2285 = vsel %vm983, %v2202, 0.0
        %2286 = vadd.xlane.f32.xlu0 %v2285
        %v2287 = vpop.xlane.xlu0 %2286
        %v2288 = vsel %vm983, %v2204, 0.0
        %2289 = vadd.xlane.f32.xlu0 %v2288
        %v2290 = vpop.xlane.xlu0 %2289
        %v2291 = vsel %vm983, %v2206, 0.0
        %2292 = vadd.xlane.f32.xlu0 %v2291
        %v2293 = vpop.xlane.xlu0 %2292
        %v2294 = vsel %vm983, %v2208, 0.0
        %2295 = vadd.xlane.f32.xlu0 %v2294
        %v2296 = vpop.xlane.xlu0 %2295
        %v2297 = vsel %vm983, %v2210, 0.0
        %2298 = vadd.xlane.f32.xlu0 %v2297
        %v2299 = vpop.xlane.xlu0 %2298
        %v2300 = vsel %vm983, %v2212, 0.0
        %2301 = vadd.xlane.f32.xlu0 %v2300
        %v2302 = vpop.xlane.xlu0 %2301
        %v2303 = vsel %vm983, %v2214, 0.0
        %2304 = vadd.xlane.f32.xlu0 %v2303
        %v2305 = vpop.xlane.xlu0 %2304
        %v2306 = vsel %vm983, %v2216, 0.0
        %2307 = vadd.xlane.f32.xlu0 %v2306
        %v2308 = vpop.xlane.xlu0 %2307
        %v2309 = vsel %vm983, %v2218, 0.0
        %2310 = vadd.xlane.f32.xlu0 %v2309
        %v2311 = vpop.xlane.xlu0 %2310
        %v2312 = vsel %vm983, %v2220, 0.0
        %2313 = vadd.xlane.f32.xlu0 %v2312
        %v2314 = vpop.xlane.xlu0 %2313
        %v2315 = vsel %vm983, %v2222, 0.0
        %2316 = vadd.xlane.f32.xlu0 %v2315
        %v2317 = vpop.xlane.xlu0 %2316
        %v2318 = vsel %vm983, %v2224, 0.0
        %2319 = vadd.xlane.f32.xlu0 %v2318
        %v2320 = vpop.xlane.xlu0 %2319
        %v2321 = vrcp.pop %v2227
        %v2322 = vrcp.pop %v2230
        %v2323 = vrcp.pop %v2233
        %v2324 = vrcp.pop %v2236
        %v2325 = vrcp.pop %v2239
        %v2326 = vrcp.pop %v2242
        %v2327 = vrcp.pop %v2245
        %v2328 = vrcp.pop %v2248
        %v2329 = vrcp.pop %v2251
        %v2330 = vrcp.pop %v2254
        %v2331 = vrcp.pop %v2257
        %v2332 = vrcp.pop %v2260
        %v2333 = vrcp.pop %v2263
        %v2334 = vrcp.pop %v2266
        %v2335 = vrcp.pop %v2269
        %v2336 = vrcp.pop %v2272
        %v2337 = vrcp.pop %v2275
        %v2338 = vrcp.pop %v2278
        %v2339 = vrcp.pop %v2281
        %v2340 = vrcp.pop %v2284
        %v2341 = vrcp.pop %v2287
        %v2342 = vrcp.pop %v2290
        %v2343 = vrcp.pop %v2293
        %v2344 = vrcp.pop %v2296
        %v2345 = vrcp.pop %v2299
        %v2346 = vrcp.pop %v2302
        %v2347 = vrcp.pop %v2305
        %v2348 = vrcp.pop %v2308
        %v2349 = vrcp.pop %v2311
        %v2350 = vrcp.pop %v2314
        %v2351 = vrcp.pop %v2317
        %v2352 = vrcp.pop %v2320
        %v2353 = vmul.f32 %v2162, %v2321
        %v2354 = vmul.f32 %v2164, %v2322
        %v2355 = vmul.f32 %v2166, %v2323
        %v2356 = vmul.f32 %v2168, %v2324
        %v2357 = vmul.f32 %v2170, %v2325
        %v2358 = vmul.f32 %v2172, %v2326
        %v2359 = vmul.f32 %v2174, %v2327
        %v2360 = vmul.f32 %v2176, %v2328
        %v2361 = vmul.f32 %v2178, %v2329
        %v2362 = vmul.f32 %v2180, %v2330
        %v2363 = vmul.f32 %v2182, %v2331
        %v2364 = vmul.f32 %v2184, %v2332
        %v2365 = vmul.f32 %v2186, %v2333
        %v2366 = vmul.f32 %v2188, %v2334
        %v2367 = vmul.f32 %v2190, %v2335
        %v2368 = vmul.f32 %v2192, %v2336
        %v2369 = vmul.f32 %v2194, %v2337
        %v2370 = vmul.f32 %v2196, %v2338
        %v2371 = vmul.f32 %v2198, %v2339
        %v2372 = vmul.f32 %v2200, %v2340
        %v2373 = vmul.f32 %v2202, %v2341
        %v2374 = vmul.f32 %v2204, %v2342
        %v2375 = vmul.f32 %v2206, %v2343
        %v2376 = vmul.f32 %v2208, %v2344
        %v2377 = vmul.f32 %v2210, %v2345
        %v2378 = vmul.f32 %v2212, %v2346
        %v2379 = vmul.f32 %v2214, %v2347
        %v2380 = vmul.f32 %v2216, %v2348
        %v2381 = vmul.f32 %v2218, %v2349
        %v2382 = vmul.f32 %v2220, %v2350
        %v2383 = vmul.f32 %v2222, %v2351
        %v2384 = vmul.f32 %v2224, %v2352
        %v2385 = vpack.c.bf16 %v2353, %v2353
        %v2386 = vpack.c.bf16 %v2354, %v2354
        %v2387 = vpack.c.bf16 %v2355, %v2355
        %v2388 = vpack.c.bf16 %v2356, %v2356
        %v2389 = vpack.c.bf16 %v2357, %v2357
        %v2390 = vpack.c.bf16 %v2358, %v2358
        %v2391 = vpack.c.bf16 %v2359, %v2359
        %v2392 = vpack.c.bf16 %v2360, %v2360
        %v2393 = vpack.c.bf16 %v2361, %v2361
        %v2394 = vpack.c.bf16 %v2362, %v2362
        %v2395 = vpack.c.bf16 %v2363, %v2363
        %v2396 = vpack.c.bf16 %v2364, %v2364
        %v2397 = vpack.c.bf16 %v2365, %v2365
        %v2398 = vpack.c.bf16 %v2366, %v2366
        %v2399 = vpack.c.bf16 %v2367, %v2367
        %v2400 = vpack.c.bf16 %v2368, %v2368
        %v2401 = vpack.c.bf16 %v2369, %v2369
        %v2402 = vpack.c.bf16 %v2370, %v2370
        %v2403 = vpack.c.bf16 %v2371, %v2371
        %v2404 = vpack.c.bf16 %v2372, %v2372
        %v2405 = vpack.c.bf16 %v2373, %v2373
        %v2406 = vpack.c.bf16 %v2374, %v2374
        %v2407 = vpack.c.bf16 %v2375, %v2375
        %v2408 = vpack.c.bf16 %v2376, %v2376
        %v2409 = vpack.c.bf16 %v2377, %v2377
        %v2410 = vpack.c.bf16 %v2378, %v2378
        %v2411 = vpack.c.bf16 %v2379, %v2379
        %v2412 = vpack.c.bf16 %v2380, %v2380
        %v2413 = vpack.c.bf16 %v2381, %v2381
        %v2414 = vpack.c.bf16 %v2382, %v2382
        %v2415 = vpack.c.bf16 %v2383, %v2383
        %v2416 = vpack.c.bf16 %v2384, %v2384
        %v2425 = vunpack.c.l.b16 %v2385
        %v2426 = vunpack.c.l.b16 %v2386
        %v2427 = vunpack.c.l.b16 %v2387
        %v2428 = vunpack.c.l.b16 %v2388
        %v2429 = vunpack.c.l.b16 %v2389
        %v2430 = vunpack.c.l.b16 %v2390
        %v2431 = vunpack.c.l.b16 %v2391
        %v2432 = vunpack.c.l.b16 %v2392
        %v2433 = vpack.c.b16 %v2426, %v2425
        %v2434 = vpack.c.b16 %v2428, %v2427
        %v2435 = vpack.c.b16 %v2430, %v2429
        %v2436 = vpack.c.b16 %v2432, %v2431
        %2437 = vrot.lane.b32.xlu0 %v1436, 96
        %v2438 = vpop.permute.xlu0 %2437
        %2439 = vrot.lane.b32.xlu0 %v1437, 96
        %v2440 = vpop.permute.xlu0 %2439
        %2441 = vrot.lane.b32.xlu0 %v1438, 96
        %v2442 = vpop.permute.xlu0 %2441
        %2443 = vrot.lane.b32.xlu0 %v1439, 96
        %v2444 = vpop.permute.xlu0 %2443
        %v2450 = vsel %vm983, %v2433, 0
        %v2453 = vsel %vm983, %v2434, 0
        %v2456 = vsel %vm983, %v2435, 0
        %v2459 = vsel %vm983, %v2436, 0
        %2461 = vmatpush.bf16.msra.mxu0 0
        %2462 = vmatpush.bf16.msra.mxu0 0
        %2463 = vmatpush.bf16.msra.mxu0 0
        %2464 = vmatpush.bf16.msra.mxu0 0
        %2465 = vmatpush.bf16.msra.mxu0 %v2444
        %2466 = vmatpush.bf16.msra.mxu0 %v2442
        %2467 = vmatpush.bf16.msra.mxu0 %v2440
        %2468 = vmatpush.bf16.msra.mxu0 %v2438
        %2469 = vmatmul.bf16.gmra.mxu0 %v2450
        %v2470 = vpop.f32.mrf.mxu0
        %v2471 = vadd.f32 0.0, %v2470
        %v2472 = vpop.f32.mrf.mxu0
        %v2473 = vadd.f32 0.0, %v2472
        %2474 = vmatmul.bf16.gmra.mxu0 %v2453
        %v2475 = vpop.f32.mrf.mxu0
        %v2476 = vadd.f32 0.0, %v2475
        %v2477 = vpop.f32.mrf.mxu0
        %v2478 = vadd.f32 0.0, %v2477
        %2479 = vmatmul.bf16.gmra.mxu0 %v2456
        %v2480 = vpop.f32.mrf.mxu0
        %v2481 = vadd.f32 0.0, %v2480
        %v2482 = vpop.f32.mrf.mxu0
        %v2483 = vadd.f32 0.0, %v2482
        %2484 = vmatmul.bf16.gmra.mxu0 %v2459
        %v2485 = vpop.f32.mrf.mxu0
        %v2486 = vadd.f32 0.0, %v2485
        %v2487 = vpop.f32.mrf.mxu0
        %v2488 = vadd.f32 0.0, %v2487
        %2489 = vdwg.mxu0
        %v2498 = vunpack.c.l.b16 %v2393
        %v2499 = vunpack.c.l.b16 %v2394
        %v2500 = vunpack.c.l.b16 %v2395
        %v2501 = vunpack.c.l.b16 %v2396
        %v2502 = vunpack.c.l.b16 %v2397
        %v2503 = vunpack.c.l.b16 %v2398
        %v2504 = vunpack.c.l.b16 %v2399
        %v2505 = vunpack.c.l.b16 %v2400
        %v2506 = vpack.c.b16 %v2499, %v2498
        %v2507 = vpack.c.b16 %v2501, %v2500
        %v2508 = vpack.c.b16 %v2503, %v2502
        %v2509 = vpack.c.b16 %v2505, %v2504
        %2510 = vrot.lane.b32.xlu0 %v1521, 96
        %v2511 = vpop.permute.xlu0 %2510
        %2512 = vrot.lane.b32.xlu0 %v1522, 96
        %v2513 = vpop.permute.xlu0 %2512
        %2514 = vrot.lane.b32.xlu0 %v1523, 96
        %v2515 = vpop.permute.xlu0 %2514
        %2516 = vrot.lane.b32.xlu0 %v1524, 96
        %v2517 = vpop.permute.xlu0 %2516
        %v2523 = vsel %vm983, %v2506, 0
        %v2526 = vsel %vm983, %v2507, 0
        %v2529 = vsel %vm983, %v2508, 0
        %v2532 = vsel %vm983, %v2509, 0
        %2534 = vmatpush.bf16.msra.mxu0 0
        %2535 = vmatpush.bf16.msra.mxu0 0
        %2536 = vmatpush.bf16.msra.mxu0 0
        %2537 = vmatpush.bf16.msra.mxu0 0
        %2538 = vmatpush.bf16.msra.mxu0 %v2517
        %2539 = vmatpush.bf16.msra.mxu0 %v2515
        %2540 = vmatpush.bf16.msra.mxu0 %v2513
        %2541 = vmatpush.bf16.msra.mxu0 %v2511
        %2542 = vmatmul.bf16.gmra.mxu0 %v2523
        %v2543 = vpop.f32.mrf.mxu0
        %v2544 = vadd.f32 0.0, %v2543
        %v2545 = vpop.f32.mrf.mxu0
        %v2546 = vadd.f32 0.0, %v2545
        %2547 = vmatmul.bf16.gmra.mxu0 %v2526
        %v2548 = vpop.f32.mrf.mxu0
        %v2549 = vadd.f32 0.0, %v2548
        %v2550 = vpop.f32.mrf.mxu0
        %v2551 = vadd.f32 0.0, %v2550
        %2552 = vmatmul.bf16.gmra.mxu0 %v2529
        %v2553 = vpop.f32.mrf.mxu0
        %v2554 = vadd.f32 0.0, %v2553
        %v2555 = vpop.f32.mrf.mxu0
        %v2556 = vadd.f32 0.0, %v2555
        %2557 = vmatmul.bf16.gmra.mxu0 %v2532
        %v2558 = vpop.f32.mrf.mxu0
        %v2559 = vadd.f32 0.0, %v2558
        %v2560 = vpop.f32.mrf.mxu0
        %v2561 = vadd.f32 0.0, %v2560
        %2562 = vdwg.mxu0
        %v2571 = vunpack.c.l.b16 %v2401
        %v2572 = vunpack.c.l.b16 %v2402
        %v2573 = vunpack.c.l.b16 %v2403
        %v2574 = vunpack.c.l.b16 %v2404
        %v2575 = vunpack.c.l.b16 %v2405
        %v2576 = vunpack.c.l.b16 %v2406
        %v2577 = vunpack.c.l.b16 %v2407
        %v2578 = vunpack.c.l.b16 %v2408
        %v2579 = vpack.c.b16 %v2572, %v2571
        %v2580 = vpack.c.b16 %v2574, %v2573
        %v2581 = vpack.c.b16 %v2576, %v2575
        %v2582 = vpack.c.b16 %v2578, %v2577
        %2583 = vrot.lane.b32.xlu0 %v1606, 96
        %v2584 = vpop.permute.xlu0 %2583
        %2585 = vrot.lane.b32.xlu0 %v1607, 96
        %v2586 = vpop.permute.xlu0 %2585
        %2587 = vrot.lane.b32.xlu0 %v1608, 96
        %v2588 = vpop.permute.xlu0 %2587
        %2589 = vrot.lane.b32.xlu0 %v1609, 96
        %v2590 = vpop.permute.xlu0 %2589
        %v2596 = vsel %vm983, %v2579, 0
        %v2599 = vsel %vm983, %v2580, 0
        %v2602 = vsel %vm983, %v2581, 0
        %v2605 = vsel %vm983, %v2582, 0
        %2607 = vmatpush.bf16.msra.mxu0 0
        %2608 = vmatpush.bf16.msra.mxu0 0
        %2609 = vmatpush.bf16.msra.mxu0 0
        %2610 = vmatpush.bf16.msra.mxu0 0
        %2611 = vmatpush.bf16.msra.mxu0 %v2590
        %2612 = vmatpush.bf16.msra.mxu0 %v2588
        %2613 = vmatpush.bf16.msra.mxu0 %v2586
        %2614 = vmatpush.bf16.msra.mxu0 %v2584
        %2615 = vmatmul.bf16.gmra.mxu0 %v2596
        %v2616 = vpop.f32.mrf.mxu0
        %v2617 = vadd.f32 0.0, %v2616
        %v2618 = vpop.f32.mrf.mxu0
        %v2619 = vadd.f32 0.0, %v2618
        %2620 = vmatmul.bf16.gmra.mxu0 %v2599
        %v2621 = vpop.f32.mrf.mxu0
        %v2622 = vadd.f32 0.0, %v2621
        %v2623 = vpop.f32.mrf.mxu0
        %v2624 = vadd.f32 0.0, %v2623
        %2625 = vmatmul.bf16.gmra.mxu0 %v2602
        %v2626 = vpop.f32.mrf.mxu0
        %v2627 = vadd.f32 0.0, %v2626
        %v2628 = vpop.f32.mrf.mxu0
        %v2629 = vadd.f32 0.0, %v2628
        %2630 = vmatmul.bf16.gmra.mxu0 %v2605
        %v2631 = vpop.f32.mrf.mxu0
        %v2632 = vadd.f32 0.0, %v2631
        %v2633 = vpop.f32.mrf.mxu0
        %v2634 = vadd.f32 0.0, %v2633
        %2635 = vdwg.mxu0
        %v2644 = vunpack.c.l.b16 %v2409
        %v2645 = vunpack.c.l.b16 %v2410
        %v2646 = vunpack.c.l.b16 %v2411
        %v2647 = vunpack.c.l.b16 %v2412
        %v2648 = vunpack.c.l.b16 %v2413
        %v2649 = vunpack.c.l.b16 %v2414
        %v2650 = vunpack.c.l.b16 %v2415
        %v2651 = vunpack.c.l.b16 %v2416
        %v2652 = vpack.c.b16 %v2645, %v2644
        %v2653 = vpack.c.b16 %v2647, %v2646
        %v2654 = vpack.c.b16 %v2649, %v2648
        %v2655 = vpack.c.b16 %v2651, %v2650
        %2656 = vrot.lane.b32.xlu0 %v1691, 96
        %v2657 = vpop.permute.xlu0 %2656
        %2658 = vrot.lane.b32.xlu0 %v1692, 96
        %v2659 = vpop.permute.xlu0 %2658
        %2660 = vrot.lane.b32.xlu0 %v1693, 96
        %v2661 = vpop.permute.xlu0 %2660
        %2662 = vrot.lane.b32.xlu0 %v1694, 96
        %v2663 = vpop.permute.xlu0 %2662
        %v2669 = vsel %vm983, %v2652, 0
        %v2672 = vsel %vm983, %v2653, 0
        %v2675 = vsel %vm983, %v2654, 0
        %v2678 = vsel %vm983, %v2655, 0
        %2680 = vmatpush.bf16.msra.mxu0 0
        %2681 = vmatpush.bf16.msra.mxu0 0
        %2682 = vmatpush.bf16.msra.mxu0 0
        %2683 = vmatpush.bf16.msra.mxu0 0
        %2684 = vmatpush.bf16.msra.mxu0 %v2663
        %2685 = vmatpush.bf16.msra.mxu0 %v2661
        %2686 = vmatpush.bf16.msra.mxu0 %v2659
        %2687 = vmatpush.bf16.msra.mxu0 %v2657
        %2688 = vmatmul.bf16.gmra.mxu0 %v2669
        %v2689 = vpop.f32.mrf.mxu0
        %v2690 = vadd.f32 0.0, %v2689
        %v2691 = vpop.f32.mrf.mxu0
        %v2692 = vadd.f32 0.0, %v2691
        %2693 = vmatmul.bf16.gmra.mxu0 %v2672
        %v2694 = vpop.f32.mrf.mxu0
        %v2695 = vadd.f32 0.0, %v2694
        %v2696 = vpop.f32.mrf.mxu0
        %v2697 = vadd.f32 0.0, %v2696
        %2698 = vmatmul.bf16.gmra.mxu0 %v2675
        %v2699 = vpop.f32.mrf.mxu0
        %v2700 = vadd.f32 0.0, %v2699
        %v2701 = vpop.f32.mrf.mxu0
        %v2702 = vadd.f32 0.0, %v2701
        %2703 = vmatmul.bf16.gmra.mxu0 %v2678
        %v2704 = vpop.f32.mrf.mxu0
        %v2705 = vadd.f32 0.0, %v2704
        %v2706 = vpop.f32.mrf.mxu0
        %v2707 = vadd.f32 0.0, %v2706
        %2708 = vdwg.mxu0
        %s2709 = scalar_lea.vmem %s3, 64
        %v2710 = vld [vmem:[%s2709] sm:$0xf]
        %v2711 = vld [vmem:[%s2709 + $0x4] sm:$0xf]
        %v2712 = vld [vmem:[%s2709 + $0x8] sm:$0xf]
        %v2713 = vld [vmem:[%s2709 + $0xc] sm:$0xf]
        %v2714 = vld [vmem:[%s2709 + $0x10] sm:$0xf]
        %v2715 = vld [vmem:[%s2709 + $0x14] sm:$0xf]
        %v2716 = vld [vmem:[%s2709 + $0x18] sm:$0xf]
        %v2717 = vld [vmem:[%s2709 + $0x1c] sm:$0xf]
        %v2718 = vunpack.c.l.bf16 %v2710
        %v2719 = vunpack.c.l.bf16 %v2711
        %v2720 = vunpack.c.l.bf16 %v2712
        %v2721 = vunpack.c.l.bf16 %v2713
        %v2722 = vunpack.c.l.bf16 %v2714
        %v2723 = vunpack.c.l.bf16 %v2715
        %v2724 = vunpack.c.l.bf16 %v2716
        %v2725 = vunpack.c.l.bf16 %v2717
        %2726 = vrot.lane.b32.xlu0 %v675, 96
        %v2727 = vpop.permute.xlu0 %2726
        %2728 = vrot.lane.b32.xlu0 %v676, 96
        %v2729 = vpop.permute.xlu0 %2728
        %2730 = vrot.lane.b32.xlu0 %v677, 96
        %v2731 = vpop.permute.xlu0 %2730
        %2732 = vrot.lane.b32.xlu0 %v678, 96
        %v2733 = vpop.permute.xlu0 %2732
        %2734 = vrot.lane.b32.xlu0 %v675, 32
        %v2735 = vpop.permute.xlu0 %2734
        %2736 = vrot.lane.b32.xlu0 %v676, 32
        %v2737 = vpop.permute.xlu0 %2736
        %2738 = vrot.lane.b32.xlu0 %v677, 32
        %v2739 = vpop.permute.xlu0 %2738
        %2740 = vrot.lane.b32.xlu0 %v678, 32
        %v2741 = vpop.permute.xlu0 %2740
        %v2743 = vsel %vm384, %v2727, 0
        %v2746 = vsel %vm384, %v2729, 0
        %v2749 = vsel %vm384, %v2731, 0
        %v2752 = vsel %vm384, %v2733, 0
        %v2755 = vsel %vm384, %v2735, 0
        %v2758 = vsel %vm384, %v2737, 0
        %v2761 = vsel %vm384, %v2739, 0
        %v2764 = vsel %vm384, %v2741, 0
        %2766 = vmatpush.bf16.xpose.msra.mxu0 0
        %2767 = vmatpush.bf16.xpose.msra.mxu0 0
        %2768 = vmatpush.bf16.xpose.msra.mxu0 0
        %2769 = vmatpush.bf16.xpose.msra.mxu0 0
        %2770 = vmatpush.bf16.xpose.msra.mxu0 %v2764
        %2771 = vmatpush.bf16.xpose.msra.mxu0 %v2761
        %2772 = vmatpush.bf16.xpose.msra.mxu0 %v2758
        %2773 = vmatpush.bf16.xpose.msra.mxu0 %v2755
        %2774 = vmatmul.bf16.gmra.mxu0 %v2743
        %v2775 = vpop.f32.mrf.mxu0
        %v2776 = vadd.f32 %v2718, %v2775
        %v2777 = vpop.f32.mrf.mxu0
        %v2778 = vadd.f32 %v2719, %v2777
        %2779 = vmatmul.bf16.gmra.mxu0 %v2746
        %v2780 = vpop.f32.mrf.mxu0
        %v2781 = vadd.f32 %v2720, %v2780
        %v2782 = vpop.f32.mrf.mxu0
        %v2783 = vadd.f32 %v2721, %v2782
        %2784 = vmatmul.bf16.gmra.mxu0 %v2749
        %v2785 = vpop.f32.mrf.mxu0
        %v2786 = vadd.f32 %v2722, %v2785
        %v2787 = vpop.f32.mrf.mxu0
        %v2788 = vadd.f32 %v2723, %v2787
        %2789 = vmatmul.bf16.gmra.mxu0 %v2752
        %v2790 = vpop.f32.mrf.mxu0
        %v2791 = vadd.f32 %v2724, %v2790
        %v2792 = vpop.f32.mrf.mxu0
        %v2793 = vadd.f32 %v2725, %v2792
        %2794 = vdwg.mxu0
        %2795 = vrot.lane.b32.xlu0 %v756, 96
        %v2796 = vpop.permute.xlu0 %2795
        %2797 = vrot.lane.b32.xlu0 %v757, 96
        %v2798 = vpop.permute.xlu0 %2797
        %2799 = vrot.lane.b32.xlu0 %v758, 96
        %v2800 = vpop.permute.xlu0 %2799
        %2801 = vrot.lane.b32.xlu0 %v759, 96
        %v2802 = vpop.permute.xlu0 %2801
        %2803 = vrot.lane.b32.xlu0 %v756, 32
        %v2804 = vpop.permute.xlu0 %2803
        %2805 = vrot.lane.b32.xlu0 %v757, 32
        %v2806 = vpop.permute.xlu0 %2805
        %2807 = vrot.lane.b32.xlu0 %v758, 32
        %v2808 = vpop.permute.xlu0 %2807
        %2809 = vrot.lane.b32.xlu0 %v759, 32
        %v2810 = vpop.permute.xlu0 %2809
        %v2812 = vsel %vm384, %v2796, 0
        %v2815 = vsel %vm384, %v2798, 0
        %v2818 = vsel %vm384, %v2800, 0
        %v2821 = vsel %vm384, %v2802, 0
        %v2824 = vsel %vm384, %v2804, 0
        %v2827 = vsel %vm384, %v2806, 0
        %v2830 = vsel %vm384, %v2808, 0
        %v2833 = vsel %vm384, %v2810, 0
        %2835 = vmatpush.bf16.xpose.msra.mxu0 0
        %2836 = vmatpush.bf16.xpose.msra.mxu0 0
        %2837 = vmatpush.bf16.xpose.msra.mxu0 0
        %2838 = vmatpush.bf16.xpose.msra.mxu0 0
        %2839 = vmatpush.bf16.xpose.msra.mxu0 %v2833
        %2840 = vmatpush.bf16.xpose.msra.mxu0 %v2830
        %2841 = vmatpush.bf16.xpose.msra.mxu0 %v2827
        %2842 = vmatpush.bf16.xpose.msra.mxu0 %v2824
        %2843 = vmatmul.bf16.gmra.mxu0 %v2812
        %v2844 = vpop.f32.mrf.mxu0
        %v2845 = vadd.f32 %v2718, %v2844
        %v2846 = vpop.f32.mrf.mxu0
        %v2847 = vadd.f32 %v2719, %v2846
        %2848 = vmatmul.bf16.gmra.mxu0 %v2815
        %v2849 = vpop.f32.mrf.mxu0
        %v2850 = vadd.f32 %v2720, %v2849
        %v2851 = vpop.f32.mrf.mxu0
        %v2852 = vadd.f32 %v2721, %v2851
        %2853 = vmatmul.bf16.gmra.mxu0 %v2818
        %v2854 = vpop.f32.mrf.mxu0
        %v2855 = vadd.f32 %v2722, %v2854
        %v2856 = vpop.f32.mrf.mxu0
        %v2857 = vadd.f32 %v2723, %v2856
        %2858 = vmatmul.bf16.gmra.mxu0 %v2821
        %v2859 = vpop.f32.mrf.mxu0
        %v2860 = vadd.f32 %v2724, %v2859
        %v2861 = vpop.f32.mrf.mxu0
        %v2862 = vadd.f32 %v2725, %v2861
        %2863 = vdwg.mxu0
        %2864 = vrot.lane.b32.xlu0 %v837, 96
        %v2865 = vpop.permute.xlu0 %2864
        %2866 = vrot.lane.b32.xlu0 %v838, 96
        %v2867 = vpop.permute.xlu0 %2866
        %2868 = vrot.lane.b32.xlu0 %v839, 96
        %v2869 = vpop.permute.xlu0 %2868
        %2870 = vrot.lane.b32.xlu0 %v840, 96
        %v2871 = vpop.permute.xlu0 %2870
        %2872 = vrot.lane.b32.xlu0 %v837, 32
        %v2873 = vpop.permute.xlu0 %2872
        %2874 = vrot.lane.b32.xlu0 %v838, 32
        %v2875 = vpop.permute.xlu0 %2874
        %2876 = vrot.lane.b32.xlu0 %v839, 32
        %v2877 = vpop.permute.xlu0 %2876
        %2878 = vrot.lane.b32.xlu0 %v840, 32
        %v2879 = vpop.permute.xlu0 %2878
        %v2881 = vsel %vm384, %v2865, 0
        %v2884 = vsel %vm384, %v2867, 0
        %v2887 = vsel %vm384, %v2869, 0
        %v2890 = vsel %vm384, %v2871, 0
        %v2893 = vsel %vm384, %v2873, 0
        %v2896 = vsel %vm384, %v2875, 0
        %v2899 = vsel %vm384, %v2877, 0
        %v2902 = vsel %vm384, %v2879, 0
        %2904 = vmatpush.bf16.xpose.msra.mxu0 0
        %2905 = vmatpush.bf16.xpose.msra.mxu0 0
        %2906 = vmatpush.bf16.xpose.msra.mxu0 0
        %2907 = vmatpush.bf16.xpose.msra.mxu0 0
        %2908 = vmatpush.bf16.xpose.msra.mxu0 %v2902
        %2909 = vmatpush.bf16.xpose.msra.mxu0 %v2899
        %2910 = vmatpush.bf16.xpose.msra.mxu0 %v2896
        %2911 = vmatpush.bf16.xpose.msra.mxu0 %v2893
        %2912 = vmatmul.bf16.gmra.mxu0 %v2881
        %v2913 = vpop.f32.mrf.mxu0
        %v2914 = vadd.f32 %v2718, %v2913
        %v2915 = vpop.f32.mrf.mxu0
        %v2916 = vadd.f32 %v2719, %v2915
        %2917 = vmatmul.bf16.gmra.mxu0 %v2884
        %v2918 = vpop.f32.mrf.mxu0
        %v2919 = vadd.f32 %v2720, %v2918
        %v2920 = vpop.f32.mrf.mxu0
        %v2921 = vadd.f32 %v2721, %v2920
        %2922 = vmatmul.bf16.gmra.mxu0 %v2887
        %v2923 = vpop.f32.mrf.mxu0
        %v2924 = vadd.f32 %v2722, %v2923
        %v2925 = vpop.f32.mrf.mxu0
        %v2926 = vadd.f32 %v2723, %v2925
        %2927 = vmatmul.bf16.gmra.mxu0 %v2890
        %v2928 = vpop.f32.mrf.mxu0
        %v2929 = vadd.f32 %v2724, %v2928
        %v2930 = vpop.f32.mrf.mxu0
        %v2931 = vadd.f32 %v2725, %v2930
        %2932 = vdwg.mxu0
        %2933 = vrot.lane.b32.xlu0 %v918, 96
        %v2934 = vpop.permute.xlu0 %2933
        %2935 = vrot.lane.b32.xlu0 %v919, 96
        %v2936 = vpop.permute.xlu0 %2935
        %2937 = vrot.lane.b32.xlu0 %v920, 96
        %v2938 = vpop.permute.xlu0 %2937
        %2939 = vrot.lane.b32.xlu0 %v921, 96
        %v2940 = vpop.permute.xlu0 %2939
        %2941 = vrot.lane.b32.xlu0 %v918, 32
        %v2942 = vpop.permute.xlu0 %2941
        %2943 = vrot.lane.b32.xlu0 %v919, 32
        %v2944 = vpop.permute.xlu0 %2943
        %2945 = vrot.lane.b32.xlu0 %v920, 32
        %v2946 = vpop.permute.xlu0 %2945
        %2947 = vrot.lane.b32.xlu0 %v921, 32
        %v2948 = vpop.permute.xlu0 %2947
        %v2950 = vsel %vm384, %v2934, 0
        %v2953 = vsel %vm384, %v2936, 0
        %v2956 = vsel %vm384, %v2938, 0
        %v2959 = vsel %vm384, %v2940, 0
        %v2962 = vsel %vm384, %v2942, 0
        %v2965 = vsel %vm384, %v2944, 0
        %v2968 = vsel %vm384, %v2946, 0
        %v2971 = vsel %vm384, %v2948, 0
        %2973 = vmatpush.bf16.xpose.msra.mxu0 0
        %2974 = vmatpush.bf16.xpose.msra.mxu0 0
        %2975 = vmatpush.bf16.xpose.msra.mxu0 0
        %2976 = vmatpush.bf16.xpose.msra.mxu0 0
        %2977 = vmatpush.bf16.xpose.msra.mxu0 %v2971
        %2978 = vmatpush.bf16.xpose.msra.mxu0 %v2968
        %2979 = vmatpush.bf16.xpose.msra.mxu0 %v2965
        %2980 = vmatpush.bf16.xpose.msra.mxu0 %v2962
        %2981 = vmatmul.bf16.gmra.mxu0 %v2950
        %v2982 = vpop.f32.mrf.mxu0
        %v2983 = vadd.f32 %v2718, %v2982
        %v2984 = vpop.f32.mrf.mxu0
        %v2985 = vadd.f32 %v2719, %v2984
        %2986 = vmatmul.bf16.gmra.mxu0 %v2953
        %v2987 = vpop.f32.mrf.mxu0
        %v2988 = vadd.f32 %v2720, %v2987
        %v2989 = vpop.f32.mrf.mxu0
        %v2990 = vadd.f32 %v2721, %v2989
        %2991 = vmatmul.bf16.gmra.mxu0 %v2956
        %v2992 = vpop.f32.mrf.mxu0
        %v2993 = vadd.f32 %v2722, %v2992
        %v2994 = vpop.f32.mrf.mxu0
        %v2995 = vadd.f32 %v2723, %v2994
        %2996 = vmatmul.bf16.gmra.mxu0 %v2959
        %v2997 = vpop.f32.mrf.mxu0
        %v2998 = vadd.f32 %v2724, %v2997
        %v2999 = vpop.f32.mrf.mxu0
        %v3000 = vadd.f32 %v2725, %v2999
        %3001 = vdwg.mxu0
        %v3002 = vsel %vm983, %v2776, -inf
        %3003 = vmax.xlane.f32.xlu0 %v3002
        %v3004 = vpop.xlane.xlu0 %3003
        %v3005 = vsel %vm983, %v2778, -inf
        %3006 = vmax.xlane.f32.xlu0 %v3005
        %v3007 = vpop.xlane.xlu0 %3006
        %v3008 = vsel %vm983, %v2781, -inf
        %3009 = vmax.xlane.f32.xlu0 %v3008
        %v3010 = vpop.xlane.xlu0 %3009
        %v3011 = vsel %vm983, %v2783, -inf
        %3012 = vmax.xlane.f32.xlu0 %v3011
        %v3013 = vpop.xlane.xlu0 %3012
        %v3014 = vsel %vm983, %v2786, -inf
        %3015 = vmax.xlane.f32.xlu0 %v3014
        %v3016 = vpop.xlane.xlu0 %3015
        %v3017 = vsel %vm983, %v2788, -inf
        %3018 = vmax.xlane.f32.xlu0 %v3017
        %v3019 = vpop.xlane.xlu0 %3018
        %v3020 = vsel %vm983, %v2791, -inf
        %3021 = vmax.xlane.f32.xlu0 %v3020
        %v3022 = vpop.xlane.xlu0 %3021
        %v3023 = vsel %vm983, %v2793, -inf
        %3024 = vmax.xlane.f32.xlu0 %v3023
        %v3025 = vpop.xlane.xlu0 %3024
        %v3026 = vsel %vm983, %v2845, -inf
        %3027 = vmax.xlane.f32.xlu0 %v3026
        %v3028 = vpop.xlane.xlu0 %3027
        %v3029 = vsel %vm983, %v2847, -inf
        %3030 = vmax.xlane.f32.xlu0 %v3029
        %v3031 = vpop.xlane.xlu0 %3030
        %v3032 = vsel %vm983, %v2850, -inf
        %3033 = vmax.xlane.f32.xlu0 %v3032
        %v3034 = vpop.xlane.xlu0 %3033
        %v3035 = vsel %vm983, %v2852, -inf
        %3036 = vmax.xlane.f32.xlu0 %v3035
        %v3037 = vpop.xlane.xlu0 %3036
        %v3038 = vsel %vm983, %v2855, -inf
        %3039 = vmax.xlane.f32.xlu0 %v3038
        %v3040 = vpop.xlane.xlu0 %3039
        %v3041 = vsel %vm983, %v2857, -inf
        %3042 = vmax.xlane.f32.xlu0 %v3041
        %v3043 = vpop.xlane.xlu0 %3042
        %v3044 = vsel %vm983, %v2860, -inf
        %3045 = vmax.xlane.f32.xlu0 %v3044
        %v3046 = vpop.xlane.xlu0 %3045
        %v3047 = vsel %vm983, %v2862, -inf
        %3048 = vmax.xlane.f32.xlu0 %v3047
        %v3049 = vpop.xlane.xlu0 %3048
        %v3050 = vsel %vm983, %v2914, -inf
        %3051 = vmax.xlane.f32.xlu0 %v3050
        %v3052 = vpop.xlane.xlu0 %3051
        %v3053 = vsel %vm983, %v2916, -inf
        %3054 = vmax.xlane.f32.xlu0 %v3053
        %v3055 = vpop.xlane.xlu0 %3054
        %v3056 = vsel %vm983, %v2919, -inf
        %3057 = vmax.xlane.f32.xlu0 %v3056
        %v3058 = vpop.xlane.xlu0 %3057
        %v3059 = vsel %vm983, %v2921, -inf
        %3060 = vmax.xlane.f32.xlu0 %v3059
        %v3061 = vpop.xlane.xlu0 %3060
        %v3062 = vsel %vm983, %v2924, -inf
        %3063 = vmax.xlane.f32.xlu0 %v3062
        %v3064 = vpop.xlane.xlu0 %3063
        %v3065 = vsel %vm983, %v2926, -inf
        %3066 = vmax.xlane.f32.xlu0 %v3065
        %v3067 = vpop.xlane.xlu0 %3066
        %v3068 = vsel %vm983, %v2929, -inf
        %3069 = vmax.xlane.f32.xlu0 %v3068
        %v3070 = vpop.xlane.xlu0 %3069
        %v3071 = vsel %vm983, %v2931, -inf
        %3072 = vmax.xlane.f32.xlu0 %v3071
        %v3073 = vpop.xlane.xlu0 %3072
        %v3074 = vsel %vm983, %v2983, -inf
        %3075 = vmax.xlane.f32.xlu0 %v3074
        %v3076 = vpop.xlane.xlu0 %3075
        %v3077 = vsel %vm983, %v2985, -inf
        %3078 = vmax.xlane.f32.xlu0 %v3077
        %v3079 = vpop.xlane.xlu0 %3078
        %v3080 = vsel %vm983, %v2988, -inf
        %3081 = vmax.xlane.f32.xlu0 %v3080
        %v3082 = vpop.xlane.xlu0 %3081
        %v3083 = vsel %vm983, %v2990, -inf
        %3084 = vmax.xlane.f32.xlu0 %v3083
        %v3085 = vpop.xlane.xlu0 %3084
        %v3086 = vsel %vm983, %v2993, -inf
        %3087 = vmax.xlane.f32.xlu0 %v3086
        %v3088 = vpop.xlane.xlu0 %3087
        %v3089 = vsel %vm983, %v2995, -inf
        %3090 = vmax.xlane.f32.xlu0 %v3089
        %v3091 = vpop.xlane.xlu0 %3090
        %v3092 = vsel %vm983, %v2998, -inf
        %3093 = vmax.xlane.f32.xlu0 %v3092
        %v3094 = vpop.xlane.xlu0 %3093
        %v3095 = vsel %vm983, %v3000, -inf
        %3096 = vmax.xlane.f32.xlu0 %v3095
        %v3097 = vpop.xlane.xlu0 %3096
        %v3098 = vsub.f32 %v2776, %v3004
        %v3099 = vsub.f32 %v2778, %v3007
        %v3100 = vsub.f32 %v2781, %v3010
        %v3101 = vsub.f32 %v2783, %v3013
        %v3102 = vsub.f32 %v2786, %v3016
        %v3103 = vsub.f32 %v2788, %v3019
        %v3104 = vsub.f32 %v2791, %v3022
        %v3105 = vsub.f32 %v2793, %v3025
        %v3106 = vsub.f32 %v2845, %v3028
        %v3107 = vsub.f32 %v2847, %v3031
        %v3108 = vsub.f32 %v2850, %v3034
        %v3109 = vsub.f32 %v2852, %v3037
        %v3110 = vsub.f32 %v2855, %v3040
        %v3111 = vsub.f32 %v2857, %v3043
        %v3112 = vsub.f32 %v2860, %v3046
        %v3113 = vsub.f32 %v2862, %v3049
        %v3114 = vsub.f32 %v2914, %v3052
        %v3115 = vsub.f32 %v2916, %v3055
        %v3116 = vsub.f32 %v2919, %v3058
        %v3117 = vsub.f32 %v2921, %v3061
        %v3118 = vsub.f32 %v2924, %v3064
        %v3119 = vsub.f32 %v2926, %v3067
        %v3120 = vsub.f32 %v2929, %v3070
        %v3121 = vsub.f32 %v2931, %v3073
        %v3122 = vsub.f32 %v2983, %v3076
        %v3123 = vsub.f32 %v2985, %v3079
        %v3124 = vsub.f32 %v2988, %v3082
        %v3125 = vsub.f32 %v2990, %v3085
        %v3126 = vsub.f32 %v2993, %v3088
        %v3127 = vsub.f32 %v2995, %v3091
        %v3128 = vsub.f32 %v2998, %v3094
        %v3129 = vsub.f32 %v3000, %v3097
        %v3130 = vmul.f32 %v3098, 1.442695
        %v3131 = vpow.pop %v3130
        %v3132 = vmul.f32 %v3099, 1.442695
        %v3133 = vpow.pop %v3132
        %v3134 = vmul.f32 %v3100, 1.442695
        %v3135 = vpow.pop %v3134
        %v3136 = vmul.f32 %v3101, 1.442695
        %v3137 = vpow.pop %v3136
        %v3138 = vmul.f32 %v3102, 1.442695
        %v3139 = vpow.pop %v3138
        %v3140 = vmul.f32 %v3103, 1.442695
        %v3141 = vpow.pop %v3140
        %v3142 = vmul.f32 %v3104, 1.442695
        %v3143 = vpow.pop %v3142
        %v3144 = vmul.f32 %v3105, 1.442695
        %v3145 = vpow.pop %v3144
        %v3146 = vmul.f32 %v3106, 1.442695
        %v3147 = vpow.pop %v3146
        %v3148 = vmul.f32 %v3107, 1.442695
        %v3149 = vpow.pop %v3148
        %v3150 = vmul.f32 %v3108, 1.442695
        %v3151 = vpow.pop %v3150
        %v3152 = vmul.f32 %v3109, 1.442695
        %v3153 = vpow.pop %v3152
        %v3154 = vmul.f32 %v3110, 1.442695
        %v3155 = vpow.pop %v3154
        %v3156 = vmul.f32 %v3111, 1.442695
        %v3157 = vpow.pop %v3156
        %v3158 = vmul.f32 %v3112, 1.442695
        %v3159 = vpow.pop %v3158
        %v3160 = vmul.f32 %v3113, 1.442695
        %v3161 = vpow.pop %v3160
        %v3162 = vmul.f32 %v3114, 1.442695
        %v3163 = vpow.pop %v3162
        %v3164 = vmul.f32 %v3115, 1.442695
        %v3165 = vpow.pop %v3164
        %v3166 = vmul.f32 %v3116, 1.442695
        %v3167 = vpow.pop %v3166
        %v3168 = vmul.f32 %v3117, 1.442695
        %v3169 = vpow.pop %v3168
        %v3170 = vmul.f32 %v3118, 1.442695
        %v3171 = vpow.pop %v3170
        %v3172 = vmul.f32 %v3119, 1.442695
        %v3173 = vpow.pop %v3172
        %v3174 = vmul.f32 %v3120, 1.442695
        %v3175 = vpow.pop %v3174
        %v3176 = vmul.f32 %v3121, 1.442695
        %v3177 = vpow.pop %v3176
        %v3178 = vmul.f32 %v3122, 1.442695
        %v3179 = vpow.pop %v3178
        %v3180 = vmul.f32 %v3123, 1.442695
        %v3181 = vpow.pop %v3180
        %v3182 = vmul.f32 %v3124, 1.442695
        %v3183 = vpow.pop %v3182
        %v3184 = vmul.f32 %v3125, 1.442695
        %v3185 = vpow.pop %v3184
        %v3186 = vmul.f32 %v3126, 1.442695
        %v3187 = vpow.pop %v3186
        %v3188 = vmul.f32 %v3127, 1.442695
        %v3189 = vpow.pop %v3188
        %v3190 = vmul.f32 %v3128, 1.442695
        %v3191 = vpow.pop %v3190
        %v3192 = vmul.f32 %v3129, 1.442695
        %v3193 = vpow.pop %v3192
        %v3194 = vsel %vm983, %v3131, 0.0
        %3195 = vadd.xlane.f32.xlu0 %v3194
        %v3196 = vpop.xlane.xlu0 %3195
        %v3197 = vsel %vm983, %v3133, 0.0
        %3198 = vadd.xlane.f32.xlu0 %v3197
        %v3199 = vpop.xlane.xlu0 %3198
        %v3200 = vsel %vm983, %v3135, 0.0
        %3201 = vadd.xlane.f32.xlu0 %v3200
        %v3202 = vpop.xlane.xlu0 %3201
        %v3203 = vsel %vm983, %v3137, 0.0
        %3204 = vadd.xlane.f32.xlu0 %v3203
        %v3205 = vpop.xlane.xlu0 %3204
        %v3206 = vsel %vm983, %v3139, 0.0
        %3207 = vadd.xlane.f32.xlu0 %v3206
        %v3208 = vpop.xlane.xlu0 %3207
        %v3209 = vsel %vm983, %v3141, 0.0
        %3210 = vadd.xlane.f32.xlu0 %v3209
        %v3211 = vpop.xlane.xlu0 %3210
        %v3212 = vsel %vm983, %v3143, 0.0
        %3213 = vadd.xlane.f32.xlu0 %v3212
        %v3214 = vpop.xlane.xlu0 %3213
        %v3215 = vsel %vm983, %v3145, 0.0
        %3216 = vadd.xlane.f32.xlu0 %v3215
        %v3217 = vpop.xlane.xlu0 %3216
        %v3218 = vsel %vm983, %v3147, 0.0
        %3219 = vadd.xlane.f32.xlu0 %v3218
        %v3220 = vpop.xlane.xlu0 %3219
        %v3221 = vsel %vm983, %v3149, 0.0
        %3222 = vadd.xlane.f32.xlu0 %v3221
        %v3223 = vpop.xlane.xlu0 %3222
        %v3224 = vsel %vm983, %v3151, 0.0
        %3225 = vadd.xlane.f32.xlu0 %v3224
        %v3226 = vpop.xlane.xlu0 %3225
        %v3227 = vsel %vm983, %v3153, 0.0
        %3228 = vadd.xlane.f32.xlu0 %v3227
        %v3229 = vpop.xlane.xlu0 %3228
        %v3230 = vsel %vm983, %v3155, 0.0
        %3231 = vadd.xlane.f32.xlu0 %v3230
        %v3232 = vpop.xlane.xlu0 %3231
        %v3233 = vsel %vm983, %v3157, 0.0
        %3234 = vadd.xlane.f32.xlu0 %v3233
        %v3235 = vpop.xlane.xlu0 %3234
        %v3236 = vsel %vm983, %v3159, 0.0
        %3237 = vadd.xlane.f32.xlu0 %v3236
        %v3238 = vpop.xlane.xlu0 %3237
        %v3239 = vsel %vm983, %v3161, 0.0
        %3240 = vadd.xlane.f32.xlu0 %v3239
        %v3241 = vpop.xlane.xlu0 %3240
        %v3242 = vsel %vm983, %v3163, 0.0
        %3243 = vadd.xlane.f32.xlu0 %v3242
        %v3244 = vpop.xlane.xlu0 %3243
        %v3245 = vsel %vm983, %v3165, 0.0
        %3246 = vadd.xlane.f32.xlu0 %v3245
        %v3247 = vpop.xlane.xlu0 %3246
        %v3248 = vsel %vm983, %v3167, 0.0
        %3249 = vadd.xlane.f32.xlu0 %v3248
        %v3250 = vpop.xlane.xlu0 %3249
        %v3251 = vsel %vm983, %v3169, 0.0
        %3252 = vadd.xlane.f32.xlu0 %v3251
        %v3253 = vpop.xlane.xlu0 %3252
        %v3254 = vsel %vm983, %v3171, 0.0
        %3255 = vadd.xlane.f32.xlu0 %v3254
        %v3256 = vpop.xlane.xlu0 %3255
        %v3257 = vsel %vm983, %v3173, 0.0
        %3258 = vadd.xlane.f32.xlu0 %v3257
        %v3259 = vpop.xlane.xlu0 %3258
        %v3260 = vsel %vm983, %v3175, 0.0
        %3261 = vadd.xlane.f32.xlu0 %v3260
        %v3262 = vpop.xlane.xlu0 %3261
        %v3263 = vsel %vm983, %v3177, 0.0
        %3264 = vadd.xlane.f32.xlu0 %v3263
        %v3265 = vpop.xlane.xlu0 %3264
        %v3266 = vsel %vm983, %v3179, 0.0
        %3267 = vadd.xlane.f32.xlu0 %v3266
        %v3268 = vpop.xlane.xlu0 %3267
        %v3269 = vsel %vm983, %v3181, 0.0
        %3270 = vadd.xlane.f32.xlu0 %v3269
        %v3271 = vpop.xlane.xlu0 %3270
        %v3272 = vsel %vm983, %v3183, 0.0
        %3273 = vadd.xlane.f32.xlu0 %v3272
        %v3274 = vpop.xlane.xlu0 %3273
        %v3275 = vsel %vm983, %v3185, 0.0
        %3276 = vadd.xlane.f32.xlu0 %v3275
        %v3277 = vpop.xlane.xlu0 %3276
        %v3278 = vsel %vm983, %v3187, 0.0
        %3279 = vadd.xlane.f32.xlu0 %v3278
        %v3280 = vpop.xlane.xlu0 %3279
        %v3281 = vsel %vm983, %v3189, 0.0
        %3282 = vadd.xlane.f32.xlu0 %v3281
        %v3283 = vpop.xlane.xlu0 %3282
        %v3284 = vsel %vm983, %v3191, 0.0
        %3285 = vadd.xlane.f32.xlu0 %v3284
        %v3286 = vpop.xlane.xlu0 %3285
        %v3287 = vsel %vm983, %v3193, 0.0
        %3288 = vadd.xlane.f32.xlu0 %v3287
        %v3289 = vpop.xlane.xlu0 %3288
        %v3290 = vrcp.pop %v3196
        %v3291 = vrcp.pop %v3199
        %v3292 = vrcp.pop %v3202
        %v3293 = vrcp.pop %v3205
        %v3294 = vrcp.pop %v3208
        %v3295 = vrcp.pop %v3211
        %v3296 = vrcp.pop %v3214
        %v3297 = vrcp.pop %v3217
        %v3298 = vrcp.pop %v3220
        %v3299 = vrcp.pop %v3223
        %v3300 = vrcp.pop %v3226
        %v3301 = vrcp.pop %v3229
        %v3302 = vrcp.pop %v3232
        %v3303 = vrcp.pop %v3235
        %v3304 = vrcp.pop %v3238
        %v3305 = vrcp.pop %v3241
        %v3306 = vrcp.pop %v3244
        %v3307 = vrcp.pop %v3247
        %v3308 = vrcp.pop %v3250
        %v3309 = vrcp.pop %v3253
        %v3310 = vrcp.pop %v3256
        %v3311 = vrcp.pop %v3259
        %v3312 = vrcp.pop %v3262
        %v3313 = vrcp.pop %v3265
        %v3314 = vrcp.pop %v3268
        %v3315 = vrcp.pop %v3271
        %v3316 = vrcp.pop %v3274
        %v3317 = vrcp.pop %v3277
        %v3318 = vrcp.pop %v3280
        %v3319 = vrcp.pop %v3283
        %v3320 = vrcp.pop %v3286
        %v3321 = vrcp.pop %v3289
        %v3322 = vmul.f32 %v3131, %v3290
        %v3323 = vmul.f32 %v3133, %v3291
        %v3324 = vmul.f32 %v3135, %v3292
        %v3325 = vmul.f32 %v3137, %v3293
        %v3326 = vmul.f32 %v3139, %v3294
        %v3327 = vmul.f32 %v3141, %v3295
        %v3328 = vmul.f32 %v3143, %v3296
        %v3329 = vmul.f32 %v3145, %v3297
        %v3330 = vmul.f32 %v3147, %v3298
        %v3331 = vmul.f32 %v3149, %v3299
        %v3332 = vmul.f32 %v3151, %v3300
        %v3333 = vmul.f32 %v3153, %v3301
        %v3334 = vmul.f32 %v3155, %v3302
        %v3335 = vmul.f32 %v3157, %v3303
        %v3336 = vmul.f32 %v3159, %v3304
        %v3337 = vmul.f32 %v3161, %v3305
        %v3338 = vmul.f32 %v3163, %v3306
        %v3339 = vmul.f32 %v3165, %v3307
        %v3340 = vmul.f32 %v3167, %v3308
        %v3341 = vmul.f32 %v3169, %v3309
        %v3342 = vmul.f32 %v3171, %v3310
        %v3343 = vmul.f32 %v3173, %v3311
        %v3344 = vmul.f32 %v3175, %v3312
        %v3345 = vmul.f32 %v3177, %v3313
        %v3346 = vmul.f32 %v3179, %v3314
        %v3347 = vmul.f32 %v3181, %v3315
        %v3348 = vmul.f32 %v3183, %v3316
        %v3349 = vmul.f32 %v3185, %v3317
        %v3350 = vmul.f32 %v3187, %v3318
        %v3351 = vmul.f32 %v3189, %v3319
        %v3352 = vmul.f32 %v3191, %v3320
        %v3353 = vmul.f32 %v3193, %v3321
        %v3354 = vpack.c.bf16 %v3322, %v3322
        %v3355 = vpack.c.bf16 %v3323, %v3323
        %v3356 = vpack.c.bf16 %v3324, %v3324
        %v3357 = vpack.c.bf16 %v3325, %v3325
        %v3358 = vpack.c.bf16 %v3326, %v3326
        %v3359 = vpack.c.bf16 %v3327, %v3327
        %v3360 = vpack.c.bf16 %v3328, %v3328
        %v3361 = vpack.c.bf16 %v3329, %v3329
        %v3362 = vpack.c.bf16 %v3330, %v3330
        %v3363 = vpack.c.bf16 %v3331, %v3331
        %v3364 = vpack.c.bf16 %v3332, %v3332
        %v3365 = vpack.c.bf16 %v3333, %v3333
        %v3366 = vpack.c.bf16 %v3334, %v3334
        %v3367 = vpack.c.bf16 %v3335, %v3335
        %v3368 = vpack.c.bf16 %v3336, %v3336
        %v3369 = vpack.c.bf16 %v3337, %v3337
        %v3370 = vpack.c.bf16 %v3338, %v3338
        %v3371 = vpack.c.bf16 %v3339, %v3339
        %v3372 = vpack.c.bf16 %v3340, %v3340
        %v3373 = vpack.c.bf16 %v3341, %v3341
        %v3374 = vpack.c.bf16 %v3342, %v3342
        %v3375 = vpack.c.bf16 %v3343, %v3343
        %v3376 = vpack.c.bf16 %v3344, %v3344
        %v3377 = vpack.c.bf16 %v3345, %v3345
        %v3378 = vpack.c.bf16 %v3346, %v3346
        %v3379 = vpack.c.bf16 %v3347, %v3347
        %v3380 = vpack.c.bf16 %v3348, %v3348
        %v3381 = vpack.c.bf16 %v3349, %v3349
        %v3382 = vpack.c.bf16 %v3350, %v3350
        %v3383 = vpack.c.bf16 %v3351, %v3351
        %v3384 = vpack.c.bf16 %v3352, %v3352
        %v3385 = vpack.c.bf16 %v3353, %v3353
        %v3394 = vunpack.c.l.b16 %v3354
        %v3395 = vunpack.c.l.b16 %v3355
        %v3396 = vunpack.c.l.b16 %v3356
        %v3397 = vunpack.c.l.b16 %v3357
        %v3398 = vunpack.c.l.b16 %v3358
        %v3399 = vunpack.c.l.b16 %v3359
        %v3400 = vunpack.c.l.b16 %v3360
        %v3401 = vunpack.c.l.b16 %v3361
        %v3402 = vpack.c.b16 %v3395, %v3394
        %v3403 = vpack.c.b16 %v3397, %v3396
        %v3404 = vpack.c.b16 %v3399, %v3398
        %v3405 = vpack.c.b16 %v3401, %v3400
        %3406 = vrot.lane.b32.xlu0 %v1436, 64
        %v3407 = vpop.permute.xlu0 %3406
        %3408 = vrot.lane.b32.xlu0 %v1437, 64
        %v3409 = vpop.permute.xlu0 %3408
        %3410 = vrot.lane.b32.xlu0 %v1438, 64
        %v3411 = vpop.permute.xlu0 %3410
        %3412 = vrot.lane.b32.xlu0 %v1439, 64
        %v3413 = vpop.permute.xlu0 %3412
        %v3419 = vsel %vm983, %v3402, 0
        %v3422 = vsel %vm983, %v3403, 0
        %v3425 = vsel %vm983, %v3404, 0
        %v3428 = vsel %vm983, %v3405, 0
        %3430 = vmatpush.bf16.msra.mxu0 0
        %3431 = vmatpush.bf16.msra.mxu0 0
        %3432 = vmatpush.bf16.msra.mxu0 0
        %3433 = vmatpush.bf16.msra.mxu0 0
        %3434 = vmatpush.bf16.msra.mxu0 %v3413
        %3435 = vmatpush.bf16.msra.mxu0 %v3411
        %3436 = vmatpush.bf16.msra.mxu0 %v3409
        %3437 = vmatpush.bf16.msra.mxu0 %v3407
        %3438 = vmatmul.bf16.gmra.mxu0 %v3419
        %v3439 = vpop.f32.mrf.mxu0
        %v3440 = vadd.f32 0.0, %v3439
        %v3441 = vpop.f32.mrf.mxu0
        %v3442 = vadd.f32 0.0, %v3441
        %3443 = vmatmul.bf16.gmra.mxu0 %v3422
        %v3444 = vpop.f32.mrf.mxu0
        %v3445 = vadd.f32 0.0, %v3444
        %v3446 = vpop.f32.mrf.mxu0
        %v3447 = vadd.f32 0.0, %v3446
        %3448 = vmatmul.bf16.gmra.mxu0 %v3425
        %v3449 = vpop.f32.mrf.mxu0
        %v3450 = vadd.f32 0.0, %v3449
        %v3451 = vpop.f32.mrf.mxu0
        %v3452 = vadd.f32 0.0, %v3451
        %3453 = vmatmul.bf16.gmra.mxu0 %v3428
        %v3454 = vpop.f32.mrf.mxu0
        %v3455 = vadd.f32 0.0, %v3454
        %v3456 = vpop.f32.mrf.mxu0
        %v3457 = vadd.f32 0.0, %v3456
        %3458 = vdwg.mxu0
        %v3467 = vunpack.c.l.b16 %v3362
        %v3468 = vunpack.c.l.b16 %v3363
        %v3469 = vunpack.c.l.b16 %v3364
        %v3470 = vunpack.c.l.b16 %v3365
        %v3471 = vunpack.c.l.b16 %v3366
        %v3472 = vunpack.c.l.b16 %v3367
        %v3473 = vunpack.c.l.b16 %v3368
        %v3474 = vunpack.c.l.b16 %v3369
        %v3475 = vpack.c.b16 %v3468, %v3467
        %v3476 = vpack.c.b16 %v3470, %v3469
        %v3477 = vpack.c.b16 %v3472, %v3471
        %v3478 = vpack.c.b16 %v3474, %v3473
        %3479 = vrot.lane.b32.xlu0 %v1521, 64
        %v3480 = vpop.permute.xlu0 %3479
        %3481 = vrot.lane.b32.xlu0 %v1522, 64
        %v3482 = vpop.permute.xlu0 %3481
        %3483 = vrot.lane.b32.xlu0 %v1523, 64
        %v3484 = vpop.permute.xlu0 %3483
        %3485 = vrot.lane.b32.xlu0 %v1524, 64
        %v3486 = vpop.permute.xlu0 %3485
        %v3492 = vsel %vm983, %v3475, 0
        %v3495 = vsel %vm983, %v3476, 0
        %v3498 = vsel %vm983, %v3477, 0
        %v3501 = vsel %vm983, %v3478, 0
        %3503 = vmatpush.bf16.msra.mxu0 0
        %3504 = vmatpush.bf16.msra.mxu0 0
        %3505 = vmatpush.bf16.msra.mxu0 0
        %3506 = vmatpush.bf16.msra.mxu0 0
        %3507 = vmatpush.bf16.msra.mxu0 %v3486
        %3508 = vmatpush.bf16.msra.mxu0 %v3484
        %3509 = vmatpush.bf16.msra.mxu0 %v3482
        %3510 = vmatpush.bf16.msra.mxu0 %v3480
        %3511 = vmatmul.bf16.gmra.mxu0 %v3492
        %v3512 = vpop.f32.mrf.mxu0
        %v3513 = vadd.f32 0.0, %v3512
        %v3514 = vpop.f32.mrf.mxu0
        %v3515 = vadd.f32 0.0, %v3514
        %3516 = vmatmul.bf16.gmra.mxu0 %v3495
        %v3517 = vpop.f32.mrf.mxu0
        %v3518 = vadd.f32 0.0, %v3517
        %v3519 = vpop.f32.mrf.mxu0
        %v3520 = vadd.f32 0.0, %v3519
        %3521 = vmatmul.bf16.gmra.mxu0 %v3498
        %v3522 = vpop.f32.mrf.mxu0
        %v3523 = vadd.f32 0.0, %v3522
        %v3524 = vpop.f32.mrf.mxu0
        %v3525 = vadd.f32 0.0, %v3524
        %3526 = vmatmul.bf16.gmra.mxu0 %v3501
        %v3527 = vpop.f32.mrf.mxu0
        %v3528 = vadd.f32 0.0, %v3527
        %v3529 = vpop.f32.mrf.mxu0
        %v3530 = vadd.f32 0.0, %v3529
        %3531 = vdwg.mxu0
        %v3540 = vunpack.c.l.b16 %v3370
        %v3541 = vunpack.c.l.b16 %v3371
        %v3542 = vunpack.c.l.b16 %v3372
        %v3543 = vunpack.c.l.b16 %v3373
        %v3544 = vunpack.c.l.b16 %v3374
        %v3545 = vunpack.c.l.b16 %v3375
        %v3546 = vunpack.c.l.b16 %v3376
        %v3547 = vunpack.c.l.b16 %v3377
        %v3548 = vpack.c.b16 %v3541, %v3540
        %v3549 = vpack.c.b16 %v3543, %v3542
        %v3550 = vpack.c.b16 %v3545, %v3544
        %v3551 = vpack.c.b16 %v3547, %v3546
        %3552 = vrot.lane.b32.xlu0 %v1606, 64
        %v3553 = vpop.permute.xlu0 %3552
        %3554 = vrot.lane.b32.xlu0 %v1607, 64
        %v3555 = vpop.permute.xlu0 %3554
        %3556 = vrot.lane.b32.xlu0 %v1608, 64
        %v3557 = vpop.permute.xlu0 %3556
        %3558 = vrot.lane.b32.xlu0 %v1609, 64
        %v3559 = vpop.permute.xlu0 %3558
        %v3565 = vsel %vm983, %v3548, 0
        %v3568 = vsel %vm983, %v3549, 0
        %v3571 = vsel %vm983, %v3550, 0
        %v3574 = vsel %vm983, %v3551, 0
        %3576 = vmatpush.bf16.msra.mxu0 0
        %3577 = vmatpush.bf16.msra.mxu0 0
        %3578 = vmatpush.bf16.msra.mxu0 0
        %3579 = vmatpush.bf16.msra.mxu0 0
        %3580 = vmatpush.bf16.msra.mxu0 %v3559
        %3581 = vmatpush.bf16.msra.mxu0 %v3557
        %3582 = vmatpush.bf16.msra.mxu0 %v3555
        %3583 = vmatpush.bf16.msra.mxu0 %v3553
        %3584 = vmatmul.bf16.gmra.mxu0 %v3565
        %v3585 = vpop.f32.mrf.mxu0
        %v3586 = vadd.f32 0.0, %v3585
        %v3587 = vpop.f32.mrf.mxu0
        %v3588 = vadd.f32 0.0, %v3587
        %3589 = vmatmul.bf16.gmra.mxu0 %v3568
        %v3590 = vpop.f32.mrf.mxu0
        %v3591 = vadd.f32 0.0, %v3590
        %v3592 = vpop.f32.mrf.mxu0
        %v3593 = vadd.f32 0.0, %v3592
        %3594 = vmatmul.bf16.gmra.mxu0 %v3571
        %v3595 = vpop.f32.mrf.mxu0
        %v3596 = vadd.f32 0.0, %v3595
        %v3597 = vpop.f32.mrf.mxu0
        %v3598 = vadd.f32 0.0, %v3597
        %3599 = vmatmul.bf16.gmra.mxu0 %v3574
        %v3600 = vpop.f32.mrf.mxu0
        %v3601 = vadd.f32 0.0, %v3600
        %v3602 = vpop.f32.mrf.mxu0
        %v3603 = vadd.f32 0.0, %v3602
        %3604 = vdwg.mxu0
        %v3613 = vunpack.c.l.b16 %v3378
        %v3614 = vunpack.c.l.b16 %v3379
        %v3615 = vunpack.c.l.b16 %v3380
        %v3616 = vunpack.c.l.b16 %v3381
        %v3617 = vunpack.c.l.b16 %v3382
        %v3618 = vunpack.c.l.b16 %v3383
        %v3619 = vunpack.c.l.b16 %v3384
        %v3620 = vunpack.c.l.b16 %v3385
        %v3621 = vpack.c.b16 %v3614, %v3613
        %v3622 = vpack.c.b16 %v3616, %v3615
        %v3623 = vpack.c.b16 %v3618, %v3617
        %v3624 = vpack.c.b16 %v3620, %v3619
        %3625 = vrot.lane.b32.xlu0 %v1691, 64
        %v3626 = vpop.permute.xlu0 %3625
        %3627 = vrot.lane.b32.xlu0 %v1692, 64
        %v3628 = vpop.permute.xlu0 %3627
        %3629 = vrot.lane.b32.xlu0 %v1693, 64
        %v3630 = vpop.permute.xlu0 %3629
        %3631 = vrot.lane.b32.xlu0 %v1694, 64
        %v3632 = vpop.permute.xlu0 %3631
        %v3638 = vsel %vm983, %v3621, 0
        %v3641 = vsel %vm983, %v3622, 0
        %v3644 = vsel %vm983, %v3623, 0
        %v3647 = vsel %vm983, %v3624, 0
        %3649 = vmatpush.bf16.msra.mxu0 0
        %3650 = vmatpush.bf16.msra.mxu0 0
        %3651 = vmatpush.bf16.msra.mxu0 0
        %3652 = vmatpush.bf16.msra.mxu0 0
        %3653 = vmatpush.bf16.msra.mxu0 %v3632
        %3654 = vmatpush.bf16.msra.mxu0 %v3630
        %3655 = vmatpush.bf16.msra.mxu0 %v3628
        %3656 = vmatpush.bf16.msra.mxu0 %v3626
        %3657 = vmatmul.bf16.gmra.mxu0 %v3638
        %v3658 = vpop.f32.mrf.mxu0
        %v3659 = vadd.f32 0.0, %v3658
        %v3660 = vpop.f32.mrf.mxu0
        %v3661 = vadd.f32 0.0, %v3660
        %3662 = vmatmul.bf16.gmra.mxu0 %v3641
        %v3663 = vpop.f32.mrf.mxu0
        %v3664 = vadd.f32 0.0, %v3663
        %v3665 = vpop.f32.mrf.mxu0
        %v3666 = vadd.f32 0.0, %v3665
        %3667 = vmatmul.bf16.gmra.mxu0 %v3644
        %v3668 = vpop.f32.mrf.mxu0
        %v3669 = vadd.f32 0.0, %v3668
        %v3670 = vpop.f32.mrf.mxu0
        %v3671 = vadd.f32 0.0, %v3670
        %3672 = vmatmul.bf16.gmra.mxu0 %v3647
        %v3673 = vpop.f32.mrf.mxu0
        %v3674 = vadd.f32 0.0, %v3673
        %v3675 = vpop.f32.mrf.mxu0
        %v3676 = vadd.f32 0.0, %v3675
        %3677 = vdwg.mxu0
        %s3678 = scalar_lea.vmem %s3, 96
        %v3679 = vld [vmem:[%s3678] sm:$0xf]
        %v3680 = vld [vmem:[%s3678 + $0x4] sm:$0xf]
        %v3681 = vld [vmem:[%s3678 + $0x8] sm:$0xf]
        %v3682 = vld [vmem:[%s3678 + $0xc] sm:$0xf]
        %v3683 = vld [vmem:[%s3678 + $0x10] sm:$0xf]
        %v3684 = vld [vmem:[%s3678 + $0x14] sm:$0xf]
        %v3685 = vld [vmem:[%s3678 + $0x18] sm:$0xf]
        %v3686 = vld [vmem:[%s3678 + $0x1c] sm:$0xf]
        %v3687 = vunpack.c.l.bf16 %v3679
        %v3688 = vunpack.c.l.bf16 %v3680
        %v3689 = vunpack.c.l.bf16 %v3681
        %v3690 = vunpack.c.l.bf16 %v3682
        %v3691 = vunpack.c.l.bf16 %v3683
        %v3692 = vunpack.c.l.bf16 %v3684
        %v3693 = vunpack.c.l.bf16 %v3685
        %v3694 = vunpack.c.l.bf16 %v3686
        %3695 = vrot.lane.b32.xlu0 %v675, 80
        %v3696 = vpop.permute.xlu0 %3695
        %3697 = vrot.lane.b32.xlu0 %v676, 80
        %v3698 = vpop.permute.xlu0 %3697
        %3699 = vrot.lane.b32.xlu0 %v677, 80
        %v3700 = vpop.permute.xlu0 %3699
        %3701 = vrot.lane.b32.xlu0 %v678, 80
        %v3702 = vpop.permute.xlu0 %3701
        %3703 = vrot.lane.b32.xlu0 %v675, 16
        %v3704 = vpop.permute.xlu0 %3703
        %3705 = vrot.lane.b32.xlu0 %v676, 16
        %v3706 = vpop.permute.xlu0 %3705
        %3707 = vrot.lane.b32.xlu0 %v677, 16
        %v3708 = vpop.permute.xlu0 %3707
        %3709 = vrot.lane.b32.xlu0 %v678, 16
        %v3710 = vpop.permute.xlu0 %3709
        %v3712 = vsel %vm384, %v3696, 0
        %v3715 = vsel %vm384, %v3698, 0
        %v3718 = vsel %vm384, %v3700, 0
        %v3721 = vsel %vm384, %v3702, 0
        %v3724 = vsel %vm384, %v3704, 0
        %v3727 = vsel %vm384, %v3706, 0
        %v3730 = vsel %vm384, %v3708, 0
        %v3733 = vsel %vm384, %v3710, 0
        %3735 = vmatpush.bf16.xpose.msra.mxu0 0
        %3736 = vmatpush.bf16.xpose.msra.mxu0 0
        %3737 = vmatpush.bf16.xpose.msra.mxu0 0
        %3738 = vmatpush.bf16.xpose.msra.mxu0 0
        %3739 = vmatpush.bf16.xpose.msra.mxu0 %v3733
        %3740 = vmatpush.bf16.xpose.msra.mxu0 %v3730
        %3741 = vmatpush.bf16.xpose.msra.mxu0 %v3727
        %3742 = vmatpush.bf16.xpose.msra.mxu0 %v3724
        %3743 = vmatmul.bf16.gmra.mxu0 %v3712
        %v3744 = vpop.f32.mrf.mxu0
        %v3745 = vadd.f32 %v3687, %v3744
        %v3746 = vpop.f32.mrf.mxu0
        %v3747 = vadd.f32 %v3688, %v3746
        %3748 = vmatmul.bf16.gmra.mxu0 %v3715
        %v3749 = vpop.f32.mrf.mxu0
        %v3750 = vadd.f32 %v3689, %v3749
        %v3751 = vpop.f32.mrf.mxu0
        %v3752 = vadd.f32 %v3690, %v3751
        %3753 = vmatmul.bf16.gmra.mxu0 %v3718
        %v3754 = vpop.f32.mrf.mxu0
        %v3755 = vadd.f32 %v3691, %v3754
        %v3756 = vpop.f32.mrf.mxu0
        %v3757 = vadd.f32 %v3692, %v3756
        %3758 = vmatmul.bf16.gmra.mxu0 %v3721
        %v3759 = vpop.f32.mrf.mxu0
        %v3760 = vadd.f32 %v3693, %v3759
        %v3761 = vpop.f32.mrf.mxu0
        %v3762 = vadd.f32 %v3694, %v3761
        %3763 = vdwg.mxu0
        %3764 = vrot.lane.b32.xlu0 %v756, 80
        %v3765 = vpop.permute.xlu0 %3764
        %3766 = vrot.lane.b32.xlu0 %v757, 80
        %v3767 = vpop.permute.xlu0 %3766
        %3768 = vrot.lane.b32.xlu0 %v758, 80
        %v3769 = vpop.permute.xlu0 %3768
        %3770 = vrot.lane.b32.xlu0 %v759, 80
        %v3771 = vpop.permute.xlu0 %3770
        %3772 = vrot.lane.b32.xlu0 %v756, 16
        %v3773 = vpop.permute.xlu0 %3772
        %3774 = vrot.lane.b32.xlu0 %v757, 16
        %v3775 = vpop.permute.xlu0 %3774
        %3776 = vrot.lane.b32.xlu0 %v758, 16
        %v3777 = vpop.permute.xlu0 %3776
        %3778 = vrot.lane.b32.xlu0 %v759, 16
        %v3779 = vpop.permute.xlu0 %3778
        %v3781 = vsel %vm384, %v3765, 0
        %v3784 = vsel %vm384, %v3767, 0
        %v3787 = vsel %vm384, %v3769, 0
        %v3790 = vsel %vm384, %v3771, 0
        %v3793 = vsel %vm384, %v3773, 0
        %v3796 = vsel %vm384, %v3775, 0
        %v3799 = vsel %vm384, %v3777, 0
        %v3802 = vsel %vm384, %v3779, 0
        %3804 = vmatpush.bf16.xpose.msra.mxu0 0
        %3805 = vmatpush.bf16.xpose.msra.mxu0 0
        %3806 = vmatpush.bf16.xpose.msra.mxu0 0
        %3807 = vmatpush.bf16.xpose.msra.mxu0 0
        %3808 = vmatpush.bf16.xpose.msra.mxu0 %v3802
        %3809 = vmatpush.bf16.xpose.msra.mxu0 %v3799
        %3810 = vmatpush.bf16.xpose.msra.mxu0 %v3796
        %3811 = vmatpush.bf16.xpose.msra.mxu0 %v3793
        %3812 = vmatmul.bf16.gmra.mxu0 %v3781
        %v3813 = vpop.f32.mrf.mxu0
        %v3814 = vadd.f32 %v3687, %v3813
        %v3815 = vpop.f32.mrf.mxu0
        %v3816 = vadd.f32 %v3688, %v3815
        %3817 = vmatmul.bf16.gmra.mxu0 %v3784
        %v3818 = vpop.f32.mrf.mxu0
        %v3819 = vadd.f32 %v3689, %v3818
        %v3820 = vpop.f32.mrf.mxu0
        %v3821 = vadd.f32 %v3690, %v3820
        %3822 = vmatmul.bf16.gmra.mxu0 %v3787
        %v3823 = vpop.f32.mrf.mxu0
        %v3824 = vadd.f32 %v3691, %v3823
        %v3825 = vpop.f32.mrf.mxu0
        %v3826 = vadd.f32 %v3692, %v3825
        %3827 = vmatmul.bf16.gmra.mxu0 %v3790
        %v3828 = vpop.f32.mrf.mxu0
        %v3829 = vadd.f32 %v3693, %v3828
        %v3830 = vpop.f32.mrf.mxu0
        %v3831 = vadd.f32 %v3694, %v3830
        %3832 = vdwg.mxu0
        %3833 = vrot.lane.b32.xlu0 %v837, 80
        %v3834 = vpop.permute.xlu0 %3833
        %3835 = vrot.lane.b32.xlu0 %v838, 80
        %v3836 = vpop.permute.xlu0 %3835
        %3837 = vrot.lane.b32.xlu0 %v839, 80
        %v3838 = vpop.permute.xlu0 %3837
        %3839 = vrot.lane.b32.xlu0 %v840, 80
        %v3840 = vpop.permute.xlu0 %3839
        %3841 = vrot.lane.b32.xlu0 %v837, 16
        %v3842 = vpop.permute.xlu0 %3841
        %3843 = vrot.lane.b32.xlu0 %v838, 16
        %v3844 = vpop.permute.xlu0 %3843
        %3845 = vrot.lane.b32.xlu0 %v839, 16
        %v3846 = vpop.permute.xlu0 %3845
        %3847 = vrot.lane.b32.xlu0 %v840, 16
        %v3848 = vpop.permute.xlu0 %3847
        %v3850 = vsel %vm384, %v3834, 0
        %v3853 = vsel %vm384, %v3836, 0
        %v3856 = vsel %vm384, %v3838, 0
        %v3859 = vsel %vm384, %v3840, 0
        %v3862 = vsel %vm384, %v3842, 0
        %v3865 = vsel %vm384, %v3844, 0
        %v3868 = vsel %vm384, %v3846, 0
        %v3871 = vsel %vm384, %v3848, 0
        %3873 = vmatpush.bf16.xpose.msra.mxu0 0
        %3874 = vmatpush.bf16.xpose.msra.mxu0 0
        %3875 = vmatpush.bf16.xpose.msra.mxu0 0
        %3876 = vmatpush.bf16.xpose.msra.mxu0 0
        %3877 = vmatpush.bf16.xpose.msra.mxu0 %v3871
        %3878 = vmatpush.bf16.xpose.msra.mxu0 %v3868
        %3879 = vmatpush.bf16.xpose.msra.mxu0 %v3865
        %3880 = vmatpush.bf16.xpose.msra.mxu0 %v3862
        %3881 = vmatmul.bf16.gmra.mxu0 %v3850
        %v3882 = vpop.f32.mrf.mxu0
        %v3883 = vadd.f32 %v3687, %v3882
        %v3884 = vpop.f32.mrf.mxu0
        %v3885 = vadd.f32 %v3688, %v3884
        %3886 = vmatmul.bf16.gmra.mxu0 %v3853
        %v3887 = vpop.f32.mrf.mxu0
        %v3888 = vadd.f32 %v3689, %v3887
        %v3889 = vpop.f32.mrf.mxu0
        %v3890 = vadd.f32 %v3690, %v3889
        %3891 = vmatmul.bf16.gmra.mxu0 %v3856
        %v3892 = vpop.f32.mrf.mxu0
        %v3893 = vadd.f32 %v3691, %v3892
        %v3894 = vpop.f32.mrf.mxu0
        %v3895 = vadd.f32 %v3692, %v3894
        %3896 = vmatmul.bf16.gmra.mxu0 %v3859
        %v3897 = vpop.f32.mrf.mxu0
        %v3898 = vadd.f32 %v3693, %v3897
        %v3899 = vpop.f32.mrf.mxu0
        %v3900 = vadd.f32 %v3694, %v3899
        %3901 = vdwg.mxu0
        %3902 = vrot.lane.b32.xlu0 %v918, 80
        %v3903 = vpop.permute.xlu0 %3902
        %3904 = vrot.lane.b32.xlu0 %v919, 80
        %v3905 = vpop.permute.xlu0 %3904
        %3906 = vrot.lane.b32.xlu0 %v920, 80
        %v3907 = vpop.permute.xlu0 %3906
        %3908 = vrot.lane.b32.xlu0 %v921, 80
        %v3909 = vpop.permute.xlu0 %3908
        %3910 = vrot.lane.b32.xlu0 %v918, 16
        %v3911 = vpop.permute.xlu0 %3910
        %3912 = vrot.lane.b32.xlu0 %v919, 16
        %v3913 = vpop.permute.xlu0 %3912
        %3914 = vrot.lane.b32.xlu0 %v920, 16
        %v3915 = vpop.permute.xlu0 %3914
        %3916 = vrot.lane.b32.xlu0 %v921, 16
        %v3917 = vpop.permute.xlu0 %3916
        %v3919 = vsel %vm384, %v3903, 0
        %v3922 = vsel %vm384, %v3905, 0
        %v3925 = vsel %vm384, %v3907, 0
        %v3928 = vsel %vm384, %v3909, 0
        %v3931 = vsel %vm384, %v3911, 0
        %v3934 = vsel %vm384, %v3913, 0
        %v3937 = vsel %vm384, %v3915, 0
        %v3940 = vsel %vm384, %v3917, 0
        %3942 = vmatpush.bf16.xpose.msra.mxu0 0
        %3943 = vmatpush.bf16.xpose.msra.mxu0 0
        %3944 = vmatpush.bf16.xpose.msra.mxu0 0
        %3945 = vmatpush.bf16.xpose.msra.mxu0 0
        %3946 = vmatpush.bf16.xpose.msra.mxu0 %v3940
        %3947 = vmatpush.bf16.xpose.msra.mxu0 %v3937
        %3948 = vmatpush.bf16.xpose.msra.mxu0 %v3934
        %3949 = vmatpush.bf16.xpose.msra.mxu0 %v3931
        %3950 = vmatmul.bf16.gmra.mxu0 %v3919
        %v3951 = vpop.f32.mrf.mxu0
        %v3952 = vadd.f32 %v3687, %v3951
        %v3953 = vpop.f32.mrf.mxu0
        %v3954 = vadd.f32 %v3688, %v3953
        %3955 = vmatmul.bf16.gmra.mxu0 %v3922
        %v3956 = vpop.f32.mrf.mxu0
        %v3957 = vadd.f32 %v3689, %v3956
        %v3958 = vpop.f32.mrf.mxu0
        %v3959 = vadd.f32 %v3690, %v3958
        %3960 = vmatmul.bf16.gmra.mxu0 %v3925
        %v3961 = vpop.f32.mrf.mxu0
        %v3962 = vadd.f32 %v3691, %v3961
        %v3963 = vpop.f32.mrf.mxu0
        %v3964 = vadd.f32 %v3692, %v3963
        %3965 = vmatmul.bf16.gmra.mxu0 %v3928
        %v3966 = vpop.f32.mrf.mxu0
        %v3967 = vadd.f32 %v3693, %v3966
        %v3968 = vpop.f32.mrf.mxu0
        %v3969 = vadd.f32 %v3694, %v3968
        %3970 = vdwg.mxu0
        %v3971 = vsel %vm983, %v3745, -inf
        %3972 = vmax.xlane.f32.xlu0 %v3971
        %v3973 = vpop.xlane.xlu0 %3972
        %v3974 = vsel %vm983, %v3747, -inf
        %3975 = vmax.xlane.f32.xlu0 %v3974
        %v3976 = vpop.xlane.xlu0 %3975
        %v3977 = vsel %vm983, %v3750, -inf
        %3978 = vmax.xlane.f32.xlu0 %v3977
        %v3979 = vpop.xlane.xlu0 %3978
        %v3980 = vsel %vm983, %v3752, -inf
        %3981 = vmax.xlane.f32.xlu0 %v3980
        %v3982 = vpop.xlane.xlu0 %3981
        %v3983 = vsel %vm983, %v3755, -inf
        %3984 = vmax.xlane.f32.xlu0 %v3983
        %v3985 = vpop.xlane.xlu0 %3984
        %v3986 = vsel %vm983, %v3757, -inf
        %3987 = vmax.xlane.f32.xlu0 %v3986
        %v3988 = vpop.xlane.xlu0 %3987
        %v3989 = vsel %vm983, %v3760, -inf
        %3990 = vmax.xlane.f32.xlu0 %v3989
        %v3991 = vpop.xlane.xlu0 %3990
        %v3992 = vsel %vm983, %v3762, -inf
        %3993 = vmax.xlane.f32.xlu0 %v3992
        %v3994 = vpop.xlane.xlu0 %3993
        %v3995 = vsel %vm983, %v3814, -inf
        %3996 = vmax.xlane.f32.xlu0 %v3995
        %v3997 = vpop.xlane.xlu0 %3996
        %v3998 = vsel %vm983, %v3816, -inf
        %3999 = vmax.xlane.f32.xlu0 %v3998
        %v4000 = vpop.xlane.xlu0 %3999
        %v4001 = vsel %vm983, %v3819, -inf
        %4002 = vmax.xlane.f32.xlu0 %v4001
        %v4003 = vpop.xlane.xlu0 %4002
        %v4004 = vsel %vm983, %v3821, -inf
        %4005 = vmax.xlane.f32.xlu0 %v4004
        %v4006 = vpop.xlane.xlu0 %4005
        %v4007 = vsel %vm983, %v3824, -inf
        %4008 = vmax.xlane.f32.xlu0 %v4007
        %v4009 = vpop.xlane.xlu0 %4008
        %v4010 = vsel %vm983, %v3826, -inf
        %4011 = vmax.xlane.f32.xlu0 %v4010
        %v4012 = vpop.xlane.xlu0 %4011
        %v4013 = vsel %vm983, %v3829, -inf
        %4014 = vmax.xlane.f32.xlu0 %v4013
        %v4015 = vpop.xlane.xlu0 %4014
        %v4016 = vsel %vm983, %v3831, -inf
        %4017 = vmax.xlane.f32.xlu0 %v4016
        %v4018 = vpop.xlane.xlu0 %4017
        %v4019 = vsel %vm983, %v3883, -inf
        %4020 = vmax.xlane.f32.xlu0 %v4019
        %v4021 = vpop.xlane.xlu0 %4020
        %v4022 = vsel %vm983, %v3885, -inf
        %4023 = vmax.xlane.f32.xlu0 %v4022
        %v4024 = vpop.xlane.xlu0 %4023
        %v4025 = vsel %vm983, %v3888, -inf
        %4026 = vmax.xlane.f32.xlu0 %v4025
        %v4027 = vpop.xlane.xlu0 %4026
        %v4028 = vsel %vm983, %v3890, -inf
        %4029 = vmax.xlane.f32.xlu0 %v4028
        %v4030 = vpop.xlane.xlu0 %4029
        %v4031 = vsel %vm983, %v3893, -inf
        %4032 = vmax.xlane.f32.xlu0 %v4031
        %v4033 = vpop.xlane.xlu0 %4032
        %v4034 = vsel %vm983, %v3895, -inf
        %4035 = vmax.xlane.f32.xlu0 %v4034
        %v4036 = vpop.xlane.xlu0 %4035
        %v4037 = vsel %vm983, %v3898, -inf
        %4038 = vmax.xlane.f32.xlu0 %v4037
        %v4039 = vpop.xlane.xlu0 %4038
        %v4040 = vsel %vm983, %v3900, -inf
        %4041 = vmax.xlane.f32.xlu0 %v4040
        %v4042 = vpop.xlane.xlu0 %4041
        %v4043 = vsel %vm983, %v3952, -inf
        %4044 = vmax.xlane.f32.xlu0 %v4043
        %v4045 = vpop.xlane.xlu0 %4044
        %v4046 = vsel %vm983, %v3954, -inf
        %4047 = vmax.xlane.f32.xlu0 %v4046
        %v4048 = vpop.xlane.xlu0 %4047
        %v4049 = vsel %vm983, %v3957, -inf
        %4050 = vmax.xlane.f32.xlu0 %v4049
        %v4051 = vpop.xlane.xlu0 %4050
        %v4052 = vsel %vm983, %v3959, -inf
        %4053 = vmax.xlane.f32.xlu0 %v4052
        %v4054 = vpop.xlane.xlu0 %4053
        %v4055 = vsel %vm983, %v3962, -inf
        %4056 = vmax.xlane.f32.xlu0 %v4055
        %v4057 = vpop.xlane.xlu0 %4056
        %v4058 = vsel %vm983, %v3964, -inf
        %4059 = vmax.xlane.f32.xlu0 %v4058
        %v4060 = vpop.xlane.xlu0 %4059
        %v4061 = vsel %vm983, %v3967, -inf
        %4062 = vmax.xlane.f32.xlu0 %v4061
        %v4063 = vpop.xlane.xlu0 %4062
        %v4064 = vsel %vm983, %v3969, -inf
        %4065 = vmax.xlane.f32.xlu0 %v4064
        %v4066 = vpop.xlane.xlu0 %4065
        %v4067 = vsub.f32 %v3745, %v3973
        %v4068 = vsub.f32 %v3747, %v3976
        %v4069 = vsub.f32 %v3750, %v3979
        %v4070 = vsub.f32 %v3752, %v3982
        %v4071 = vsub.f32 %v3755, %v3985
        %v4072 = vsub.f32 %v3757, %v3988
        %v4073 = vsub.f32 %v3760, %v3991
        %v4074 = vsub.f32 %v3762, %v3994
        %v4075 = vsub.f32 %v3814, %v3997
        %v4076 = vsub.f32 %v3816, %v4000
        %v4077 = vsub.f32 %v3819, %v4003
        %v4078 = vsub.f32 %v3821, %v4006
        %v4079 = vsub.f32 %v3824, %v4009
        %v4080 = vsub.f32 %v3826, %v4012
        %v4081 = vsub.f32 %v3829, %v4015
        %v4082 = vsub.f32 %v3831, %v4018
        %v4083 = vsub.f32 %v3883, %v4021
        %v4084 = vsub.f32 %v3885, %v4024
        %v4085 = vsub.f32 %v3888, %v4027
        %v4086 = vsub.f32 %v3890, %v4030
        %v4087 = vsub.f32 %v3893, %v4033
        %v4088 = vsub.f32 %v3895, %v4036
        %v4089 = vsub.f32 %v3898, %v4039
        %v4090 = vsub.f32 %v3900, %v4042
        %v4091 = vsub.f32 %v3952, %v4045
        %v4092 = vsub.f32 %v3954, %v4048
        %v4093 = vsub.f32 %v3957, %v4051
        %v4094 = vsub.f32 %v3959, %v4054
        %v4095 = vsub.f32 %v3962, %v4057
        %v4096 = vsub.f32 %v3964, %v4060
        %v4097 = vsub.f32 %v3967, %v4063
        %v4098 = vsub.f32 %v3969, %v4066
        %v4099 = vmul.f32 %v4067, 1.442695
        %v4100 = vpow.pop %v4099
        %v4101 = vmul.f32 %v4068, 1.442695
        %v4102 = vpow.pop %v4101
        %v4103 = vmul.f32 %v4069, 1.442695
        %v4104 = vpow.pop %v4103
        %v4105 = vmul.f32 %v4070, 1.442695
        %v4106 = vpow.pop %v4105
        %v4107 = vmul.f32 %v4071, 1.442695
        %v4108 = vpow.pop %v4107
        %v4109 = vmul.f32 %v4072, 1.442695
        %v4110 = vpow.pop %v4109
        %v4111 = vmul.f32 %v4073, 1.442695
        %v4112 = vpow.pop %v4111
        %v4113 = vmul.f32 %v4074, 1.442695
        %v4114 = vpow.pop %v4113
        %v4115 = vmul.f32 %v4075, 1.442695
        %v4116 = vpow.pop %v4115
        %v4117 = vmul.f32 %v4076, 1.442695
        %v4118 = vpow.pop %v4117
        %v4119 = vmul.f32 %v4077, 1.442695
        %v4120 = vpow.pop %v4119
        %v4121 = vmul.f32 %v4078, 1.442695
        %v4122 = vpow.pop %v4121
        %v4123 = vmul.f32 %v4079, 1.442695
        %v4124 = vpow.pop %v4123
        %v4125 = vmul.f32 %v4080, 1.442695
        %v4126 = vpow.pop %v4125
        %v4127 = vmul.f32 %v4081, 1.442695
        %v4128 = vpow.pop %v4127
        %v4129 = vmul.f32 %v4082, 1.442695
        %v4130 = vpow.pop %v4129
        %v4131 = vmul.f32 %v4083, 1.442695
        %v4132 = vpow.pop %v4131
        %v4133 = vmul.f32 %v4084, 1.442695
        %v4134 = vpow.pop %v4133
        %v4135 = vmul.f32 %v4085, 1.442695
        %v4136 = vpow.pop %v4135
        %v4137 = vmul.f32 %v4086, 1.442695
        %v4138 = vpow.pop %v4137
        %v4139 = vmul.f32 %v4087, 1.442695
        %v4140 = vpow.pop %v4139
        %v4141 = vmul.f32 %v4088, 1.442695
        %v4142 = vpow.pop %v4141
        %v4143 = vmul.f32 %v4089, 1.442695
        %v4144 = vpow.pop %v4143
        %v4145 = vmul.f32 %v4090, 1.442695
        %v4146 = vpow.pop %v4145
        %v4147 = vmul.f32 %v4091, 1.442695
        %v4148 = vpow.pop %v4147
        %v4149 = vmul.f32 %v4092, 1.442695
        %v4150 = vpow.pop %v4149
        %v4151 = vmul.f32 %v4093, 1.442695
        %v4152 = vpow.pop %v4151
        %v4153 = vmul.f32 %v4094, 1.442695
        %v4154 = vpow.pop %v4153
        %v4155 = vmul.f32 %v4095, 1.442695
        %v4156 = vpow.pop %v4155
        %v4157 = vmul.f32 %v4096, 1.442695
        %v4158 = vpow.pop %v4157
        %v4159 = vmul.f32 %v4097, 1.442695
        %v4160 = vpow.pop %v4159
        %v4161 = vmul.f32 %v4098, 1.442695
        %v4162 = vpow.pop %v4161
        %v4163 = vsel %vm983, %v4100, 0.0
        %4164 = vadd.xlane.f32.xlu0 %v4163
        %v4165 = vpop.xlane.xlu0 %4164
        %v4166 = vsel %vm983, %v4102, 0.0
        %4167 = vadd.xlane.f32.xlu0 %v4166
        %v4168 = vpop.xlane.xlu0 %4167
        %v4169 = vsel %vm983, %v4104, 0.0
        %4170 = vadd.xlane.f32.xlu0 %v4169
        %v4171 = vpop.xlane.xlu0 %4170
        %v4172 = vsel %vm983, %v4106, 0.0
        %4173 = vadd.xlane.f32.xlu0 %v4172
        %v4174 = vpop.xlane.xlu0 %4173
        %v4175 = vsel %vm983, %v4108, 0.0
        %4176 = vadd.xlane.f32.xlu0 %v4175
        %v4177 = vpop.xlane.xlu0 %4176
        %v4178 = vsel %vm983, %v4110, 0.0
        %4179 = vadd.xlane.f32.xlu0 %v4178
        %v4180 = vpop.xlane.xlu0 %4179
        %v4181 = vsel %vm983, %v4112, 0.0
        %4182 = vadd.xlane.f32.xlu0 %v4181
        %v4183 = vpop.xlane.xlu0 %4182
        %v4184 = vsel %vm983, %v4114, 0.0
        %4185 = vadd.xlane.f32.xlu0 %v4184
        %v4186 = vpop.xlane.xlu0 %4185
        %v4187 = vsel %vm983, %v4116, 0.0
        %4188 = vadd.xlane.f32.xlu0 %v4187
        %v4189 = vpop.xlane.xlu0 %4188
        %v4190 = vsel %vm983, %v4118, 0.0
        %4191 = vadd.xlane.f32.xlu0 %v4190
        %v4192 = vpop.xlane.xlu0 %4191
        %v4193 = vsel %vm983, %v4120, 0.0
        %4194 = vadd.xlane.f32.xlu0 %v4193
        %v4195 = vpop.xlane.xlu0 %4194
        %v4196 = vsel %vm983, %v4122, 0.0
        %4197 = vadd.xlane.f32.xlu0 %v4196
        %v4198 = vpop.xlane.xlu0 %4197
        %v4199 = vsel %vm983, %v4124, 0.0
        %4200 = vadd.xlane.f32.xlu0 %v4199
        %v4201 = vpop.xlane.xlu0 %4200
        %v4202 = vsel %vm983, %v4126, 0.0
        %4203 = vadd.xlane.f32.xlu0 %v4202
        %v4204 = vpop.xlane.xlu0 %4203
        %v4205 = vsel %vm983, %v4128, 0.0
        %4206 = vadd.xlane.f32.xlu0 %v4205
        %v4207 = vpop.xlane.xlu0 %4206
        %v4208 = vsel %vm983, %v4130, 0.0
        %4209 = vadd.xlane.f32.xlu0 %v4208
        %v4210 = vpop.xlane.xlu0 %4209
        %v4211 = vsel %vm983, %v4132, 0.0
        %4212 = vadd.xlane.f32.xlu0 %v4211
        %v4213 = vpop.xlane.xlu0 %4212
        %v4214 = vsel %vm983, %v4134, 0.0
        %4215 = vadd.xlane.f32.xlu0 %v4214
        %v4216 = vpop.xlane.xlu0 %4215
        %v4217 = vsel %vm983, %v4136, 0.0
        %4218 = vadd.xlane.f32.xlu0 %v4217
        %v4219 = vpop.xlane.xlu0 %4218
        %v4220 = vsel %vm983, %v4138, 0.0
        %4221 = vadd.xlane.f32.xlu0 %v4220
        %v4222 = vpop.xlane.xlu0 %4221
        %v4223 = vsel %vm983, %v4140, 0.0
        %4224 = vadd.xlane.f32.xlu0 %v4223
        %v4225 = vpop.xlane.xlu0 %4224
        %v4226 = vsel %vm983, %v4142, 0.0
        %4227 = vadd.xlane.f32.xlu0 %v4226
        %v4228 = vpop.xlane.xlu0 %4227
        %v4229 = vsel %vm983, %v4144, 0.0
        %4230 = vadd.xlane.f32.xlu0 %v4229
        %v4231 = vpop.xlane.xlu0 %4230
        %v4232 = vsel %vm983, %v4146, 0.0
        %4233 = vadd.xlane.f32.xlu0 %v4232
        %v4234 = vpop.xlane.xlu0 %4233
        %v4235 = vsel %vm983, %v4148, 0.0
        %4236 = vadd.xlane.f32.xlu0 %v4235
        %v4237 = vpop.xlane.xlu0 %4236
        %v4238 = vsel %vm983, %v4150, 0.0
        %4239 = vadd.xlane.f32.xlu0 %v4238
        %v4240 = vpop.xlane.xlu0 %4239
        %v4241 = vsel %vm983, %v4152, 0.0
        %4242 = vadd.xlane.f32.xlu0 %v4241
        %v4243 = vpop.xlane.xlu0 %4242
        %v4244 = vsel %vm983, %v4154, 0.0
        %4245 = vadd.xlane.f32.xlu0 %v4244
        %v4246 = vpop.xlane.xlu0 %4245
        %v4247 = vsel %vm983, %v4156, 0.0
        %4248 = vadd.xlane.f32.xlu0 %v4247
        %v4249 = vpop.xlane.xlu0 %4248
        %v4250 = vsel %vm983, %v4158, 0.0
        %4251 = vadd.xlane.f32.xlu0 %v4250
        %v4252 = vpop.xlane.xlu0 %4251
        %v4253 = vsel %vm983, %v4160, 0.0
        %4254 = vadd.xlane.f32.xlu0 %v4253
        %v4255 = vpop.xlane.xlu0 %4254
        %v4256 = vsel %vm983, %v4162, 0.0
        %4257 = vadd.xlane.f32.xlu0 %v4256
        %v4258 = vpop.xlane.xlu0 %4257
        %v4259 = vrcp.pop %v4165
        %v4260 = vrcp.pop %v4168
        %v4261 = vrcp.pop %v4171
        %v4262 = vrcp.pop %v4174
        %v4263 = vrcp.pop %v4177
        %v4264 = vrcp.pop %v4180
        %v4265 = vrcp.pop %v4183
        %v4266 = vrcp.pop %v4186
        %v4267 = vrcp.pop %v4189
        %v4268 = vrcp.pop %v4192
        %v4269 = vrcp.pop %v4195
        %v4270 = vrcp.pop %v4198
        %v4271 = vrcp.pop %v4201
        %v4272 = vrcp.pop %v4204
        %v4273 = vrcp.pop %v4207
        %v4274 = vrcp.pop %v4210
        %v4275 = vrcp.pop %v4213
        %v4276 = vrcp.pop %v4216
        %v4277 = vrcp.pop %v4219
        %v4278 = vrcp.pop %v4222
        %v4279 = vrcp.pop %v4225
        %v4280 = vrcp.pop %v4228
        %v4281 = vrcp.pop %v4231
        %v4282 = vrcp.pop %v4234
        %v4283 = vrcp.pop %v4237
        %v4284 = vrcp.pop %v4240
        %v4285 = vrcp.pop %v4243
        %v4286 = vrcp.pop %v4246
        %v4287 = vrcp.pop %v4249
        %v4288 = vrcp.pop %v4252
        %v4289 = vrcp.pop %v4255
        %v4290 = vrcp.pop %v4258
        %v4291 = vmul.f32 %v4100, %v4259
        %v4292 = vmul.f32 %v4102, %v4260
        %v4293 = vmul.f32 %v4104, %v4261
        %v4294 = vmul.f32 %v4106, %v4262
        %v4295 = vmul.f32 %v4108, %v4263
        %v4296 = vmul.f32 %v4110, %v4264
        %v4297 = vmul.f32 %v4112, %v4265
        %v4298 = vmul.f32 %v4114, %v4266
        %v4299 = vmul.f32 %v4116, %v4267
        %v4300 = vmul.f32 %v4118, %v4268
        %v4301 = vmul.f32 %v4120, %v4269
        %v4302 = vmul.f32 %v4122, %v4270
        %v4303 = vmul.f32 %v4124, %v4271
        %v4304 = vmul.f32 %v4126, %v4272
        %v4305 = vmul.f32 %v4128, %v4273
        %v4306 = vmul.f32 %v4130, %v4274
        %v4307 = vmul.f32 %v4132, %v4275
        %v4308 = vmul.f32 %v4134, %v4276
        %v4309 = vmul.f32 %v4136, %v4277
        %v4310 = vmul.f32 %v4138, %v4278
        %v4311 = vmul.f32 %v4140, %v4279
        %v4312 = vmul.f32 %v4142, %v4280
        %v4313 = vmul.f32 %v4144, %v4281
        %v4314 = vmul.f32 %v4146, %v4282
        %v4315 = vmul.f32 %v4148, %v4283
        %v4316 = vmul.f32 %v4150, %v4284
        %v4317 = vmul.f32 %v4152, %v4285
        %v4318 = vmul.f32 %v4154, %v4286
        %v4319 = vmul.f32 %v4156, %v4287
        %v4320 = vmul.f32 %v4158, %v4288
        %v4321 = vmul.f32 %v4160, %v4289
        %v4322 = vmul.f32 %v4162, %v4290
        %v4323 = vpack.c.bf16 %v4291, %v4291
        %v4324 = vpack.c.bf16 %v4292, %v4292
        %v4325 = vpack.c.bf16 %v4293, %v4293
        %v4326 = vpack.c.bf16 %v4294, %v4294
        %v4327 = vpack.c.bf16 %v4295, %v4295
        %v4328 = vpack.c.bf16 %v4296, %v4296
        %v4329 = vpack.c.bf16 %v4297, %v4297
        %v4330 = vpack.c.bf16 %v4298, %v4298
        %v4331 = vpack.c.bf16 %v4299, %v4299
        %v4332 = vpack.c.bf16 %v4300, %v4300
        %v4333 = vpack.c.bf16 %v4301, %v4301
        %v4334 = vpack.c.bf16 %v4302, %v4302
        %v4335 = vpack.c.bf16 %v4303, %v4303
        %v4336 = vpack.c.bf16 %v4304, %v4304
        %v4337 = vpack.c.bf16 %v4305, %v4305
        %v4338 = vpack.c.bf16 %v4306, %v4306
        %v4339 = vpack.c.bf16 %v4307, %v4307
        %v4340 = vpack.c.bf16 %v4308, %v4308
        %v4341 = vpack.c.bf16 %v4309, %v4309
        %v4342 = vpack.c.bf16 %v4310, %v4310
        %v4343 = vpack.c.bf16 %v4311, %v4311
        %v4344 = vpack.c.bf16 %v4312, %v4312
        %v4345 = vpack.c.bf16 %v4313, %v4313
        %v4346 = vpack.c.bf16 %v4314, %v4314
        %v4347 = vpack.c.bf16 %v4315, %v4315
        %v4348 = vpack.c.bf16 %v4316, %v4316
        %v4349 = vpack.c.bf16 %v4317, %v4317
        %v4350 = vpack.c.bf16 %v4318, %v4318
        %v4351 = vpack.c.bf16 %v4319, %v4319
        %v4352 = vpack.c.bf16 %v4320, %v4320
        %v4353 = vpack.c.bf16 %v4321, %v4321
        %v4354 = vpack.c.bf16 %v4322, %v4322
        %v4363 = vunpack.c.l.b16 %v4323
        %v4364 = vunpack.c.l.b16 %v4324
        %v4365 = vunpack.c.l.b16 %v4325
        %v4366 = vunpack.c.l.b16 %v4326
        %v4367 = vunpack.c.l.b16 %v4327
        %v4368 = vunpack.c.l.b16 %v4328
        %v4369 = vunpack.c.l.b16 %v4329
        %v4370 = vunpack.c.l.b16 %v4330
        %v4371 = vpack.c.b16 %v4364, %v4363
        %v4372 = vpack.c.b16 %v4366, %v4365
        %v4373 = vpack.c.b16 %v4368, %v4367
        %v4374 = vpack.c.b16 %v4370, %v4369
        %4375 = vrot.lane.b32.xlu0 %v1436, 32
        %v4376 = vpop.permute.xlu0 %4375
        %4377 = vrot.lane.b32.xlu0 %v1437, 32
        %v4378 = vpop.permute.xlu0 %4377
        %4379 = vrot.lane.b32.xlu0 %v1438, 32
        %v4380 = vpop.permute.xlu0 %4379
        %4381 = vrot.lane.b32.xlu0 %v1439, 32
        %v4382 = vpop.permute.xlu0 %4381
        %v4388 = vsel %vm983, %v4371, 0
        %v4391 = vsel %vm983, %v4372, 0
        %v4394 = vsel %vm983, %v4373, 0
        %v4397 = vsel %vm983, %v4374, 0
        %4399 = vmatpush.bf16.msra.mxu0 0
        %4400 = vmatpush.bf16.msra.mxu0 0
        %4401 = vmatpush.bf16.msra.mxu0 0
        %4402 = vmatpush.bf16.msra.mxu0 0
        %4403 = vmatpush.bf16.msra.mxu0 %v4382
        %4404 = vmatpush.bf16.msra.mxu0 %v4380
        %4405 = vmatpush.bf16.msra.mxu0 %v4378
        %4406 = vmatpush.bf16.msra.mxu0 %v4376
        %4407 = vmatmul.bf16.gmra.mxu0 %v4388
        %v4408 = vpop.f32.mrf.mxu0
        %v4409 = vadd.f32 0.0, %v4408
        %v4410 = vpop.f32.mrf.mxu0
        %v4411 = vadd.f32 0.0, %v4410
        %4412 = vmatmul.bf16.gmra.mxu0 %v4391
        %v4413 = vpop.f32.mrf.mxu0
        %v4414 = vadd.f32 0.0, %v4413
        %v4415 = vpop.f32.mrf.mxu0
        %v4416 = vadd.f32 0.0, %v4415
        %4417 = vmatmul.bf16.gmra.mxu0 %v4394
        %v4418 = vpop.f32.mrf.mxu0
        %v4419 = vadd.f32 0.0, %v4418
        %v4420 = vpop.f32.mrf.mxu0
        %v4421 = vadd.f32 0.0, %v4420
        %4422 = vmatmul.bf16.gmra.mxu0 %v4397
        %v4423 = vpop.f32.mrf.mxu0
        %v4424 = vadd.f32 0.0, %v4423
        %v4425 = vpop.f32.mrf.mxu0
        %v4426 = vadd.f32 0.0, %v4425
        %4427 = vdwg.mxu0
        %v4436 = vunpack.c.l.b16 %v4331
        %v4437 = vunpack.c.l.b16 %v4332
        %v4438 = vunpack.c.l.b16 %v4333
        %v4439 = vunpack.c.l.b16 %v4334
        %v4440 = vunpack.c.l.b16 %v4335
        %v4441 = vunpack.c.l.b16 %v4336
        %v4442 = vunpack.c.l.b16 %v4337
        %v4443 = vunpack.c.l.b16 %v4338
        %v4444 = vpack.c.b16 %v4437, %v4436
        %v4445 = vpack.c.b16 %v4439, %v4438
        %v4446 = vpack.c.b16 %v4441, %v4440
        %v4447 = vpack.c.b16 %v4443, %v4442
        %4448 = vrot.lane.b32.xlu0 %v1521, 32
        %v4449 = vpop.permute.xlu0 %4448
        %4450 = vrot.lane.b32.xlu0 %v1522, 32
        %v4451 = vpop.permute.xlu0 %4450
        %4452 = vrot.lane.b32.xlu0 %v1523, 32
        %v4453 = vpop.permute.xlu0 %4452
        %4454 = vrot.lane.b32.xlu0 %v1524, 32
        %v4455 = vpop.permute.xlu0 %4454
        %v4461 = vsel %vm983, %v4444, 0
        %v4464 = vsel %vm983, %v4445, 0
        %v4467 = vsel %vm983, %v4446, 0
        %v4470 = vsel %vm983, %v4447, 0
        %4472 = vmatpush.bf16.msra.mxu0 0
        %4473 = vmatpush.bf16.msra.mxu0 0
        %4474 = vmatpush.bf16.msra.mxu0 0
        %4475 = vmatpush.bf16.msra.mxu0 0
        %4476 = vmatpush.bf16.msra.mxu0 %v4455
        %4477 = vmatpush.bf16.msra.mxu0 %v4453
        %4478 = vmatpush.bf16.msra.mxu0 %v4451
        %4479 = vmatpush.bf16.msra.mxu0 %v4449
        %4480 = vmatmul.bf16.gmra.mxu0 %v4461
        %v4481 = vpop.f32.mrf.mxu0
        %v4482 = vadd.f32 0.0, %v4481
        %v4483 = vpop.f32.mrf.mxu0
        %v4484 = vadd.f32 0.0, %v4483
        %4485 = vmatmul.bf16.gmra.mxu0 %v4464
        %v4486 = vpop.f32.mrf.mxu0
        %v4487 = vadd.f32 0.0, %v4486
        %v4488 = vpop.f32.mrf.mxu0
        %v4489 = vadd.f32 0.0, %v4488
        %4490 = vmatmul.bf16.gmra.mxu0 %v4467
        %v4491 = vpop.f32.mrf.mxu0
        %v4492 = vadd.f32 0.0, %v4491
        %v4493 = vpop.f32.mrf.mxu0
        %v4494 = vadd.f32 0.0, %v4493
        %4495 = vmatmul.bf16.gmra.mxu0 %v4470
        %v4496 = vpop.f32.mrf.mxu0
        %v4497 = vadd.f32 0.0, %v4496
        %v4498 = vpop.f32.mrf.mxu0
        %v4499 = vadd.f32 0.0, %v4498
        %4500 = vdwg.mxu0
        %v4509 = vunpack.c.l.b16 %v4339
        %v4510 = vunpack.c.l.b16 %v4340
        %v4511 = vunpack.c.l.b16 %v4341
        %v4512 = vunpack.c.l.b16 %v4342
        %v4513 = vunpack.c.l.b16 %v4343
        %v4514 = vunpack.c.l.b16 %v4344
        %v4515 = vunpack.c.l.b16 %v4345
        %v4516 = vunpack.c.l.b16 %v4346
        %v4517 = vpack.c.b16 %v4510, %v4509
        %v4518 = vpack.c.b16 %v4512, %v4511
        %v4519 = vpack.c.b16 %v4514, %v4513
        %v4520 = vpack.c.b16 %v4516, %v4515
        %4521 = vrot.lane.b32.xlu0 %v1606, 32
        %v4522 = vpop.permute.xlu0 %4521
        %4523 = vrot.lane.b32.xlu0 %v1607, 32
        %v4524 = vpop.permute.xlu0 %4523
        %4525 = vrot.lane.b32.xlu0 %v1608, 32
        %v4526 = vpop.permute.xlu0 %4525
        %4527 = vrot.lane.b32.xlu0 %v1609, 32
        %v4528 = vpop.permute.xlu0 %4527
        %v4534 = vsel %vm983, %v4517, 0
        %v4537 = vsel %vm983, %v4518, 0
        %v4540 = vsel %vm983, %v4519, 0
        %v4543 = vsel %vm983, %v4520, 0
        %4545 = vmatpush.bf16.msra.mxu0 0
        %4546 = vmatpush.bf16.msra.mxu0 0
        %4547 = vmatpush.bf16.msra.mxu0 0
        %4548 = vmatpush.bf16.msra.mxu0 0
        %4549 = vmatpush.bf16.msra.mxu0 %v4528
        %4550 = vmatpush.bf16.msra.mxu0 %v4526
        %4551 = vmatpush.bf16.msra.mxu0 %v4524
        %4552 = vmatpush.bf16.msra.mxu0 %v4522
        %4553 = vmatmul.bf16.gmra.mxu0 %v4534
        %v4554 = vpop.f32.mrf.mxu0
        %v4555 = vadd.f32 0.0, %v4554
        %v4556 = vpop.f32.mrf.mxu0
        %v4557 = vadd.f32 0.0, %v4556
        %4558 = vmatmul.bf16.gmra.mxu0 %v4537
        %v4559 = vpop.f32.mrf.mxu0
        %v4560 = vadd.f32 0.0, %v4559
        %v4561 = vpop.f32.mrf.mxu0
        %v4562 = vadd.f32 0.0, %v4561
        %4563 = vmatmul.bf16.gmra.mxu0 %v4540
        %v4564 = vpop.f32.mrf.mxu0
        %v4565 = vadd.f32 0.0, %v4564
        %v4566 = vpop.f32.mrf.mxu0
        %v4567 = vadd.f32 0.0, %v4566
        %4568 = vmatmul.bf16.gmra.mxu0 %v4543
        %v4569 = vpop.f32.mrf.mxu0
        %v4570 = vadd.f32 0.0, %v4569
        %v4571 = vpop.f32.mrf.mxu0
        %v4572 = vadd.f32 0.0, %v4571
        %4573 = vdwg.mxu0
        %v4582 = vunpack.c.l.b16 %v4347
        %v4583 = vunpack.c.l.b16 %v4348
        %v4584 = vunpack.c.l.b16 %v4349
        %v4585 = vunpack.c.l.b16 %v4350
        %v4586 = vunpack.c.l.b16 %v4351
        %v4587 = vunpack.c.l.b16 %v4352
        %v4588 = vunpack.c.l.b16 %v4353
        %v4589 = vunpack.c.l.b16 %v4354
        %v4590 = vpack.c.b16 %v4583, %v4582
        %v4591 = vpack.c.b16 %v4585, %v4584
        %v4592 = vpack.c.b16 %v4587, %v4586
        %v4593 = vpack.c.b16 %v4589, %v4588
        %4594 = vrot.lane.b32.xlu0 %v1691, 32
        %v4595 = vpop.permute.xlu0 %4594
        %4596 = vrot.lane.b32.xlu0 %v1692, 32
        %v4597 = vpop.permute.xlu0 %4596
        %4598 = vrot.lane.b32.xlu0 %v1693, 32
        %v4599 = vpop.permute.xlu0 %4598
        %4600 = vrot.lane.b32.xlu0 %v1694, 32
        %v4601 = vpop.permute.xlu0 %4600
        %v4607 = vsel %vm983, %v4590, 0
        %v4610 = vsel %vm983, %v4591, 0
        %v4613 = vsel %vm983, %v4592, 0
        %v4616 = vsel %vm983, %v4593, 0
        %4618 = vmatpush.bf16.msra.mxu0 0
        %4619 = vmatpush.bf16.msra.mxu0 0
        %4620 = vmatpush.bf16.msra.mxu0 0
        %4621 = vmatpush.bf16.msra.mxu0 0
        %4622 = vmatpush.bf16.msra.mxu0 %v4601
        %4623 = vmatpush.bf16.msra.mxu0 %v4599
        %4624 = vmatpush.bf16.msra.mxu0 %v4597
        %4625 = vmatpush.bf16.msra.mxu0 %v4595
        %4626 = vmatmul.bf16.gmra.mxu0 %v4607
        %v4627 = vpop.f32.mrf.mxu0
        %v4628 = vadd.f32 0.0, %v4627
        %v4629 = vpop.f32.mrf.mxu0
        %v4630 = vadd.f32 0.0, %v4629
        %4631 = vmatmul.bf16.gmra.mxu0 %v4610
        %v4632 = vpop.f32.mrf.mxu0
        %v4633 = vadd.f32 0.0, %v4632
        %v4634 = vpop.f32.mrf.mxu0
        %v4635 = vadd.f32 0.0, %v4634
        %4636 = vmatmul.bf16.gmra.mxu0 %v4613
        %v4637 = vpop.f32.mrf.mxu0
        %v4638 = vadd.f32 0.0, %v4637
        %v4639 = vpop.f32.mrf.mxu0
        %v4640 = vadd.f32 0.0, %v4639
        %4641 = vmatmul.bf16.gmra.mxu0 %v4616
        %v4642 = vpop.f32.mrf.mxu0
        %v4643 = vadd.f32 0.0, %v4642
        %v4644 = vpop.f32.mrf.mxu0
        %v4645 = vadd.f32 0.0, %v4644
        %4646 = vdwg.mxu0
        %4679 = vrot.lane.b32.xlu0 %v2471, 32
        %v4680 = vpop.permute.xlu0 %4679
        %4681 = vrot.lane.b32.xlu0 %v2473, 32
        %v4682 = vpop.permute.xlu0 %4681
        %4683 = vrot.lane.b32.xlu0 %v2476, 32
        %v4684 = vpop.permute.xlu0 %4683
        %4685 = vrot.lane.b32.xlu0 %v2478, 32
        %v4686 = vpop.permute.xlu0 %4685
        %4687 = vrot.lane.b32.xlu0 %v2481, 32
        %v4688 = vpop.permute.xlu0 %4687
        %4689 = vrot.lane.b32.xlu0 %v2483, 32
        %v4690 = vpop.permute.xlu0 %4689
        %4691 = vrot.lane.b32.xlu0 %v2486, 32
        %v4692 = vpop.permute.xlu0 %4691
        %4693 = vrot.lane.b32.xlu0 %v2488, 32
        %v4694 = vpop.permute.xlu0 %4693
        %4695 = vrot.lane.b32.xlu0 %v2544, 32
        %v4696 = vpop.permute.xlu0 %4695
        %4697 = vrot.lane.b32.xlu0 %v2546, 32
        %v4698 = vpop.permute.xlu0 %4697
        %4699 = vrot.lane.b32.xlu0 %v2549, 32
        %v4700 = vpop.permute.xlu0 %4699
        %4701 = vrot.lane.b32.xlu0 %v2551, 32
        %v4702 = vpop.permute.xlu0 %4701
        %4703 = vrot.lane.b32.xlu0 %v2554, 32
        %v4704 = vpop.permute.xlu0 %4703
        %4705 = vrot.lane.b32.xlu0 %v2556, 32
        %v4706 = vpop.permute.xlu0 %4705
        %4707 = vrot.lane.b32.xlu0 %v2559, 32
        %v4708 = vpop.permute.xlu0 %4707
        %4709 = vrot.lane.b32.xlu0 %v2561, 32
        %v4710 = vpop.permute.xlu0 %4709
        %4711 = vrot.lane.b32.xlu0 %v2617, 32
        %v4712 = vpop.permute.xlu0 %4711
        %4713 = vrot.lane.b32.xlu0 %v2619, 32
        %v4714 = vpop.permute.xlu0 %4713
        %4715 = vrot.lane.b32.xlu0 %v2622, 32
        %v4716 = vpop.permute.xlu0 %4715
        %4717 = vrot.lane.b32.xlu0 %v2624, 32
        %v4718 = vpop.permute.xlu0 %4717
        %4719 = vrot.lane.b32.xlu0 %v2627, 32
        %v4720 = vpop.permute.xlu0 %4719
        %4721 = vrot.lane.b32.xlu0 %v2629, 32
        %v4722 = vpop.permute.xlu0 %4721
        %4723 = vrot.lane.b32.xlu0 %v2632, 32
        %v4724 = vpop.permute.xlu0 %4723
        %4725 = vrot.lane.b32.xlu0 %v2634, 32
        %v4726 = vpop.permute.xlu0 %4725
        %4727 = vrot.lane.b32.xlu0 %v2690, 32
        %v4728 = vpop.permute.xlu0 %4727
        %4729 = vrot.lane.b32.xlu0 %v2692, 32
        %v4730 = vpop.permute.xlu0 %4729
        %4731 = vrot.lane.b32.xlu0 %v2695, 32
        %v4732 = vpop.permute.xlu0 %4731
        %4733 = vrot.lane.b32.xlu0 %v2697, 32
        %v4734 = vpop.permute.xlu0 %4733
        %4735 = vrot.lane.b32.xlu0 %v2700, 32
        %v4736 = vpop.permute.xlu0 %4735
        %4737 = vrot.lane.b32.xlu0 %v2702, 32
        %v4738 = vpop.permute.xlu0 %4737
        %4739 = vrot.lane.b32.xlu0 %v2705, 32
        %v4740 = vpop.permute.xlu0 %4739
        %4741 = vrot.lane.b32.xlu0 %v2707, 32
        %v4742 = vpop.permute.xlu0 %4741
        %4807 = vrot.lane.b32.xlu0 %v3440, 64
        %v4808 = vpop.permute.xlu0 %4807
        %4809 = vrot.lane.b32.xlu0 %v3442, 64
        %v4810 = vpop.permute.xlu0 %4809
        %4811 = vrot.lane.b32.xlu0 %v3445, 64
        %v4812 = vpop.permute.xlu0 %4811
        %4813 = vrot.lane.b32.xlu0 %v3447, 64
        %v4814 = vpop.permute.xlu0 %4813
        %4815 = vrot.lane.b32.xlu0 %v3450, 64
        %v4816 = vpop.permute.xlu0 %4815
        %4817 = vrot.lane.b32.xlu0 %v3452, 64
        %v4818 = vpop.permute.xlu0 %4817
        %4819 = vrot.lane.b32.xlu0 %v3455, 64
        %v4820 = vpop.permute.xlu0 %4819
        %4821 = vrot.lane.b32.xlu0 %v3457, 64
        %v4822 = vpop.permute.xlu0 %4821
        %4823 = vrot.lane.b32.xlu0 %v3513, 64
        %v4824 = vpop.permute.xlu0 %4823
        %4825 = vrot.lane.b32.xlu0 %v3515, 64
        %v4826 = vpop.permute.xlu0 %4825
        %4827 = vrot.lane.b32.xlu0 %v3518, 64
        %v4828 = vpop.permute.xlu0 %4827
        %4829 = vrot.lane.b32.xlu0 %v3520, 64
        %v4830 = vpop.permute.xlu0 %4829
        %4831 = vrot.lane.b32.xlu0 %v3523, 64
        %v4832 = vpop.permute.xlu0 %4831
        %4833 = vrot.lane.b32.xlu0 %v3525, 64
        %v4834 = vpop.permute.xlu0 %4833
        %4835 = vrot.lane.b32.xlu0 %v3528, 64
        %v4836 = vpop.permute.xlu0 %4835
        %4837 = vrot.lane.b32.xlu0 %v3530, 64
        %v4838 = vpop.permute.xlu0 %4837
        %4839 = vrot.lane.b32.xlu0 %v3586, 64
        %v4840 = vpop.permute.xlu0 %4839
        %4841 = vrot.lane.b32.xlu0 %v3588, 64
        %v4842 = vpop.permute.xlu0 %4841
        %4843 = vrot.lane.b32.xlu0 %v3591, 64
        %v4844 = vpop.permute.xlu0 %4843
        %4845 = vrot.lane.b32.xlu0 %v3593, 64
        %v4846 = vpop.permute.xlu0 %4845
        %4847 = vrot.lane.b32.xlu0 %v3596, 64
        %v4848 = vpop.permute.xlu0 %4847
        %4849 = vrot.lane.b32.xlu0 %v3598, 64
        %v4850 = vpop.permute.xlu0 %4849
        %4851 = vrot.lane.b32.xlu0 %v3601, 64
        %v4852 = vpop.permute.xlu0 %4851
        %4853 = vrot.lane.b32.xlu0 %v3603, 64
        %v4854 = vpop.permute.xlu0 %4853
        %4855 = vrot.lane.b32.xlu0 %v3659, 64
        %v4856 = vpop.permute.xlu0 %4855
        %4857 = vrot.lane.b32.xlu0 %v3661, 64
        %v4858 = vpop.permute.xlu0 %4857
        %4859 = vrot.lane.b32.xlu0 %v3664, 64
        %v4860 = vpop.permute.xlu0 %4859
        %4861 = vrot.lane.b32.xlu0 %v3666, 64
        %v4862 = vpop.permute.xlu0 %4861
        %4863 = vrot.lane.b32.xlu0 %v3669, 64
        %v4864 = vpop.permute.xlu0 %4863
        %4865 = vrot.lane.b32.xlu0 %v3671, 64
        %v4866 = vpop.permute.xlu0 %4865
        %4867 = vrot.lane.b32.xlu0 %v3674, 64
        %v4868 = vpop.permute.xlu0 %4867
        %4869 = vrot.lane.b32.xlu0 %v3676, 64
        %v4870 = vpop.permute.xlu0 %4869
        %4935 = vrot.lane.b32.xlu0 %v4409, 96
        %v4936 = vpop.permute.xlu0 %4935
        %4937 = vrot.lane.b32.xlu0 %v4411, 96
        %v4938 = vpop.permute.xlu0 %4937
        %4939 = vrot.lane.b32.xlu0 %v4414, 96
        %v4940 = vpop.permute.xlu0 %4939
        %4941 = vrot.lane.b32.xlu0 %v4416, 96
        %v4942 = vpop.permute.xlu0 %4941
        %4943 = vrot.lane.b32.xlu0 %v4419, 96
        %v4944 = vpop.permute.xlu0 %4943
        %4945 = vrot.lane.b32.xlu0 %v4421, 96
        %v4946 = vpop.permute.xlu0 %4945
        %4947 = vrot.lane.b32.xlu0 %v4424, 96
        %v4948 = vpop.permute.xlu0 %4947
        %4949 = vrot.lane.b32.xlu0 %v4426, 96
        %v4950 = vpop.permute.xlu0 %4949
        %4951 = vrot.lane.b32.xlu0 %v4482, 96
        %v4952 = vpop.permute.xlu0 %4951
        %4953 = vrot.lane.b32.xlu0 %v4484, 96
        %v4954 = vpop.permute.xlu0 %4953
        %4955 = vrot.lane.b32.xlu0 %v4487, 96
        %v4956 = vpop.permute.xlu0 %4955
        %4957 = vrot.lane.b32.xlu0 %v4489, 96
        %v4958 = vpop.permute.xlu0 %4957
        %4959 = vrot.lane.b32.xlu0 %v4492, 96
        %v4960 = vpop.permute.xlu0 %4959
        %4961 = vrot.lane.b32.xlu0 %v4494, 96
        %v4962 = vpop.permute.xlu0 %4961
        %4963 = vrot.lane.b32.xlu0 %v4497, 96
        %v4964 = vpop.permute.xlu0 %4963
        %4965 = vrot.lane.b32.xlu0 %v4499, 96
        %v4966 = vpop.permute.xlu0 %4965
        %4967 = vrot.lane.b32.xlu0 %v4555, 96
        %v4968 = vpop.permute.xlu0 %4967
        %4969 = vrot.lane.b32.xlu0 %v4557, 96
        %v4970 = vpop.permute.xlu0 %4969
        %4971 = vrot.lane.b32.xlu0 %v4560, 96
        %v4972 = vpop.permute.xlu0 %4971
        %4973 = vrot.lane.b32.xlu0 %v4562, 96
        %v4974 = vpop.permute.xlu0 %4973
        %4975 = vrot.lane.b32.xlu0 %v4565, 96
        %v4976 = vpop.permute.xlu0 %4975
        %4977 = vrot.lane.b32.xlu0 %v4567, 96
        %v4978 = vpop.permute.xlu0 %4977
        %4979 = vrot.lane.b32.xlu0 %v4570, 96
        %v4980 = vpop.permute.xlu0 %4979
        %4981 = vrot.lane.b32.xlu0 %v4572, 96
        %v4982 = vpop.permute.xlu0 %4981
        %4983 = vrot.lane.b32.xlu0 %v4628, 96
        %v4984 = vpop.permute.xlu0 %4983
        %4985 = vrot.lane.b32.xlu0 %v4630, 96
        %v4986 = vpop.permute.xlu0 %4985
        %4987 = vrot.lane.b32.xlu0 %v4633, 96
        %v4988 = vpop.permute.xlu0 %4987
        %4989 = vrot.lane.b32.xlu0 %v4635, 96
        %v4990 = vpop.permute.xlu0 %4989
        %4991 = vrot.lane.b32.xlu0 %v4638, 96
        %v4992 = vpop.permute.xlu0 %4991
        %4993 = vrot.lane.b32.xlu0 %v4640, 96
        %v4994 = vpop.permute.xlu0 %4993
        %4995 = vrot.lane.b32.xlu0 %v4643, 96
        %v4996 = vpop.permute.xlu0 %4995
        %4997 = vrot.lane.b32.xlu0 %v4645, 96
        %v4998 = vpop.permute.xlu0 %4997
        %vm5031 = vcmask 261120
        %v5032 = vsel %vm5031, %v1466, %v4680
        %v5033 = vsel %vm5031, %v1468, %v4682
        %v5034 = vsel %vm5031, %v1471, %v4684
        %v5035 = vsel %vm5031, %v1473, %v4686
        %v5036 = vsel %vm5031, %v1476, %v4688
        %v5037 = vsel %vm5031, %v1478, %v4690
        %v5038 = vsel %vm5031, %v1481, %v4692
        %v5039 = vsel %vm5031, %v1483, %v4694
        %v5040 = vsel %vm5031, %v1551, %v4696
        %v5041 = vsel %vm5031, %v1553, %v4698
        %v5042 = vsel %vm5031, %v1556, %v4700
        %v5043 = vsel %vm5031, %v1558, %v4702
        %v5044 = vsel %vm5031, %v1561, %v4704
        %v5045 = vsel %vm5031, %v1563, %v4706
        %v5046 = vsel %vm5031, %v1566, %v4708
        %v5047 = vsel %vm5031, %v1568, %v4710
        %v5048 = vsel %vm5031, %v1636, %v4712
        %v5049 = vsel %vm5031, %v1638, %v4714
        %v5050 = vsel %vm5031, %v1641, %v4716
        %v5051 = vsel %vm5031, %v1643, %v4718
        %v5052 = vsel %vm5031, %v1646, %v4720
        %v5053 = vsel %vm5031, %v1648, %v4722
        %v5054 = vsel %vm5031, %v1651, %v4724
        %v5055 = vsel %vm5031, %v1653, %v4726
        %v5056 = vsel %vm5031, %v1721, %v4728
        %v5057 = vsel %vm5031, %v1723, %v4730
        %v5058 = vsel %vm5031, %v1726, %v4732
        %v5059 = vsel %vm5031, %v1728, %v4734
        %v5060 = vsel %vm5031, %v1731, %v4736
        %v5061 = vsel %vm5031, %v1733, %v4738
        %v5062 = vsel %vm5031, %v1736, %v4740
        %v5063 = vsel %vm5031, %v1738, %v4742
        %v5064 = vsel %vm983, %v5032, %v4808
        %v5065 = vsel %vm983, %v5033, %v4810
        %v5066 = vsel %vm983, %v5034, %v4812
        %v5067 = vsel %vm983, %v5035, %v4814
        %v5068 = vsel %vm983, %v5036, %v4816
        %v5069 = vsel %vm983, %v5037, %v4818
        %v5070 = vsel %vm983, %v5038, %v4820
        %v5071 = vsel %vm983, %v5039, %v4822
        %v5072 = vsel %vm983, %v5040, %v4824
        %v5073 = vsel %vm983, %v5041, %v4826
        %v5074 = vsel %vm983, %v5042, %v4828
        %v5075 = vsel %vm983, %v5043, %v4830
        %v5076 = vsel %vm983, %v5044, %v4832
        %v5077 = vsel %vm983, %v5045, %v4834
        %v5078 = vsel %vm983, %v5046, %v4836
        %v5079 = vsel %vm983, %v5047, %v4838
        %v5080 = vsel %vm983, %v5048, %v4840
        %v5081 = vsel %vm983, %v5049, %v4842
        %v5082 = vsel %vm983, %v5050, %v4844
        %v5083 = vsel %vm983, %v5051, %v4846
        %v5084 = vsel %vm983, %v5052, %v4848
        %v5085 = vsel %vm983, %v5053, %v4850
        %v5086 = vsel %vm983, %v5054, %v4852
        %v5087 = vsel %vm983, %v5055, %v4854
        %v5088 = vsel %vm983, %v5056, %v4856
        %v5089 = vsel %vm983, %v5057, %v4858
        %v5090 = vsel %vm983, %v5058, %v4860
        %v5091 = vsel %vm983, %v5059, %v4862
        %v5092 = vsel %vm983, %v5060, %v4864
        %v5093 = vsel %vm983, %v5061, %v4866
        %v5094 = vsel %vm983, %v5062, %v4868
        %v5095 = vsel %vm983, %v5063, %v4870
        %vm5096 = vcmask 785408
        %v5097 = vsel %vm5096, %v5064, %v4936
        %v5098 = vsel %vm5096, %v5065, %v4938
        %v5099 = vsel %vm5096, %v5066, %v4940
        %v5100 = vsel %vm5096, %v5067, %v4942
        %v5101 = vsel %vm5096, %v5068, %v4944
        %v5102 = vsel %vm5096, %v5069, %v4946
        %v5103 = vsel %vm5096, %v5070, %v4948
        %v5104 = vsel %vm5096, %v5071, %v4950
        %v5105 = vsel %vm5096, %v5072, %v4952
        %v5106 = vsel %vm5096, %v5073, %v4954
        %v5107 = vsel %vm5096, %v5074, %v4956
        %v5108 = vsel %vm5096, %v5075, %v4958
        %v5109 = vsel %vm5096, %v5076, %v4960
        %v5110 = vsel %vm5096, %v5077, %v4962
        %v5111 = vsel %vm5096, %v5078, %v4964
        %v5112 = vsel %vm5096, %v5079, %v4966
        %v5113 = vsel %vm5096, %v5080, %v4968
        %v5114 = vsel %vm5096, %v5081, %v4970
        %v5115 = vsel %vm5096, %v5082, %v4972
        %v5116 = vsel %vm5096, %v5083, %v4974
        %v5117 = vsel %vm5096, %v5084, %v4976
        %v5118 = vsel %vm5096, %v5085, %v4978
        %v5119 = vsel %vm5096, %v5086, %v4980
        %v5120 = vsel %vm5096, %v5087, %v4982
        %v5121 = vsel %vm5096, %v5088, %v4984
        %v5122 = vsel %vm5096, %v5089, %v4986
        %v5123 = vsel %vm5096, %v5090, %v4988
        %v5124 = vsel %vm5096, %v5091, %v4990
        %v5125 = vsel %vm5096, %v5092, %v4992
        %v5126 = vsel %vm5096, %v5093, %v4994
        %v5127 = vsel %vm5096, %v5094, %v4996
        %v5128 = vsel %vm5096, %v5095, %v4998
        %v5129 = vmul.f32 %v5097, 0.5
        %v5130 = vmul.f32 %v5098, 0.5
        %v5131 = vmul.f32 %v5099, 0.5
        %v5132 = vmul.f32 %v5100, 0.5
        %v5133 = vmul.f32 %v5101, 0.5
        %v5134 = vmul.f32 %v5102, 0.5
        %v5135 = vmul.f32 %v5103, 0.5
        %v5136 = vmul.f32 %v5104, 0.5
        %v5137 = vmul.f32 %v5105, 0.5
        %v5138 = vmul.f32 %v5106, 0.5
        %v5139 = vmul.f32 %v5107, 0.5
        %v5140 = vmul.f32 %v5108, 0.5
        %v5141 = vmul.f32 %v5109, 0.5
        %v5142 = vmul.f32 %v5110, 0.5
        %v5143 = vmul.f32 %v5111, 0.5
        %v5144 = vmul.f32 %v5112, 0.5
        %v5145 = vmul.f32 %v5113, 0.5
        %v5146 = vmul.f32 %v5114, 0.5
        %v5147 = vmul.f32 %v5115, 0.5
        %v5148 = vmul.f32 %v5116, 0.5
        %v5149 = vmul.f32 %v5117, 0.5
        %v5150 = vmul.f32 %v5118, 0.5
        %v5151 = vmul.f32 %v5119, 0.5
        %v5152 = vmul.f32 %v5120, 0.5
        %v5153 = vmul.f32 %v5121, 0.5
        %v5154 = vmul.f32 %v5122, 0.5
        %v5155 = vmul.f32 %v5123, 0.5
        %v5156 = vmul.f32 %v5124, 0.5
        %v5157 = vmul.f32 %v5125, 0.5
        %v5158 = vmul.f32 %v5126, 0.5
        %v5159 = vmul.f32 %v5127, 0.5
        %v5160 = vmul.f32 %v5128, 0.5
        %v5161 = vmul.f32 %v5097, 0.70710677
        %v5162 = vmul.f32 %v5098, 0.70710677
        %v5163 = vmul.f32 %v5099, 0.70710677
        %v5164 = vmul.f32 %v5100, 0.70710677
        %v5165 = vmul.f32 %v5101, 0.70710677
        %v5166 = vmul.f32 %v5102, 0.70710677
        %v5167 = vmul.f32 %v5103, 0.70710677
        %v5168 = vmul.f32 %v5104, 0.70710677
        %v5169 = vmul.f32 %v5105, 0.70710677
        %v5170 = vmul.f32 %v5106, 0.70710677
        %v5171 = vmul.f32 %v5107, 0.70710677
        %v5172 = vmul.f32 %v5108, 0.70710677
        %v5173 = vmul.f32 %v5109, 0.70710677
        %v5174 = vmul.f32 %v5110, 0.70710677
        %v5175 = vmul.f32 %v5111, 0.70710677
        %v5176 = vmul.f32 %v5112, 0.70710677
        %v5177 = vmul.f32 %v5113, 0.70710677
        %v5178 = vmul.f32 %v5114, 0.70710677
        %v5179 = vmul.f32 %v5115, 0.70710677
        %v5180 = vmul.f32 %v5116, 0.70710677
        %v5181 = vmul.f32 %v5117, 0.70710677
        %v5182 = vmul.f32 %v5118, 0.70710677
        %v5183 = vmul.f32 %v5119, 0.70710677
        %v5184 = vmul.f32 %v5120, 0.70710677
        %v5185 = vmul.f32 %v5121, 0.70710677
        %v5186 = vmul.f32 %v5122, 0.70710677
        %v5187 = vmul.f32 %v5123, 0.70710677
        %v5188 = vmul.f32 %v5124, 0.70710677
        %v5189 = vmul.f32 %v5125, 0.70710677
        %v5190 = vmul.f32 %v5126, 0.70710677
        %v5191 = vmul.f32 %v5127, 0.70710677
        %v5192 = vmul.f32 %v5128, 0.70710677
        %v5193 = vmul.f32 %v5161, %v5161
        %v5194 = vmin.f32 16.0, %v5193
        %v5195 = vmul.f32 %v5194, 2.1237322e-06
        %v5196 = vadd.f32 %v5195, 0.00028619796
        %v5197 = vmul.f32 %v5194, %v5196
        %v5198 = vadd.f32 %v5197, 0.0036580483
        %v5199 = vmul.f32 %v5194, %v5198
        %v5200 = vadd.f32 %v5199, 0.05243302
        %v5201 = vmul.f32 %v5194, %v5200
        %v5202 = vadd.f32 %v5201, 0.18741608
        %v5203 = vmul.f32 %v5194, %v5202
        %v5204 = vadd.f32 %v5203, 1.1283791
        %v5205 = vmul.f32 %v5161, %v5204
        %v5206 = vmul.f32 %v5194, 3.8918573e-05
        %v5207 = vadd.f32 %v5206, 0.001143296
        %v5208 = vmul.f32 %v5194, %v5207
        %v5209 = vadd.f32 %v5208, 0.014752088
        %v5210 = vmul.f32 %v5194, %v5209
        %v5211 = vadd.f32 %v5210, 0.112945676
        %v5212 = vmul.f32 %v5194, %v5211
        %v5213 = vadd.f32 %v5212, 0.4994258
        %v5214 = vmul.f32 %v5194, %v5213
        %v5215 = vadd.f32 %v5214, 1.0
        %v5216 = vrcp.pop %v5215
        %v5217 = vmul.f32 %v5215, %v5216
        %v5218 = vsub.f32 1.0, %v5217
        %v5219 = vmul.f32 %v5216, %v5218
        %v5220 = vadd.f32 %v5216, %v5219
        %vm5221 = vweird.f32 %v5215
        %vm5222 = vweird.f32 %v5216
        %vm5223 = vmor %vm5221, %vm5222
        %v5224 = vsel %vm5223, %v5216, %v5220
        %v5225 = vand.u32 2147483647, %v5215
        %vm5226 = vcmp.eq.f32.partialorder %v5225, 8.507059e+37
        %v5227 = vand.u32 %v5215, 2147483648
        %v5228 = vor.u32 1.1754944e-38, %v5227
        %v5229 = vsel %vm5226, %v5228, %v5224
        %v5230 = vmul.f32 %v5205, %v5229
        %v5231 = vmin.f32 %v5230, 1.0
        %v5232 = vmax.f32 %v5231, -1.0
        %v5233 = vmul.f32 %v5162, %v5162
        %v5234 = vmin.f32 16.0, %v5233
        %v5235 = vmul.f32 %v5234, 2.1237322e-06
        %v5236 = vadd.f32 %v5235, 0.00028619796
        %v5237 = vmul.f32 %v5234, %v5236
        %v5238 = vadd.f32 %v5237, 0.0036580483
        %v5239 = vmul.f32 %v5234, %v5238
        %v5240 = vadd.f32 %v5239, 0.05243302
        %v5241 = vmul.f32 %v5234, %v5240
        %v5242 = vadd.f32 %v5241, 0.18741608
        %v5243 = vmul.f32 %v5234, %v5242
        %v5244 = vadd.f32 %v5243, 1.1283791
        %v5245 = vmul.f32 %v5162, %v5244
        %v5246 = vmul.f32 %v5234, 3.8918573e-05
        %v5247 = vadd.f32 %v5246, 0.001143296
        %v5248 = vmul.f32 %v5234, %v5247
        %v5249 = vadd.f32 %v5248, 0.014752088
        %v5250 = vmul.f32 %v5234, %v5249
        %v5251 = vadd.f32 %v5250, 0.112945676
        %v5252 = vmul.f32 %v5234, %v5251
        %v5253 = vadd.f32 %v5252, 0.4994258
        %v5254 = vmul.f32 %v5234, %v5253
        %v5255 = vadd.f32 %v5254, 1.0
        %v5256 = vrcp.pop %v5255
        %v5257 = vmul.f32 %v5255, %v5256
        %v5258 = vsub.f32 1.0, %v5257
        %v5259 = vmul.f32 %v5256, %v5258
        %v5260 = vadd.f32 %v5256, %v5259
        %vm5261 = vweird.f32 %v5255
        %vm5262 = vweird.f32 %v5256
        %vm5263 = vmor %vm5261, %vm5262
        %v5264 = vsel %vm5263, %v5256, %v5260
        %v5265 = vand.u32 2147483647, %v5255
        %vm5266 = vcmp.eq.f32.partialorder %v5265, 8.507059e+37
        %v5267 = vand.u32 %v5255, 2147483648
        %v5268 = vor.u32 1.1754944e-38, %v5267
        %v5269 = vsel %vm5266, %v5268, %v5264
        %v5270 = vmul.f32 %v5245, %v5269
        %v5271 = vmin.f32 %v5270, 1.0
        %v5272 = vmax.f32 %v5271, -1.0
        %v5273 = vmul.f32 %v5163, %v5163
        %v5274 = vmin.f32 16.0, %v5273
        %v5275 = vmul.f32 %v5274, 2.1237322e-06
        %v5276 = vadd.f32 %v5275, 0.00028619796
        %v5277 = vmul.f32 %v5274, %v5276
        %v5278 = vadd.f32 %v5277, 0.0036580483
        %v5279 = vmul.f32 %v5274, %v5278
        %v5280 = vadd.f32 %v5279, 0.05243302
        %v5281 = vmul.f32 %v5274, %v5280
        %v5282 = vadd.f32 %v5281, 0.18741608
        %v5283 = vmul.f32 %v5274, %v5282
        %v5284 = vadd.f32 %v5283, 1.1283791
        %v5285 = vmul.f32 %v5163, %v5284
        %v5286 = vmul.f32 %v5274, 3.8918573e-05
        %v5287 = vadd.f32 %v5286, 0.001143296
        %v5288 = vmul.f32 %v5274, %v5287
        %v5289 = vadd.f32 %v5288, 0.014752088
        %v5290 = vmul.f32 %v5274, %v5289
        %v5291 = vadd.f32 %v5290, 0.112945676
        %v5292 = vmul.f32 %v5274, %v5291
        %v5293 = vadd.f32 %v5292, 0.4994258
        %v5294 = vmul.f32 %v5274, %v5293
        %v5295 = vadd.f32 %v5294, 1.0
        %v5296 = vrcp.pop %v5295
        %v5297 = vmul.f32 %v5295, %v5296
        %v5298 = vsub.f32 1.0, %v5297
        %v5299 = vmul.f32 %v5296, %v5298
        %v5300 = vadd.f32 %v5296, %v5299
        %vm5301 = vweird.f32 %v5295
        %vm5302 = vweird.f32 %v5296
        %vm5303 = vmor %vm5301, %vm5302
        %v5304 = vsel %vm5303, %v5296, %v5300
        %v5305 = vand.u32 2147483647, %v5295
        %vm5306 = vcmp.eq.f32.partialorder %v5305, 8.507059e+37
        %v5307 = vand.u32 %v5295, 2147483648
        %v5308 = vor.u32 1.1754944e-38, %v5307
        %v5309 = vsel %vm5306, %v5308, %v5304
        %v5310 = vmul.f32 %v5285, %v5309
        %v5311 = vmin.f32 %v5310, 1.0
        %v5312 = vmax.f32 %v5311, -1.0
        %v5313 = vmul.f32 %v5164, %v5164
        %v5314 = vmin.f32 16.0, %v5313
        %v5315 = vmul.f32 %v5314, 2.1237322e-06
        %v5316 = vadd.f32 %v5315, 0.00028619796
        %v5317 = vmul.f32 %v5314, %v5316
        %v5318 = vadd.f32 %v5317, 0.0036580483
        %v5319 = vmul.f32 %v5314, %v5318
        %v5320 = vadd.f32 %v5319, 0.05243302
        %v5321 = vmul.f32 %v5314, %v5320
        %v5322 = vadd.f32 %v5321, 0.18741608
        %v5323 = vmul.f32 %v5314, %v5322
        %v5324 = vadd.f32 %v5323, 1.1283791
        %v5325 = vmul.f32 %v5164, %v5324
        %v5326 = vmul.f32 %v5314, 3.8918573e-05
        %v5327 = vadd.f32 %v5326, 0.001143296
        %v5328 = vmul.f32 %v5314, %v5327
        %v5329 = vadd.f32 %v5328, 0.014752088
        %v5330 = vmul.f32 %v5314, %v5329
        %v5331 = vadd.f32 %v5330, 0.112945676
        %v5332 = vmul.f32 %v5314, %v5331
        %v5333 = vadd.f32 %v5332, 0.4994258
        %v5334 = vmul.f32 %v5314, %v5333
        %v5335 = vadd.f32 %v5334, 1.0
        %v5336 = vrcp.pop %v5335
        %v5337 = vmul.f32 %v5335, %v5336
        %v5338 = vsub.f32 1.0, %v5337
        %v5339 = vmul.f32 %v5336, %v5338
        %v5340 = vadd.f32 %v5336, %v5339
        %vm5341 = vweird.f32 %v5335
        %vm5342 = vweird.f32 %v5336
        %vm5343 = vmor %vm5341, %vm5342
        %v5344 = vsel %vm5343, %v5336, %v5340
        %v5345 = vand.u32 2147483647, %v5335
        %vm5346 = vcmp.eq.f32.partialorder %v5345, 8.507059e+37
        %v5347 = vand.u32 %v5335, 2147483648
        %v5348 = vor.u32 1.1754944e-38, %v5347
        %v5349 = vsel %vm5346, %v5348, %v5344
        %v5350 = vmul.f32 %v5325, %v5349
        %v5351 = vmin.f32 %v5350, 1.0
        %v5352 = vmax.f32 %v5351, -1.0
        %v5353 = vmul.f32 %v5165, %v5165
        %v5354 = vmin.f32 16.0, %v5353
        %v5355 = vmul.f32 %v5354, 2.1237322e-06
        %v5356 = vadd.f32 %v5355, 0.00028619796
        %v5357 = vmul.f32 %v5354, %v5356
        %v5358 = vadd.f32 %v5357, 0.0036580483
        %v5359 = vmul.f32 %v5354, %v5358
        %v5360 = vadd.f32 %v5359, 0.05243302
        %v5361 = vmul.f32 %v5354, %v5360
        %v5362 = vadd.f32 %v5361, 0.18741608
        %v5363 = vmul.f32 %v5354, %v5362
        %v5364 = vadd.f32 %v5363, 1.1283791
        %v5365 = vmul.f32 %v5165, %v5364
        %v5366 = vmul.f32 %v5354, 3.8918573e-05
        %v5367 = vadd.f32 %v5366, 0.001143296
        %v5368 = vmul.f32 %v5354, %v5367
        %v5369 = vadd.f32 %v5368, 0.014752088
        %v5370 = vmul.f32 %v5354, %v5369
        %v5371 = vadd.f32 %v5370, 0.112945676
        %v5372 = vmul.f32 %v5354, %v5371
        %v5373 = vadd.f32 %v5372, 0.4994258
        %v5374 = vmul.f32 %v5354, %v5373
        %v5375 = vadd.f32 %v5374, 1.0
        %v5376 = vrcp.pop %v5375
        %v5377 = vmul.f32 %v5375, %v5376
        %v5378 = vsub.f32 1.0, %v5377
        %v5379 = vmul.f32 %v5376, %v5378
        %v5380 = vadd.f32 %v5376, %v5379
        %vm5381 = vweird.f32 %v5375
        %vm5382 = vweird.f32 %v5376
        %vm5383 = vmor %vm5381, %vm5382
        %v5384 = vsel %vm5383, %v5376, %v5380
        %v5385 = vand.u32 2147483647, %v5375
        %vm5386 = vcmp.eq.f32.partialorder %v5385, 8.507059e+37
        %v5387 = vand.u32 %v5375, 2147483648
        %v5388 = vor.u32 1.1754944e-38, %v5387
        %v5389 = vsel %vm5386, %v5388, %v5384
        %v5390 = vmul.f32 %v5365, %v5389
        %v5391 = vmin.f32 %v5390, 1.0
        %v5392 = vmax.f32 %v5391, -1.0
        %v5393 = vmul.f32 %v5166, %v5166
        %v5394 = vmin.f32 16.0, %v5393
        %v5395 = vmul.f32 %v5394, 2.1237322e-06
        %v5396 = vadd.f32 %v5395, 0.00028619796
        %v5397 = vmul.f32 %v5394, %v5396
        %v5398 = vadd.f32 %v5397, 0.0036580483
        %v5399 = vmul.f32 %v5394, %v5398
        %v5400 = vadd.f32 %v5399, 0.05243302
        %v5401 = vmul.f32 %v5394, %v5400
        %v5402 = vadd.f32 %v5401, 0.18741608
        %v5403 = vmul.f32 %v5394, %v5402
        %v5404 = vadd.f32 %v5403, 1.1283791
        %v5405 = vmul.f32 %v5166, %v5404
        %v5406 = vmul.f32 %v5394, 3.8918573e-05
        %v5407 = vadd.f32 %v5406, 0.001143296
        %v5408 = vmul.f32 %v5394, %v5407
        %v5409 = vadd.f32 %v5408, 0.014752088
        %v5410 = vmul.f32 %v5394, %v5409
        %v5411 = vadd.f32 %v5410, 0.112945676
        %v5412 = vmul.f32 %v5394, %v5411
        %v5413 = vadd.f32 %v5412, 0.4994258
        %v5414 = vmul.f32 %v5394, %v5413
        %v5415 = vadd.f32 %v5414, 1.0
        %v5416 = vrcp.pop %v5415
        %v5417 = vmul.f32 %v5415, %v5416
        %v5418 = vsub.f32 1.0, %v5417
        %v5419 = vmul.f32 %v5416, %v5418
        %v5420 = vadd.f32 %v5416, %v5419
        %vm5421 = vweird.f32 %v5415
        %vm5422 = vweird.f32 %v5416
        %vm5423 = vmor %vm5421, %vm5422
        %v5424 = vsel %vm5423, %v5416, %v5420
        %v5425 = vand.u32 2147483647, %v5415
        %vm5426 = vcmp.eq.f32.partialorder %v5425, 8.507059e+37
        %v5427 = vand.u32 %v5415, 2147483648
        %v5428 = vor.u32 1.1754944e-38, %v5427
        %v5429 = vsel %vm5426, %v5428, %v5424
        %v5430 = vmul.f32 %v5405, %v5429
        %v5431 = vmin.f32 %v5430, 1.0
        %v5432 = vmax.f32 %v5431, -1.0
        %v5433 = vmul.f32 %v5167, %v5167
        %v5434 = vmin.f32 16.0, %v5433
        %v5435 = vmul.f32 %v5434, 2.1237322e-06
        %v5436 = vadd.f32 %v5435, 0.00028619796
        %v5437 = vmul.f32 %v5434, %v5436
        %v5438 = vadd.f32 %v5437, 0.0036580483
        %v5439 = vmul.f32 %v5434, %v5438
        %v5440 = vadd.f32 %v5439, 0.05243302
        %v5441 = vmul.f32 %v5434, %v5440
        %v5442 = vadd.f32 %v5441, 0.18741608
        %v5443 = vmul.f32 %v5434, %v5442
        %v5444 = vadd.f32 %v5443, 1.1283791
        %v5445 = vmul.f32 %v5167, %v5444
        %v5446 = vmul.f32 %v5434, 3.8918573e-05
        %v5447 = vadd.f32 %v5446, 0.001143296
        %v5448 = vmul.f32 %v5434, %v5447
        %v5449 = vadd.f32 %v5448, 0.014752088
        %v5450 = vmul.f32 %v5434, %v5449
        %v5451 = vadd.f32 %v5450, 0.112945676
        %v5452 = vmul.f32 %v5434, %v5451
        %v5453 = vadd.f32 %v5452, 0.4994258
        %v5454 = vmul.f32 %v5434, %v5453
        %v5455 = vadd.f32 %v5454, 1.0
        %v5456 = vrcp.pop %v5455
        %v5457 = vmul.f32 %v5455, %v5456
        %v5458 = vsub.f32 1.0, %v5457
        %v5459 = vmul.f32 %v5456, %v5458
        %v5460 = vadd.f32 %v5456, %v5459
        %vm5461 = vweird.f32 %v5455
        %vm5462 = vweird.f32 %v5456
        %vm5463 = vmor %vm5461, %vm5462
        %v5464 = vsel %vm5463, %v5456, %v5460
        %v5465 = vand.u32 2147483647, %v5455
        %vm5466 = vcmp.eq.f32.partialorder %v5465, 8.507059e+37
        %v5467 = vand.u32 %v5455, 2147483648
        %v5468 = vor.u32 1.1754944e-38, %v5467
        %v5469 = vsel %vm5466, %v5468, %v5464
        %v5470 = vmul.f32 %v5445, %v5469
        %v5471 = vmin.f32 %v5470, 1.0
        %v5472 = vmax.f32 %v5471, -1.0
        %v5473 = vmul.f32 %v5168, %v5168
        %v5474 = vmin.f32 16.0, %v5473
        %v5475 = vmul.f32 %v5474, 2.1237322e-06
        %v5476 = vadd.f32 %v5475, 0.00028619796
        %v5477 = vmul.f32 %v5474, %v5476
        %v5478 = vadd.f32 %v5477, 0.0036580483
        %v5479 = vmul.f32 %v5474, %v5478
        %v5480 = vadd.f32 %v5479, 0.05243302
        %v5481 = vmul.f32 %v5474, %v5480
        %v5482 = vadd.f32 %v5481, 0.18741608
        %v5483 = vmul.f32 %v5474, %v5482
        %v5484 = vadd.f32 %v5483, 1.1283791
        %v5485 = vmul.f32 %v5168, %v5484
        %v5486 = vmul.f32 %v5474, 3.8918573e-05
        %v5487 = vadd.f32 %v5486, 0.001143296
        %v5488 = vmul.f32 %v5474, %v5487
        %v5489 = vadd.f32 %v5488, 0.014752088
        %v5490 = vmul.f32 %v5474, %v5489
        %v5491 = vadd.f32 %v5490, 0.112945676
        %v5492 = vmul.f32 %v5474, %v5491
        %v5493 = vadd.f32 %v5492, 0.4994258
        %v5494 = vmul.f32 %v5474, %v5493
        %v5495 = vadd.f32 %v5494, 1.0
        %v5496 = vrcp.pop %v5495
        %v5497 = vmul.f32 %v5495, %v5496
        %v5498 = vsub.f32 1.0, %v5497
        %v5499 = vmul.f32 %v5496, %v5498
        %v5500 = vadd.f32 %v5496, %v5499
        %vm5501 = vweird.f32 %v5495
        %vm5502 = vweird.f32 %v5496
        %vm5503 = vmor %vm5501, %vm5502
        %v5504 = vsel %vm5503, %v5496, %v5500
        %v5505 = vand.u32 2147483647, %v5495
        %vm5506 = vcmp.eq.f32.partialorder %v5505, 8.507059e+37
        %v5507 = vand.u32 %v5495, 2147483648
        %v5508 = vor.u32 1.1754944e-38, %v5507
        %v5509 = vsel %vm5506, %v5508, %v5504
        %v5510 = vmul.f32 %v5485, %v5509
        %v5511 = vmin.f32 %v5510, 1.0
        %v5512 = vmax.f32 %v5511, -1.0
        %v5513 = vmul.f32 %v5169, %v5169
        %v5514 = vmin.f32 16.0, %v5513
        %v5515 = vmul.f32 %v5514, 2.1237322e-06
        %v5516 = vadd.f32 %v5515, 0.00028619796
        %v5517 = vmul.f32 %v5514, %v5516
        %v5518 = vadd.f32 %v5517, 0.0036580483
        %v5519 = vmul.f32 %v5514, %v5518
        %v5520 = vadd.f32 %v5519, 0.05243302
        %v5521 = vmul.f32 %v5514, %v5520
        %v5522 = vadd.f32 %v5521, 0.18741608
        %v5523 = vmul.f32 %v5514, %v5522
        %v5524 = vadd.f32 %v5523, 1.1283791
        %v5525 = vmul.f32 %v5169, %v5524
        %v5526 = vmul.f32 %v5514, 3.8918573e-05
        %v5527 = vadd.f32 %v5526, 0.001143296
        %v5528 = vmul.f32 %v5514, %v5527
        %v5529 = vadd.f32 %v5528, 0.014752088
        %v5530 = vmul.f32 %v5514, %v5529
        %v5531 = vadd.f32 %v5530, 0.112945676
        %v5532 = vmul.f32 %v5514, %v5531
        %v5533 = vadd.f32 %v5532, 0.4994258
        %v5534 = vmul.f32 %v5514, %v5533
        %v5535 = vadd.f32 %v5534, 1.0
        %v5536 = vrcp.pop %v5535
        %v5537 = vmul.f32 %v5535, %v5536
        %v5538 = vsub.f32 1.0, %v5537
        %v5539 = vmul.f32 %v5536, %v5538
        %v5540 = vadd.f32 %v5536, %v5539
        %vm5541 = vweird.f32 %v5535
        %vm5542 = vweird.f32 %v5536
        %vm5543 = vmor %vm5541, %vm5542
        %v5544 = vsel %vm5543, %v5536, %v5540
        %v5545 = vand.u32 2147483647, %v5535
        %vm5546 = vcmp.eq.f32.partialorder %v5545, 8.507059e+37
        %v5547 = vand.u32 %v5535, 2147483648
        %v5548 = vor.u32 1.1754944e-38, %v5547
        %v5549 = vsel %vm5546, %v5548, %v5544
        %v5550 = vmul.f32 %v5525, %v5549
        %v5551 = vmin.f32 %v5550, 1.0
        %v5552 = vmax.f32 %v5551, -1.0
        %v5553 = vmul.f32 %v5170, %v5170
        %v5554 = vmin.f32 16.0, %v5553
        %v5555 = vmul.f32 %v5554, 2.1237322e-06
        %v5556 = vadd.f32 %v5555, 0.00028619796
        %v5557 = vmul.f32 %v5554, %v5556
        %v5558 = vadd.f32 %v5557, 0.0036580483
        %v5559 = vmul.f32 %v5554, %v5558
        %v5560 = vadd.f32 %v5559, 0.05243302
        %v5561 = vmul.f32 %v5554, %v5560
        %v5562 = vadd.f32 %v5561, 0.18741608
        %v5563 = vmul.f32 %v5554, %v5562
        %v5564 = vadd.f32 %v5563, 1.1283791
        %v5565 = vmul.f32 %v5170, %v5564
        %v5566 = vmul.f32 %v5554, 3.8918573e-05
        %v5567 = vadd.f32 %v5566, 0.001143296
        %v5568 = vmul.f32 %v5554, %v5567
        %v5569 = vadd.f32 %v5568, 0.014752088
        %v5570 = vmul.f32 %v5554, %v5569
        %v5571 = vadd.f32 %v5570, 0.112945676
        %v5572 = vmul.f32 %v5554, %v5571
        %v5573 = vadd.f32 %v5572, 0.4994258
        %v5574 = vmul.f32 %v5554, %v5573
        %v5575 = vadd.f32 %v5574, 1.0
        %v5576 = vrcp.pop %v5575
        %v5577 = vmul.f32 %v5575, %v5576
        %v5578 = vsub.f32 1.0, %v5577
        %v5579 = vmul.f32 %v5576, %v5578
        %v5580 = vadd.f32 %v5576, %v5579
        %vm5581 = vweird.f32 %v5575
        %vm5582 = vweird.f32 %v5576
        %vm5583 = vmor %vm5581, %vm5582
        %v5584 = vsel %vm5583, %v5576, %v5580
        %v5585 = vand.u32 2147483647, %v5575
        %vm5586 = vcmp.eq.f32.partialorder %v5585, 8.507059e+37
        %v5587 = vand.u32 %v5575, 2147483648
        %v5588 = vor.u32 1.1754944e-38, %v5587
        %v5589 = vsel %vm5586, %v5588, %v5584
        %v5590 = vmul.f32 %v5565, %v5589
        %v5591 = vmin.f32 %v5590, 1.0
        %v5592 = vmax.f32 %v5591, -1.0
        %v5593 = vmul.f32 %v5171, %v5171
        %v5594 = vmin.f32 16.0, %v5593
        %v5595 = vmul.f32 %v5594, 2.1237322e-06
        %v5596 = vadd.f32 %v5595, 0.00028619796
        %v5597 = vmul.f32 %v5594, %v5596
        %v5598 = vadd.f32 %v5597, 0.0036580483
        %v5599 = vmul.f32 %v5594, %v5598
        %v5600 = vadd.f32 %v5599, 0.05243302
        %v5601 = vmul.f32 %v5594, %v5600
        %v5602 = vadd.f32 %v5601, 0.18741608
        %v5603 = vmul.f32 %v5594, %v5602
        %v5604 = vadd.f32 %v5603, 1.1283791
        %v5605 = vmul.f32 %v5171, %v5604
        %v5606 = vmul.f32 %v5594, 3.8918573e-05
        %v5607 = vadd.f32 %v5606, 0.001143296
        %v5608 = vmul.f32 %v5594, %v5607
        %v5609 = vadd.f32 %v5608, 0.014752088
        %v5610 = vmul.f32 %v5594, %v5609
        %v5611 = vadd.f32 %v5610, 0.112945676
        %v5612 = vmul.f32 %v5594, %v5611
        %v5613 = vadd.f32 %v5612, 0.4994258
        %v5614 = vmul.f32 %v5594, %v5613
        %v5615 = vadd.f32 %v5614, 1.0
        %v5616 = vrcp.pop %v5615
        %v5617 = vmul.f32 %v5615, %v5616
        %v5618 = vsub.f32 1.0, %v5617
        %v5619 = vmul.f32 %v5616, %v5618
        %v5620 = vadd.f32 %v5616, %v5619
        %vm5621 = vweird.f32 %v5615
        %vm5622 = vweird.f32 %v5616
        %vm5623 = vmor %vm5621, %vm5622
        %v5624 = vsel %vm5623, %v5616, %v5620
        %v5625 = vand.u32 2147483647, %v5615
        %vm5626 = vcmp.eq.f32.partialorder %v5625, 8.507059e+37
        %v5627 = vand.u32 %v5615, 2147483648
        %v5628 = vor.u32 1.1754944e-38, %v5627
        %v5629 = vsel %vm5626, %v5628, %v5624
        %v5630 = vmul.f32 %v5605, %v5629
        %v5631 = vmin.f32 %v5630, 1.0
        %v5632 = vmax.f32 %v5631, -1.0
        %v5633 = vmul.f32 %v5172, %v5172
        %v5634 = vmin.f32 16.0, %v5633
        %v5635 = vmul.f32 %v5634, 2.1237322e-06
        %v5636 = vadd.f32 %v5635, 0.00028619796
        %v5637 = vmul.f32 %v5634, %v5636
        %v5638 = vadd.f32 %v5637, 0.0036580483
        %v5639 = vmul.f32 %v5634, %v5638
        %v5640 = vadd.f32 %v5639, 0.05243302
        %v5641 = vmul.f32 %v5634, %v5640
        %v5642 = vadd.f32 %v5641, 0.18741608
        %v5643 = vmul.f32 %v5634, %v5642
        %v5644 = vadd.f32 %v5643, 1.1283791
        %v5645 = vmul.f32 %v5172, %v5644
        %v5646 = vmul.f32 %v5634, 3.8918573e-05
        %v5647 = vadd.f32 %v5646, 0.001143296
        %v5648 = vmul.f32 %v5634, %v5647
        %v5649 = vadd.f32 %v5648, 0.014752088
        %v5650 = vmul.f32 %v5634, %v5649
        %v5651 = vadd.f32 %v5650, 0.112945676
        %v5652 = vmul.f32 %v5634, %v5651
        %v5653 = vadd.f32 %v5652, 0.4994258
        %v5654 = vmul.f32 %v5634, %v5653
        %v5655 = vadd.f32 %v5654, 1.0
        %v5656 = vrcp.pop %v5655
        %v5657 = vmul.f32 %v5655, %v5656
        %v5658 = vsub.f32 1.0, %v5657
        %v5659 = vmul.f32 %v5656, %v5658
        %v5660 = vadd.f32 %v5656, %v5659
        %vm5661 = vweird.f32 %v5655
        %vm5662 = vweird.f32 %v5656
        %vm5663 = vmor %vm5661, %vm5662
        %v5664 = vsel %vm5663, %v5656, %v5660
        %v5665 = vand.u32 2147483647, %v5655
        %vm5666 = vcmp.eq.f32.partialorder %v5665, 8.507059e+37
        %v5667 = vand.u32 %v5655, 2147483648
        %v5668 = vor.u32 1.1754944e-38, %v5667
        %v5669 = vsel %vm5666, %v5668, %v5664
        %v5670 = vmul.f32 %v5645, %v5669
        %v5671 = vmin.f32 %v5670, 1.0
        %v5672 = vmax.f32 %v5671, -1.0
        %v5673 = vmul.f32 %v5173, %v5173
        %v5674 = vmin.f32 16.0, %v5673
        %v5675 = vmul.f32 %v5674, 2.1237322e-06
        %v5676 = vadd.f32 %v5675, 0.00028619796
        %v5677 = vmul.f32 %v5674, %v5676
        %v5678 = vadd.f32 %v5677, 0.0036580483
        %v5679 = vmul.f32 %v5674, %v5678
        %v5680 = vadd.f32 %v5679, 0.05243302
        %v5681 = vmul.f32 %v5674, %v5680
        %v5682 = vadd.f32 %v5681, 0.18741608
        %v5683 = vmul.f32 %v5674, %v5682
        %v5684 = vadd.f32 %v5683, 1.1283791
        %v5685 = vmul.f32 %v5173, %v5684
        %v5686 = vmul.f32 %v5674, 3.8918573e-05
        %v5687 = vadd.f32 %v5686, 0.001143296
        %v5688 = vmul.f32 %v5674, %v5687
        %v5689 = vadd.f32 %v5688, 0.014752088
        %v5690 = vmul.f32 %v5674, %v5689
        %v5691 = vadd.f32 %v5690, 0.112945676
        %v5692 = vmul.f32 %v5674, %v5691
        %v5693 = vadd.f32 %v5692, 0.4994258
        %v5694 = vmul.f32 %v5674, %v5693
        %v5695 = vadd.f32 %v5694, 1.0
        %v5696 = vrcp.pop %v5695
        %v5697 = vmul.f32 %v5695, %v5696
        %v5698 = vsub.f32 1.0, %v5697
        %v5699 = vmul.f32 %v5696, %v5698
        %v5700 = vadd.f32 %v5696, %v5699
        %vm5701 = vweird.f32 %v5695
        %vm5702 = vweird.f32 %v5696
        %vm5703 = vmor %vm5701, %vm5702
        %v5704 = vsel %vm5703, %v5696, %v5700
        %v5705 = vand.u32 2147483647, %v5695
        %vm5706 = vcmp.eq.f32.partialorder %v5705, 8.507059e+37
        %v5707 = vand.u32 %v5695, 2147483648
        %v5708 = vor.u32 1.1754944e-38, %v5707
        %v5709 = vsel %vm5706, %v5708, %v5704
        %v5710 = vmul.f32 %v5685, %v5709
        %v5711 = vmin.f32 %v5710, 1.0
        %v5712 = vmax.f32 %v5711, -1.0
        %v5713 = vmul.f32 %v5174, %v5174
        %v5714 = vmin.f32 16.0, %v5713
        %v5715 = vmul.f32 %v5714, 2.1237322e-06
        %v5716 = vadd.f32 %v5715, 0.00028619796
        %v5717 = vmul.f32 %v5714, %v5716
        %v5718 = vadd.f32 %v5717, 0.0036580483
        %v5719 = vmul.f32 %v5714, %v5718
        %v5720 = vadd.f32 %v5719, 0.05243302
        %v5721 = vmul.f32 %v5714, %v5720
        %v5722 = vadd.f32 %v5721, 0.18741608
        %v5723 = vmul.f32 %v5714, %v5722
        %v5724 = vadd.f32 %v5723, 1.1283791
        %v5725 = vmul.f32 %v5174, %v5724
        %v5726 = vmul.f32 %v5714, 3.8918573e-05
        %v5727 = vadd.f32 %v5726, 0.001143296
        %v5728 = vmul.f32 %v5714, %v5727
        %v5729 = vadd.f32 %v5728, 0.014752088
        %v5730 = vmul.f32 %v5714, %v5729
        %v5731 = vadd.f32 %v5730, 0.112945676
        %v5732 = vmul.f32 %v5714, %v5731
        %v5733 = vadd.f32 %v5732, 0.4994258
        %v5734 = vmul.f32 %v5714, %v5733
        %v5735 = vadd.f32 %v5734, 1.0
        %v5736 = vrcp.pop %v5735
        %v5737 = vmul.f32 %v5735, %v5736
        %v5738 = vsub.f32 1.0, %v5737
        %v5739 = vmul.f32 %v5736, %v5738
        %v5740 = vadd.f32 %v5736, %v5739
        %vm5741 = vweird.f32 %v5735
        %vm5742 = vweird.f32 %v5736
        %vm5743 = vmor %vm5741, %vm5742
        %v5744 = vsel %vm5743, %v5736, %v5740
        %v5745 = vand.u32 2147483647, %v5735
        %vm5746 = vcmp.eq.f32.partialorder %v5745, 8.507059e+37
        %v5747 = vand.u32 %v5735, 2147483648
        %v5748 = vor.u32 1.1754944e-38, %v5747
        %v5749 = vsel %vm5746, %v5748, %v5744
        %v5750 = vmul.f32 %v5725, %v5749
        %v5751 = vmin.f32 %v5750, 1.0
        %v5752 = vmax.f32 %v5751, -1.0
        %v5753 = vmul.f32 %v5175, %v5175
        %v5754 = vmin.f32 16.0, %v5753
        %v5755 = vmul.f32 %v5754, 2.1237322e-06
        %v5756 = vadd.f32 %v5755, 0.00028619796
        %v5757 = vmul.f32 %v5754, %v5756
        %v5758 = vadd.f32 %v5757, 0.0036580483
        %v5759 = vmul.f32 %v5754, %v5758
        %v5760 = vadd.f32 %v5759, 0.05243302
        %v5761 = vmul.f32 %v5754, %v5760
        %v5762 = vadd.f32 %v5761, 0.18741608
        %v5763 = vmul.f32 %v5754, %v5762
        %v5764 = vadd.f32 %v5763, 1.1283791
        %v5765 = vmul.f32 %v5175, %v5764
        %v5766 = vmul.f32 %v5754, 3.8918573e-05
        %v5767 = vadd.f32 %v5766, 0.001143296
        %v5768 = vmul.f32 %v5754, %v5767
        %v5769 = vadd.f32 %v5768, 0.014752088
        %v5770 = vmul.f32 %v5754, %v5769
        %v5771 = vadd.f32 %v5770, 0.112945676
        %v5772 = vmul.f32 %v5754, %v5771
        %v5773 = vadd.f32 %v5772, 0.4994258
        %v5774 = vmul.f32 %v5754, %v5773
        %v5775 = vadd.f32 %v5774, 1.0
        %v5776 = vrcp.pop %v5775
        %v5777 = vmul.f32 %v5775, %v5776
        %v5778 = vsub.f32 1.0, %v5777
        %v5779 = vmul.f32 %v5776, %v5778
        %v5780 = vadd.f32 %v5776, %v5779
        %vm5781 = vweird.f32 %v5775
        %vm5782 = vweird.f32 %v5776
        %vm5783 = vmor %vm5781, %vm5782
        %v5784 = vsel %vm5783, %v5776, %v5780
        %v5785 = vand.u32 2147483647, %v5775
        %vm5786 = vcmp.eq.f32.partialorder %v5785, 8.507059e+37
        %v5787 = vand.u32 %v5775, 2147483648
        %v5788 = vor.u32 1.1754944e-38, %v5787
        %v5789 = vsel %vm5786, %v5788, %v5784
        %v5790 = vmul.f32 %v5765, %v5789
        %v5791 = vmin.f32 %v5790, 1.0
        %v5792 = vmax.f32 %v5791, -1.0
        %v5793 = vmul.f32 %v5176, %v5176
        %v5794 = vmin.f32 16.0, %v5793
        %v5795 = vmul.f32 %v5794, 2.1237322e-06
        %v5796 = vadd.f32 %v5795, 0.00028619796
        %v5797 = vmul.f32 %v5794, %v5796
        %v5798 = vadd.f32 %v5797, 0.0036580483
        %v5799 = vmul.f32 %v5794, %v5798
        %v5800 = vadd.f32 %v5799, 0.05243302
        %v5801 = vmul.f32 %v5794, %v5800
        %v5802 = vadd.f32 %v5801, 0.18741608
        %v5803 = vmul.f32 %v5794, %v5802
        %v5804 = vadd.f32 %v5803, 1.1283791
        %v5805 = vmul.f32 %v5176, %v5804
        %v5806 = vmul.f32 %v5794, 3.8918573e-05
        %v5807 = vadd.f32 %v5806, 0.001143296
        %v5808 = vmul.f32 %v5794, %v5807
        %v5809 = vadd.f32 %v5808, 0.014752088
        %v5810 = vmul.f32 %v5794, %v5809
        %v5811 = vadd.f32 %v5810, 0.112945676
        %v5812 = vmul.f32 %v5794, %v5811
        %v5813 = vadd.f32 %v5812, 0.4994258
        %v5814 = vmul.f32 %v5794, %v5813
        %v5815 = vadd.f32 %v5814, 1.0
        %v5816 = vrcp.pop %v5815
        %v5817 = vmul.f32 %v5815, %v5816
        %v5818 = vsub.f32 1.0, %v5817
        %v5819 = vmul.f32 %v5816, %v5818
        %v5820 = vadd.f32 %v5816, %v5819
        %vm5821 = vweird.f32 %v5815
        %vm5822 = vweird.f32 %v5816
        %vm5823 = vmor %vm5821, %vm5822
        %v5824 = vsel %vm5823, %v5816, %v5820
        %v5825 = vand.u32 2147483647, %v5815
        %vm5826 = vcmp.eq.f32.partialorder %v5825, 8.507059e+37
        %v5827 = vand.u32 %v5815, 2147483648
        %v5828 = vor.u32 1.1754944e-38, %v5827
        %v5829 = vsel %vm5826, %v5828, %v5824
        %v5830 = vmul.f32 %v5805, %v5829
        %v5831 = vmin.f32 %v5830, 1.0
        %v5832 = vmax.f32 %v5831, -1.0
        %v5833 = vmul.f32 %v5177, %v5177
        %v5834 = vmin.f32 16.0, %v5833
        %v5835 = vmul.f32 %v5834, 2.1237322e-06
        %v5836 = vadd.f32 %v5835, 0.00028619796
        %v5837 = vmul.f32 %v5834, %v5836
        %v5838 = vadd.f32 %v5837, 0.0036580483
        %v5839 = vmul.f32 %v5834, %v5838
        %v5840 = vadd.f32 %v5839, 0.05243302
        %v5841 = vmul.f32 %v5834, %v5840
        %v5842 = vadd.f32 %v5841, 0.18741608
        %v5843 = vmul.f32 %v5834, %v5842
        %v5844 = vadd.f32 %v5843, 1.1283791
        %v5845 = vmul.f32 %v5177, %v5844
        %v5846 = vmul.f32 %v5834, 3.8918573e-05
        %v5847 = vadd.f32 %v5846, 0.001143296
        %v5848 = vmul.f32 %v5834, %v5847
        %v5849 = vadd.f32 %v5848, 0.014752088
        %v5850 = vmul.f32 %v5834, %v5849
        %v5851 = vadd.f32 %v5850, 0.112945676
        %v5852 = vmul.f32 %v5834, %v5851
        %v5853 = vadd.f32 %v5852, 0.4994258
        %v5854 = vmul.f32 %v5834, %v5853
        %v5855 = vadd.f32 %v5854, 1.0
        %v5856 = vrcp.pop %v5855
        %v5857 = vmul.f32 %v5855, %v5856
        %v5858 = vsub.f32 1.0, %v5857
        %v5859 = vmul.f32 %v5856, %v5858
        %v5860 = vadd.f32 %v5856, %v5859
        %vm5861 = vweird.f32 %v5855
        %vm5862 = vweird.f32 %v5856
        %vm5863 = vmor %vm5861, %vm5862
        %v5864 = vsel %vm5863, %v5856, %v5860
        %v5865 = vand.u32 2147483647, %v5855
        %vm5866 = vcmp.eq.f32.partialorder %v5865, 8.507059e+37
        %v5867 = vand.u32 %v5855, 2147483648
        %v5868 = vor.u32 1.1754944e-38, %v5867
        %v5869 = vsel %vm5866, %v5868, %v5864
        %v5870 = vmul.f32 %v5845, %v5869
        %v5871 = vmin.f32 %v5870, 1.0
        %v5872 = vmax.f32 %v5871, -1.0
        %v5873 = vmul.f32 %v5178, %v5178
        %v5874 = vmin.f32 16.0, %v5873
        %v5875 = vmul.f32 %v5874, 2.1237322e-06
        %v5876 = vadd.f32 %v5875, 0.00028619796
        %v5877 = vmul.f32 %v5874, %v5876
        %v5878 = vadd.f32 %v5877, 0.0036580483
        %v5879 = vmul.f32 %v5874, %v5878
        %v5880 = vadd.f32 %v5879, 0.05243302
        %v5881 = vmul.f32 %v5874, %v5880
        %v5882 = vadd.f32 %v5881, 0.18741608
        %v5883 = vmul.f32 %v5874, %v5882
        %v5884 = vadd.f32 %v5883, 1.1283791
        %v5885 = vmul.f32 %v5178, %v5884
        %v5886 = vmul.f32 %v5874, 3.8918573e-05
        %v5887 = vadd.f32 %v5886, 0.001143296
        %v5888 = vmul.f32 %v5874, %v5887
        %v5889 = vadd.f32 %v5888, 0.014752088
        %v5890 = vmul.f32 %v5874, %v5889
        %v5891 = vadd.f32 %v5890, 0.112945676
        %v5892 = vmul.f32 %v5874, %v5891
        %v5893 = vadd.f32 %v5892, 0.4994258
        %v5894 = vmul.f32 %v5874, %v5893
        %v5895 = vadd.f32 %v5894, 1.0
        %v5896 = vrcp.pop %v5895
        %v5897 = vmul.f32 %v5895, %v5896
        %v5898 = vsub.f32 1.0, %v5897
        %v5899 = vmul.f32 %v5896, %v5898
        %v5900 = vadd.f32 %v5896, %v5899
        %vm5901 = vweird.f32 %v5895
        %vm5902 = vweird.f32 %v5896
        %vm5903 = vmor %vm5901, %vm5902
        %v5904 = vsel %vm5903, %v5896, %v5900
        %v5905 = vand.u32 2147483647, %v5895
        %vm5906 = vcmp.eq.f32.partialorder %v5905, 8.507059e+37
        %v5907 = vand.u32 %v5895, 2147483648
        %v5908 = vor.u32 1.1754944e-38, %v5907
        %v5909 = vsel %vm5906, %v5908, %v5904
        %v5910 = vmul.f32 %v5885, %v5909
        %v5911 = vmin.f32 %v5910, 1.0
        %v5912 = vmax.f32 %v5911, -1.0
        %v5913 = vmul.f32 %v5179, %v5179
        %v5914 = vmin.f32 16.0, %v5913
        %v5915 = vmul.f32 %v5914, 2.1237322e-06
        %v5916 = vadd.f32 %v5915, 0.00028619796
        %v5917 = vmul.f32 %v5914, %v5916
        %v5918 = vadd.f32 %v5917, 0.0036580483
        %v5919 = vmul.f32 %v5914, %v5918
        %v5920 = vadd.f32 %v5919, 0.05243302
        %v5921 = vmul.f32 %v5914, %v5920
        %v5922 = vadd.f32 %v5921, 0.18741608
        %v5923 = vmul.f32 %v5914, %v5922
        %v5924 = vadd.f32 %v5923, 1.1283791
        %v5925 = vmul.f32 %v5179, %v5924
        %v5926 = vmul.f32 %v5914, 3.8918573e-05
        %v5927 = vadd.f32 %v5926, 0.001143296
        %v5928 = vmul.f32 %v5914, %v5927
        %v5929 = vadd.f32 %v5928, 0.014752088
        %v5930 = vmul.f32 %v5914, %v5929
        %v5931 = vadd.f32 %v5930, 0.112945676
        %v5932 = vmul.f32 %v5914, %v5931
        %v5933 = vadd.f32 %v5932, 0.4994258
        %v5934 = vmul.f32 %v5914, %v5933
        %v5935 = vadd.f32 %v5934, 1.0
        %v5936 = vrcp.pop %v5935
        %v5937 = vmul.f32 %v5935, %v5936
        %v5938 = vsub.f32 1.0, %v5937
        %v5939 = vmul.f32 %v5936, %v5938
        %v5940 = vadd.f32 %v5936, %v5939
        %vm5941 = vweird.f32 %v5935
        %vm5942 = vweird.f32 %v5936
        %vm5943 = vmor %vm5941, %vm5942
        %v5944 = vsel %vm5943, %v5936, %v5940
        %v5945 = vand.u32 2147483647, %v5935
        %vm5946 = vcmp.eq.f32.partialorder %v5945, 8.507059e+37
        %v5947 = vand.u32 %v5935, 2147483648
        %v5948 = vor.u32 1.1754944e-38, %v5947
        %v5949 = vsel %vm5946, %v5948, %v5944
        %v5950 = vmul.f32 %v5925, %v5949
        %v5951 = vmin.f32 %v5950, 1.0
        %v5952 = vmax.f32 %v5951, -1.0
        %v5953 = vmul.f32 %v5180, %v5180
        %v5954 = vmin.f32 16.0, %v5953
        %v5955 = vmul.f32 %v5954, 2.1237322e-06
        %v5956 = vadd.f32 %v5955, 0.00028619796
        %v5957 = vmul.f32 %v5954, %v5956
        %v5958 = vadd.f32 %v5957, 0.0036580483
        %v5959 = vmul.f32 %v5954, %v5958
        %v5960 = vadd.f32 %v5959, 0.05243302
        %v5961 = vmul.f32 %v5954, %v5960
        %v5962 = vadd.f32 %v5961, 0.18741608
        %v5963 = vmul.f32 %v5954, %v5962
        %v5964 = vadd.f32 %v5963, 1.1283791
        %v5965 = vmul.f32 %v5180, %v5964
        %v5966 = vmul.f32 %v5954, 3.8918573e-05
        %v5967 = vadd.f32 %v5966, 0.001143296
        %v5968 = vmul.f32 %v5954, %v5967
        %v5969 = vadd.f32 %v5968, 0.014752088
        %v5970 = vmul.f32 %v5954, %v5969
        %v5971 = vadd.f32 %v5970, 0.112945676
        %v5972 = vmul.f32 %v5954, %v5971
        %v5973 = vadd.f32 %v5972, 0.4994258
        %v5974 = vmul.f32 %v5954, %v5973
        %v5975 = vadd.f32 %v5974, 1.0
        %v5976 = vrcp.pop %v5975
        %v5977 = vmul.f32 %v5975, %v5976
        %v5978 = vsub.f32 1.0, %v5977
        %v5979 = vmul.f32 %v5976, %v5978
        %v5980 = vadd.f32 %v5976, %v5979
        %vm5981 = vweird.f32 %v5975
        %vm5982 = vweird.f32 %v5976
        %vm5983 = vmor %vm5981, %vm5982
        %v5984 = vsel %vm5983, %v5976, %v5980
        %v5985 = vand.u32 2147483647, %v5975
        %vm5986 = vcmp.eq.f32.partialorder %v5985, 8.507059e+37
        %v5987 = vand.u32 %v5975, 2147483648
        %v5988 = vor.u32 1.1754944e-38, %v5987
        %v5989 = vsel %vm5986, %v5988, %v5984
        %v5990 = vmul.f32 %v5965, %v5989
        %v5991 = vmin.f32 %v5990, 1.0
        %v5992 = vmax.f32 %v5991, -1.0
        %v5993 = vmul.f32 %v5181, %v5181
        %v5994 = vmin.f32 16.0, %v5993
        %v5995 = vmul.f32 %v5994, 2.1237322e-06
        %v5996 = vadd.f32 %v5995, 0.00028619796
        %v5997 = vmul.f32 %v5994, %v5996
        %v5998 = vadd.f32 %v5997, 0.0036580483
        %v5999 = vmul.f32 %v5994, %v5998
        %v6000 = vadd.f32 %v5999, 0.05243302
        %v6001 = vmul.f32 %v5994, %v6000
        %v6002 = vadd.f32 %v6001, 0.18741608
        %v6003 = vmul.f32 %v5994, %v6002
        %v6004 = vadd.f32 %v6003, 1.1283791
        %v6005 = vmul.f32 %v5181, %v6004
        %v6006 = vmul.f32 %v5994, 3.8918573e-05
        %v6007 = vadd.f32 %v6006, 0.001143296
        %v6008 = vmul.f32 %v5994, %v6007
        %v6009 = vadd.f32 %v6008, 0.014752088
        %v6010 = vmul.f32 %v5994, %v6009
        %v6011 = vadd.f32 %v6010, 0.112945676
        %v6012 = vmul.f32 %v5994, %v6011
        %v6013 = vadd.f32 %v6012, 0.4994258
        %v6014 = vmul.f32 %v5994, %v6013
        %v6015 = vadd.f32 %v6014, 1.0
        %v6016 = vrcp.pop %v6015
        %v6017 = vmul.f32 %v6015, %v6016
        %v6018 = vsub.f32 1.0, %v6017
        %v6019 = vmul.f32 %v6016, %v6018
        %v6020 = vadd.f32 %v6016, %v6019
        %vm6021 = vweird.f32 %v6015
        %vm6022 = vweird.f32 %v6016
        %vm6023 = vmor %vm6021, %vm6022
        %v6024 = vsel %vm6023, %v6016, %v6020
        %v6025 = vand.u32 2147483647, %v6015
        %vm6026 = vcmp.eq.f32.partialorder %v6025, 8.507059e+37
        %v6027 = vand.u32 %v6015, 2147483648
        %v6028 = vor.u32 1.1754944e-38, %v6027
        %v6029 = vsel %vm6026, %v6028, %v6024
        %v6030 = vmul.f32 %v6005, %v6029
        %v6031 = vmin.f32 %v6030, 1.0
        %v6032 = vmax.f32 %v6031, -1.0
        %v6033 = vmul.f32 %v5182, %v5182
        %v6034 = vmin.f32 16.0, %v6033
        %v6035 = vmul.f32 %v6034, 2.1237322e-06
        %v6036 = vadd.f32 %v6035, 0.00028619796
        %v6037 = vmul.f32 %v6034, %v6036
        %v6038 = vadd.f32 %v6037, 0.0036580483
        %v6039 = vmul.f32 %v6034, %v6038
        %v6040 = vadd.f32 %v6039, 0.05243302
        %v6041 = vmul.f32 %v6034, %v6040
        %v6042 = vadd.f32 %v6041, 0.18741608
        %v6043 = vmul.f32 %v6034, %v6042
        %v6044 = vadd.f32 %v6043, 1.1283791
        %v6045 = vmul.f32 %v5182, %v6044
        %v6046 = vmul.f32 %v6034, 3.8918573e-05
        %v6047 = vadd.f32 %v6046, 0.001143296
        %v6048 = vmul.f32 %v6034, %v6047
        %v6049 = vadd.f32 %v6048, 0.014752088
        %v6050 = vmul.f32 %v6034, %v6049
        %v6051 = vadd.f32 %v6050, 0.112945676
        %v6052 = vmul.f32 %v6034, %v6051
        %v6053 = vadd.f32 %v6052, 0.4994258
        %v6054 = vmul.f32 %v6034, %v6053
        %v6055 = vadd.f32 %v6054, 1.0
        %v6056 = vrcp.pop %v6055
        %v6057 = vmul.f32 %v6055, %v6056
        %v6058 = vsub.f32 1.0, %v6057
        %v6059 = vmul.f32 %v6056, %v6058
        %v6060 = vadd.f32 %v6056, %v6059
        %vm6061 = vweird.f32 %v6055
        %vm6062 = vweird.f32 %v6056
        %vm6063 = vmor %vm6061, %vm6062
        %v6064 = vsel %vm6063, %v6056, %v6060
        %v6065 = vand.u32 2147483647, %v6055
        %vm6066 = vcmp.eq.f32.partialorder %v6065, 8.507059e+37
        %v6067 = vand.u32 %v6055, 2147483648
        %v6068 = vor.u32 1.1754944e-38, %v6067
        %v6069 = vsel %vm6066, %v6068, %v6064
        %v6070 = vmul.f32 %v6045, %v6069
        %v6071 = vmin.f32 %v6070, 1.0
        %v6072 = vmax.f32 %v6071, -1.0
        %v6073 = vmul.f32 %v5183, %v5183
        %v6074 = vmin.f32 16.0, %v6073
        %v6075 = vmul.f32 %v6074, 2.1237322e-06
        %v6076 = vadd.f32 %v6075, 0.00028619796
        %v6077 = vmul.f32 %v6074, %v6076
        %v6078 = vadd.f32 %v6077, 0.0036580483
        %v6079 = vmul.f32 %v6074, %v6078
        %v6080 = vadd.f32 %v6079, 0.05243302
        %v6081 = vmul.f32 %v6074, %v6080
        %v6082 = vadd.f32 %v6081, 0.18741608
        %v6083 = vmul.f32 %v6074, %v6082
        %v6084 = vadd.f32 %v6083, 1.1283791
        %v6085 = vmul.f32 %v5183, %v6084
        %v6086 = vmul.f32 %v6074, 3.8918573e-05
        %v6087 = vadd.f32 %v6086, 0.001143296
        %v6088 = vmul.f32 %v6074, %v6087
        %v6089 = vadd.f32 %v6088, 0.014752088
        %v6090 = vmul.f32 %v6074, %v6089
        %v6091 = vadd.f32 %v6090, 0.112945676
        %v6092 = vmul.f32 %v6074, %v6091
        %v6093 = vadd.f32 %v6092, 0.4994258
        %v6094 = vmul.f32 %v6074, %v6093
        %v6095 = vadd.f32 %v6094, 1.0
        %v6096 = vrcp.pop %v6095
        %v6097 = vmul.f32 %v6095, %v6096
        %v6098 = vsub.f32 1.0, %v6097
        %v6099 = vmul.f32 %v6096, %v6098
        %v6100 = vadd.f32 %v6096, %v6099
        %vm6101 = vweird.f32 %v6095
        %vm6102 = vweird.f32 %v6096
        %vm6103 = vmor %vm6101, %vm6102
        %v6104 = vsel %vm6103, %v6096, %v6100
        %v6105 = vand.u32 2147483647, %v6095
        %vm6106 = vcmp.eq.f32.partialorder %v6105, 8.507059e+37
        %v6107 = vand.u32 %v6095, 2147483648
        %v6108 = vor.u32 1.1754944e-38, %v6107
        %v6109 = vsel %vm6106, %v6108, %v6104
        %v6110 = vmul.f32 %v6085, %v6109
        %v6111 = vmin.f32 %v6110, 1.0
        %v6112 = vmax.f32 %v6111, -1.0
        %v6113 = vmul.f32 %v5184, %v5184
        %v6114 = vmin.f32 16.0, %v6113
        %v6115 = vmul.f32 %v6114, 2.1237322e-06
        %v6116 = vadd.f32 %v6115, 0.00028619796
        %v6117 = vmul.f32 %v6114, %v6116
        %v6118 = vadd.f32 %v6117, 0.0036580483
        %v6119 = vmul.f32 %v6114, %v6118
        %v6120 = vadd.f32 %v6119, 0.05243302
        %v6121 = vmul.f32 %v6114, %v6120
        %v6122 = vadd.f32 %v6121, 0.18741608
        %v6123 = vmul.f32 %v6114, %v6122
        %v6124 = vadd.f32 %v6123, 1.1283791
        %v6125 = vmul.f32 %v5184, %v6124
        %v6126 = vmul.f32 %v6114, 3.8918573e-05
        %v6127 = vadd.f32 %v6126, 0.001143296
        %v6128 = vmul.f32 %v6114, %v6127
        %v6129 = vadd.f32 %v6128, 0.014752088
        %v6130 = vmul.f32 %v6114, %v6129
        %v6131 = vadd.f32 %v6130, 0.112945676
        %v6132 = vmul.f32 %v6114, %v6131
        %v6133 = vadd.f32 %v6132, 0.4994258
        %v6134 = vmul.f32 %v6114, %v6133
        %v6135 = vadd.f32 %v6134, 1.0
        %v6136 = vrcp.pop %v6135
        %v6137 = vmul.f32 %v6135, %v6136
        %v6138 = vsub.f32 1.0, %v6137
        %v6139 = vmul.f32 %v6136, %v6138
        %v6140 = vadd.f32 %v6136, %v6139
        %vm6141 = vweird.f32 %v6135
        %vm6142 = vweird.f32 %v6136
        %vm6143 = vmor %vm6141, %vm6142
        %v6144 = vsel %vm6143, %v6136, %v6140
        %v6145 = vand.u32 2147483647, %v6135
        %vm6146 = vcmp.eq.f32.partialorder %v6145, 8.507059e+37
        %v6147 = vand.u32 %v6135, 2147483648
        %v6148 = vor.u32 1.1754944e-38, %v6147
        %v6149 = vsel %vm6146, %v6148, %v6144
        %v6150 = vmul.f32 %v6125, %v6149
        %v6151 = vmin.f32 %v6150, 1.0
        %v6152 = vmax.f32 %v6151, -1.0
        %v6153 = vmul.f32 %v5185, %v5185
        %v6154 = vmin.f32 16.0, %v6153
        %v6155 = vmul.f32 %v6154, 2.1237322e-06
        %v6156 = vadd.f32 %v6155, 0.00028619796
        %v6157 = vmul.f32 %v6154, %v6156
        %v6158 = vadd.f32 %v6157, 0.0036580483
        %v6159 = vmul.f32 %v6154, %v6158
        %v6160 = vadd.f32 %v6159, 0.05243302
        %v6161 = vmul.f32 %v6154, %v6160
        %v6162 = vadd.f32 %v6161, 0.18741608
        %v6163 = vmul.f32 %v6154, %v6162
        %v6164 = vadd.f32 %v6163, 1.1283791
        %v6165 = vmul.f32 %v5185, %v6164
        %v6166 = vmul.f32 %v6154, 3.8918573e-05
        %v6167 = vadd.f32 %v6166, 0.001143296
        %v6168 = vmul.f32 %v6154, %v6167
        %v6169 = vadd.f32 %v6168, 0.014752088
        %v6170 = vmul.f32 %v6154, %v6169
        %v6171 = vadd.f32 %v6170, 0.112945676
        %v6172 = vmul.f32 %v6154, %v6171
        %v6173 = vadd.f32 %v6172, 0.4994258
        %v6174 = vmul.f32 %v6154, %v6173
        %v6175 = vadd.f32 %v6174, 1.0
        %v6176 = vrcp.pop %v6175
        %v6177 = vmul.f32 %v6175, %v6176
        %v6178 = vsub.f32 1.0, %v6177
        %v6179 = vmul.f32 %v6176, %v6178
        %v6180 = vadd.f32 %v6176, %v6179
        %vm6181 = vweird.f32 %v6175
        %vm6182 = vweird.f32 %v6176
        %vm6183 = vmor %vm6181, %vm6182
        %v6184 = vsel %vm6183, %v6176, %v6180
        %v6185 = vand.u32 2147483647, %v6175
        %vm6186 = vcmp.eq.f32.partialorder %v6185, 8.507059e+37
        %v6187 = vand.u32 %v6175, 2147483648
        %v6188 = vor.u32 1.1754944e-38, %v6187
        %v6189 = vsel %vm6186, %v6188, %v6184
        %v6190 = vmul.f32 %v6165, %v6189
        %v6191 = vmin.f32 %v6190, 1.0
        %v6192 = vmax.f32 %v6191, -1.0
        %v6193 = vmul.f32 %v5186, %v5186
        %v6194 = vmin.f32 16.0, %v6193
        %v6195 = vmul.f32 %v6194, 2.1237322e-06
        %v6196 = vadd.f32 %v6195, 0.00028619796
        %v6197 = vmul.f32 %v6194, %v6196
        %v6198 = vadd.f32 %v6197, 0.0036580483
        %v6199 = vmul.f32 %v6194, %v6198
        %v6200 = vadd.f32 %v6199, 0.05243302
        %v6201 = vmul.f32 %v6194, %v6200
        %v6202 = vadd.f32 %v6201, 0.18741608
        %v6203 = vmul.f32 %v6194, %v6202
        %v6204 = vadd.f32 %v6203, 1.1283791
        %v6205 = vmul.f32 %v5186, %v6204
        %v6206 = vmul.f32 %v6194, 3.8918573e-05
        %v6207 = vadd.f32 %v6206, 0.001143296
        %v6208 = vmul.f32 %v6194, %v6207
        %v6209 = vadd.f32 %v6208, 0.014752088
        %v6210 = vmul.f32 %v6194, %v6209
        %v6211 = vadd.f32 %v6210, 0.112945676
        %v6212 = vmul.f32 %v6194, %v6211
        %v6213 = vadd.f32 %v6212, 0.4994258
        %v6214 = vmul.f32 %v6194, %v6213
        %v6215 = vadd.f32 %v6214, 1.0
        %v6216 = vrcp.pop %v6215
        %v6217 = vmul.f32 %v6215, %v6216
        %v6218 = vsub.f32 1.0, %v6217
        %v6219 = vmul.f32 %v6216, %v6218
        %v6220 = vadd.f32 %v6216, %v6219
        %vm6221 = vweird.f32 %v6215
        %vm6222 = vweird.f32 %v6216
        %vm6223 = vmor %vm6221, %vm6222
        %v6224 = vsel %vm6223, %v6216, %v6220
        %v6225 = vand.u32 2147483647, %v6215
        %vm6226 = vcmp.eq.f32.partialorder %v6225, 8.507059e+37
        %v6227 = vand.u32 %v6215, 2147483648
        %v6228 = vor.u32 1.1754944e-38, %v6227
        %v6229 = vsel %vm6226, %v6228, %v6224
        %v6230 = vmul.f32 %v6205, %v6229
        %v6231 = vmin.f32 %v6230, 1.0
        %v6232 = vmax.f32 %v6231, -1.0
        %v6233 = vmul.f32 %v5187, %v5187
        %v6234 = vmin.f32 16.0, %v6233
        %v6235 = vmul.f32 %v6234, 2.1237322e-06
        %v6236 = vadd.f32 %v6235, 0.00028619796
        %v6237 = vmul.f32 %v6234, %v6236
        %v6238 = vadd.f32 %v6237, 0.0036580483
        %v6239 = vmul.f32 %v6234, %v6238
        %v6240 = vadd.f32 %v6239, 0.05243302
        %v6241 = vmul.f32 %v6234, %v6240
        %v6242 = vadd.f32 %v6241, 0.18741608
        %v6243 = vmul.f32 %v6234, %v6242
        %v6244 = vadd.f32 %v6243, 1.1283791
        %v6245 = vmul.f32 %v5187, %v6244
        %v6246 = vmul.f32 %v6234, 3.8918573e-05
        %v6247 = vadd.f32 %v6246, 0.001143296
        %v6248 = vmul.f32 %v6234, %v6247
        %v6249 = vadd.f32 %v6248, 0.014752088
        %v6250 = vmul.f32 %v6234, %v6249
        %v6251 = vadd.f32 %v6250, 0.112945676
        %v6252 = vmul.f32 %v6234, %v6251
        %v6253 = vadd.f32 %v6252, 0.4994258
        %v6254 = vmul.f32 %v6234, %v6253
        %v6255 = vadd.f32 %v6254, 1.0
        %v6256 = vrcp.pop %v6255
        %v6257 = vmul.f32 %v6255, %v6256
        %v6258 = vsub.f32 1.0, %v6257
        %v6259 = vmul.f32 %v6256, %v6258
        %v6260 = vadd.f32 %v6256, %v6259
        %vm6261 = vweird.f32 %v6255
        %vm6262 = vweird.f32 %v6256
        %vm6263 = vmor %vm6261, %vm6262
        %v6264 = vsel %vm6263, %v6256, %v6260
        %v6265 = vand.u32 2147483647, %v6255
        %vm6266 = vcmp.eq.f32.partialorder %v6265, 8.507059e+37
        %v6267 = vand.u32 %v6255, 2147483648
        %v6268 = vor.u32 1.1754944e-38, %v6267
        %v6269 = vsel %vm6266, %v6268, %v6264
        %v6270 = vmul.f32 %v6245, %v6269
        %v6271 = vmin.f32 %v6270, 1.0
        %v6272 = vmax.f32 %v6271, -1.0
        %v6273 = vmul.f32 %v5188, %v5188
        %v6274 = vmin.f32 16.0, %v6273
        %v6275 = vmul.f32 %v6274, 2.1237322e-06
        %v6276 = vadd.f32 %v6275, 0.00028619796
        %v6277 = vmul.f32 %v6274, %v6276
        %v6278 = vadd.f32 %v6277, 0.0036580483
        %v6279 = vmul.f32 %v6274, %v6278
        %v6280 = vadd.f32 %v6279, 0.05243302
        %v6281 = vmul.f32 %v6274, %v6280
        %v6282 = vadd.f32 %v6281, 0.18741608
        %v6283 = vmul.f32 %v6274, %v6282
        %v6284 = vadd.f32 %v6283, 1.1283791
        %v6285 = vmul.f32 %v5188, %v6284
        %v6286 = vmul.f32 %v6274, 3.8918573e-05
        %v6287 = vadd.f32 %v6286, 0.001143296
        %v6288 = vmul.f32 %v6274, %v6287
        %v6289 = vadd.f32 %v6288, 0.014752088
        %v6290 = vmul.f32 %v6274, %v6289
        %v6291 = vadd.f32 %v6290, 0.112945676
        %v6292 = vmul.f32 %v6274, %v6291
        %v6293 = vadd.f32 %v6292, 0.4994258
        %v6294 = vmul.f32 %v6274, %v6293
        %v6295 = vadd.f32 %v6294, 1.0
        %v6296 = vrcp.pop %v6295
        %v6297 = vmul.f32 %v6295, %v6296
        %v6298 = vsub.f32 1.0, %v6297
        %v6299 = vmul.f32 %v6296, %v6298
        %v6300 = vadd.f32 %v6296, %v6299
        %vm6301 = vweird.f32 %v6295
        %vm6302 = vweird.f32 %v6296
        %vm6303 = vmor %vm6301, %vm6302
        %v6304 = vsel %vm6303, %v6296, %v6300
        %v6305 = vand.u32 2147483647, %v6295
        %vm6306 = vcmp.eq.f32.partialorder %v6305, 8.507059e+37
        %v6307 = vand.u32 %v6295, 2147483648
        %v6308 = vor.u32 1.1754944e-38, %v6307
        %v6309 = vsel %vm6306, %v6308, %v6304
        %v6310 = vmul.f32 %v6285, %v6309
        %v6311 = vmin.f32 %v6310, 1.0
        %v6312 = vmax.f32 %v6311, -1.0
        %v6313 = vmul.f32 %v5189, %v5189
        %v6314 = vmin.f32 16.0, %v6313
        %v6315 = vmul.f32 %v6314, 2.1237322e-06
        %v6316 = vadd.f32 %v6315, 0.00028619796
        %v6317 = vmul.f32 %v6314, %v6316
        %v6318 = vadd.f32 %v6317, 0.0036580483
        %v6319 = vmul.f32 %v6314, %v6318
        %v6320 = vadd.f32 %v6319, 0.05243302
        %v6321 = vmul.f32 %v6314, %v6320
        %v6322 = vadd.f32 %v6321, 0.18741608
        %v6323 = vmul.f32 %v6314, %v6322
        %v6324 = vadd.f32 %v6323, 1.1283791
        %v6325 = vmul.f32 %v5189, %v6324
        %v6326 = vmul.f32 %v6314, 3.8918573e-05
        %v6327 = vadd.f32 %v6326, 0.001143296
        %v6328 = vmul.f32 %v6314, %v6327
        %v6329 = vadd.f32 %v6328, 0.014752088
        %v6330 = vmul.f32 %v6314, %v6329
        %v6331 = vadd.f32 %v6330, 0.112945676
        %v6332 = vmul.f32 %v6314, %v6331
        %v6333 = vadd.f32 %v6332, 0.4994258
        %v6334 = vmul.f32 %v6314, %v6333
        %v6335 = vadd.f32 %v6334, 1.0
        %v6336 = vrcp.pop %v6335
        %v6337 = vmul.f32 %v6335, %v6336
        %v6338 = vsub.f32 1.0, %v6337
        %v6339 = vmul.f32 %v6336, %v6338
        %v6340 = vadd.f32 %v6336, %v6339
        %vm6341 = vweird.f32 %v6335
        %vm6342 = vweird.f32 %v6336
        %vm6343 = vmor %vm6341, %vm6342
        %v6344 = vsel %vm6343, %v6336, %v6340
        %v6345 = vand.u32 2147483647, %v6335
        %vm6346 = vcmp.eq.f32.partialorder %v6345, 8.507059e+37
        %v6347 = vand.u32 %v6335, 2147483648
        %v6348 = vor.u32 1.1754944e-38, %v6347
        %v6349 = vsel %vm6346, %v6348, %v6344
        %v6350 = vmul.f32 %v6325, %v6349
        %v6351 = vmin.f32 %v6350, 1.0
        %v6352 = vmax.f32 %v6351, -1.0
        %v6353 = vmul.f32 %v5190, %v5190
        %v6354 = vmin.f32 16.0, %v6353
        %v6355 = vmul.f32 %v6354, 2.1237322e-06
        %v6356 = vadd.f32 %v6355, 0.00028619796
        %v6357 = vmul.f32 %v6354, %v6356
        %v6358 = vadd.f32 %v6357, 0.0036580483
        %v6359 = vmul.f32 %v6354, %v6358
        %v6360 = vadd.f32 %v6359, 0.05243302
        %v6361 = vmul.f32 %v6354, %v6360
        %v6362 = vadd.f32 %v6361, 0.18741608
        %v6363 = vmul.f32 %v6354, %v6362
        %v6364 = vadd.f32 %v6363, 1.1283791
        %v6365 = vmul.f32 %v5190, %v6364
        %v6366 = vmul.f32 %v6354, 3.8918573e-05
        %v6367 = vadd.f32 %v6366, 0.001143296
        %v6368 = vmul.f32 %v6354, %v6367
        %v6369 = vadd.f32 %v6368, 0.014752088
        %v6370 = vmul.f32 %v6354, %v6369
        %v6371 = vadd.f32 %v6370, 0.112945676
        %v6372 = vmul.f32 %v6354, %v6371
        %v6373 = vadd.f32 %v6372, 0.4994258
        %v6374 = vmul.f32 %v6354, %v6373
        %v6375 = vadd.f32 %v6374, 1.0
        %v6376 = vrcp.pop %v6375
        %v6377 = vmul.f32 %v6375, %v6376
        %v6378 = vsub.f32 1.0, %v6377
        %v6379 = vmul.f32 %v6376, %v6378
        %v6380 = vadd.f32 %v6376, %v6379
        %vm6381 = vweird.f32 %v6375
        %vm6382 = vweird.f32 %v6376
        %vm6383 = vmor %vm6381, %vm6382
        %v6384 = vsel %vm6383, %v6376, %v6380
        %v6385 = vand.u32 2147483647, %v6375
        %vm6386 = vcmp.eq.f32.partialorder %v6385, 8.507059e+37
        %v6387 = vand.u32 %v6375, 2147483648
        %v6388 = vor.u32 1.1754944e-38, %v6387
        %v6389 = vsel %vm6386, %v6388, %v6384
        %v6390 = vmul.f32 %v6365, %v6389
        %v6391 = vmin.f32 %v6390, 1.0
        %v6392 = vmax.f32 %v6391, -1.0
        %v6393 = vmul.f32 %v5191, %v5191
        %v6394 = vmin.f32 16.0, %v6393
        %v6395 = vmul.f32 %v6394, 2.1237322e-06
        %v6396 = vadd.f32 %v6395, 0.00028619796
        %v6397 = vmul.f32 %v6394, %v6396
        %v6398 = vadd.f32 %v6397, 0.0036580483
        %v6399 = vmul.f32 %v6394, %v6398
        %v6400 = vadd.f32 %v6399, 0.05243302
        %v6401 = vmul.f32 %v6394, %v6400
        %v6402 = vadd.f32 %v6401, 0.18741608
        %v6403 = vmul.f32 %v6394, %v6402
        %v6404 = vadd.f32 %v6403, 1.1283791
        %v6405 = vmul.f32 %v5191, %v6404
        %v6406 = vmul.f32 %v6394, 3.8918573e-05
        %v6407 = vadd.f32 %v6406, 0.001143296
        %v6408 = vmul.f32 %v6394, %v6407
        %v6409 = vadd.f32 %v6408, 0.014752088
        %v6410 = vmul.f32 %v6394, %v6409
        %v6411 = vadd.f32 %v6410, 0.112945676
        %v6412 = vmul.f32 %v6394, %v6411
        %v6413 = vadd.f32 %v6412, 0.4994258
        %v6414 = vmul.f32 %v6394, %v6413
        %v6415 = vadd.f32 %v6414, 1.0
        %v6416 = vrcp.pop %v6415
        %v6417 = vmul.f32 %v6415, %v6416
        %v6418 = vsub.f32 1.0, %v6417
        %v6419 = vmul.f32 %v6416, %v6418
        %v6420 = vadd.f32 %v6416, %v6419
        %vm6421 = vweird.f32 %v6415
        %vm6422 = vweird.f32 %v6416
        %vm6423 = vmor %vm6421, %vm6422
        %v6424 = vsel %vm6423, %v6416, %v6420
        %v6425 = vand.u32 2147483647, %v6415
        %vm6426 = vcmp.eq.f32.partialorder %v6425, 8.507059e+37
        %v6427 = vand.u32 %v6415, 2147483648
        %v6428 = vor.u32 1.1754944e-38, %v6427
        %v6429 = vsel %vm6426, %v6428, %v6424
        %v6430 = vmul.f32 %v6405, %v6429
        %v6431 = vmin.f32 %v6430, 1.0
        %v6432 = vmax.f32 %v6431, -1.0
        %v6433 = vmul.f32 %v5192, %v5192
        %v6434 = vmin.f32 16.0, %v6433
        %v6435 = vmul.f32 %v6434, 2.1237322e-06
        %v6436 = vadd.f32 %v6435, 0.00028619796
        %v6437 = vmul.f32 %v6434, %v6436
        %v6438 = vadd.f32 %v6437, 0.0036580483
        %v6439 = vmul.f32 %v6434, %v6438
        %v6440 = vadd.f32 %v6439, 0.05243302
        %v6441 = vmul.f32 %v6434, %v6440
        %v6442 = vadd.f32 %v6441, 0.18741608
        %v6443 = vmul.f32 %v6434, %v6442
        %v6444 = vadd.f32 %v6443, 1.1283791
        %v6445 = vmul.f32 %v5192, %v6444
        %v6446 = vmul.f32 %v6434, 3.8918573e-05
        %v6447 = vadd.f32 %v6446, 0.001143296
        %v6448 = vmul.f32 %v6434, %v6447
        %v6449 = vadd.f32 %v6448, 0.014752088
        %v6450 = vmul.f32 %v6434, %v6449
        %v6451 = vadd.f32 %v6450, 0.112945676
        %v6452 = vmul.f32 %v6434, %v6451
        %v6453 = vadd.f32 %v6452, 0.4994258
        %v6454 = vmul.f32 %v6434, %v6453
        %v6455 = vadd.f32 %v6454, 1.0
        %v6456 = vrcp.pop %v6455
        %v6457 = vmul.f32 %v6455, %v6456
        %v6458 = vsub.f32 1.0, %v6457
        %v6459 = vmul.f32 %v6456, %v6458
        %v6460 = vadd.f32 %v6456, %v6459
        %vm6461 = vweird.f32 %v6455
        %vm6462 = vweird.f32 %v6456
        %vm6463 = vmor %vm6461, %vm6462
        %v6464 = vsel %vm6463, %v6456, %v6460
        %v6465 = vand.u32 2147483647, %v6455
        %vm6466 = vcmp.eq.f32.partialorder %v6465, 8.507059e+37
        %v6467 = vand.u32 %v6455, 2147483648
        %v6468 = vor.u32 1.1754944e-38, %v6467
        %v6469 = vsel %vm6466, %v6468, %v6464
        %v6470 = vmul.f32 %v6445, %v6469
        %v6471 = vmin.f32 %v6470, 1.0
        %v6472 = vmax.f32 %v6471, -1.0
        %v6473 = vadd.f32 %v5232, 1.0
        %v6474 = vadd.f32 %v5272, 1.0
        %v6475 = vadd.f32 %v5312, 1.0
        %v6476 = vadd.f32 %v5352, 1.0
        %v6477 = vadd.f32 %v5392, 1.0
        %v6478 = vadd.f32 %v5432, 1.0
        %v6479 = vadd.f32 %v5472, 1.0
        %v6480 = vadd.f32 %v5512, 1.0
        %v6481 = vadd.f32 %v5552, 1.0
        %v6482 = vadd.f32 %v5592, 1.0
        %v6483 = vadd.f32 %v5632, 1.0
        %v6484 = vadd.f32 %v5672, 1.0
        %v6485 = vadd.f32 %v5712, 1.0
        %v6486 = vadd.f32 %v5752, 1.0
        %v6487 = vadd.f32 %v5792, 1.0
        %v6488 = vadd.f32 %v5832, 1.0
        %v6489 = vadd.f32 %v5872, 1.0
        %v6490 = vadd.f32 %v5912, 1.0
        %v6491 = vadd.f32 %v5952, 1.0
        %v6492 = vadd.f32 %v5992, 1.0
        %v6493 = vadd.f32 %v6032, 1.0
        %v6494 = vadd.f32 %v6072, 1.0
        %v6495 = vadd.f32 %v6112, 1.0
        %v6496 = vadd.f32 %v6152, 1.0
        %v6497 = vadd.f32 %v6192, 1.0
        %v6498 = vadd.f32 %v6232, 1.0
        %v6499 = vadd.f32 %v6272, 1.0
        %v6500 = vadd.f32 %v6312, 1.0
        %v6501 = vadd.f32 %v6352, 1.0
        %v6502 = vadd.f32 %v6392, 1.0
        %v6503 = vadd.f32 %v6432, 1.0
        %v6504 = vadd.f32 %v6472, 1.0
        %v6505 = vmul.f32 %v5129, %v6473
        %v6506 = vmul.f32 %v5130, %v6474
        %v6507 = vmul.f32 %v5131, %v6475
        %v6508 = vmul.f32 %v5132, %v6476
        %v6509 = vmul.f32 %v5133, %v6477
        %v6510 = vmul.f32 %v5134, %v6478
        %v6511 = vmul.f32 %v5135, %v6479
        %v6512 = vmul.f32 %v5136, %v6480
        %v6513 = vmul.f32 %v5137, %v6481
        %v6514 = vmul.f32 %v5138, %v6482
        %v6515 = vmul.f32 %v5139, %v6483
        %v6516 = vmul.f32 %v5140, %v6484
        %v6517 = vmul.f32 %v5141, %v6485
        %v6518 = vmul.f32 %v5142, %v6486
        %v6519 = vmul.f32 %v5143, %v6487
        %v6520 = vmul.f32 %v5144, %v6488
        %v6521 = vmul.f32 %v5145, %v6489
        %v6522 = vmul.f32 %v5146, %v6490
        %v6523 = vmul.f32 %v5147, %v6491
        %v6524 = vmul.f32 %v5148, %v6492
        %v6525 = vmul.f32 %v5149, %v6493
        %v6526 = vmul.f32 %v5150, %v6494
        %v6527 = vmul.f32 %v5151, %v6495
        %v6528 = vmul.f32 %v5152, %v6496
        %v6529 = vmul.f32 %v5153, %v6497
        %v6530 = vmul.f32 %v5154, %v6498
        %v6531 = vmul.f32 %v5155, %v6499
        %v6532 = vmul.f32 %v5156, %v6500
        %v6533 = vmul.f32 %v5157, %v6501
        %v6534 = vmul.f32 %v5158, %v6502
        %v6535 = vmul.f32 %v5159, %v6503
        %v6536 = vmul.f32 %v5160, %v6504
        %v6537 = vpack.c.bf16 %v6506, %v6505
        %v6538 = vpack.c.bf16 %v6508, %v6507
        %v6539 = vpack.c.bf16 %v6510, %v6509
        %v6540 = vpack.c.bf16 %v6512, %v6511
        %v6541 = vpack.c.bf16 %v6514, %v6513
        %v6542 = vpack.c.bf16 %v6516, %v6515
        %v6543 = vpack.c.bf16 %v6518, %v6517
        %v6544 = vpack.c.bf16 %v6520, %v6519
        %v6545 = vpack.c.bf16 %v6522, %v6521
        %v6546 = vpack.c.bf16 %v6524, %v6523
        %v6547 = vpack.c.bf16 %v6526, %v6525
        %v6548 = vpack.c.bf16 %v6528, %v6527
        %v6549 = vpack.c.bf16 %v6530, %v6529
        %v6550 = vpack.c.bf16 %v6532, %v6531
        %v6551 = vpack.c.bf16 %v6534, %v6533
        %v6552 = vpack.c.bf16 %v6536, %v6535
        %v6553 = vld [vmem:[%s4] sm:$0xf]
        %v6554 = vld [vmem:[%s4 + $0x4] sm:$0xf]
        %v6555 = vld [vmem:[%s4 + $0x8] sm:$0xf]
        %v6556 = vld [vmem:[%s4 + $0xc] sm:$0xf]
        %v6557 = vld [vmem:[%s4 + $0x10] sm:$0xf]
        %v6558 = vld [vmem:[%s4 + $0x14] sm:$0xf]
        %v6559 = vld [vmem:[%s4 + $0x18] sm:$0xf]
        %v6560 = vld [vmem:[%s4 + $0x1c] sm:$0xf]
        %v6561 = vld [vmem:[%s4 + $0x20] sm:$0xf]
        %v6562 = vld [vmem:[%s4 + $0x24] sm:$0xf]
        %v6563 = vld [vmem:[%s4 + $0x28] sm:$0xf]
        %v6564 = vld [vmem:[%s4 + $0x2c] sm:$0xf]
        %v6565 = vld [vmem:[%s4 + $0x30] sm:$0xf]
        %v6566 = vld [vmem:[%s4 + $0x34] sm:$0xf]
        %v6567 = vld [vmem:[%s4 + $0x38] sm:$0xf]
        %v6568 = vld [vmem:[%s4 + $0x3c] sm:$0xf]
        %v6569 = vld [vmem:[%s5] sm:$0x1]
        %v6571 = vperm.slane %v6569, 0
        %v6589 = vunpack.c.l.b16 %v6553
        %v6590 = vunpack.c.l.b16 %v6554
        %v6591 = vunpack.c.l.b16 %v6555
        %v6592 = vunpack.c.l.b16 %v6556
        %v6593 = vunpack.c.l.b16 %v6557
        %v6594 = vunpack.c.l.b16 %v6558
        %v6595 = vunpack.c.l.b16 %v6559
        %v6596 = vunpack.c.l.b16 %v6560
        %v6597 = vunpack.c.l.b16 %v6561
        %v6598 = vunpack.c.l.b16 %v6562
        %v6599 = vunpack.c.l.b16 %v6563
        %v6600 = vunpack.c.l.b16 %v6564
        %v6601 = vunpack.c.l.b16 %v6565
        %v6602 = vunpack.c.l.b16 %v6566
        %v6603 = vunpack.c.l.b16 %v6567
        %v6604 = vunpack.c.l.b16 %v6568
        %v6605 = vpack.c.b16 %v6590, %v6589
        %v6606 = vpack.c.b16 %v6592, %v6591
        %v6607 = vpack.c.b16 %v6594, %v6593
        %v6608 = vpack.c.b16 %v6596, %v6595
        %v6609 = vpack.c.b16 %v6598, %v6597
        %v6610 = vpack.c.b16 %v6600, %v6599
        %v6611 = vpack.c.b16 %v6602, %v6601
        %v6612 = vpack.c.b16 %v6604, %v6603
        %6621 = vmatpush.bf16.msra.mxu0 %v6612
        %6622 = vmatpush.bf16.msra.mxu0 %v6611
        %6623 = vmatpush.bf16.msra.mxu0 %v6610
        %6624 = vmatpush.bf16.msra.mxu0 %v6609
        %6625 = vmatpush.bf16.msra.mxu0 %v6608
        %6626 = vmatpush.bf16.msra.mxu0 %v6607
        %6627 = vmatpush.bf16.msra.mxu0 %v6606
        %6628 = vmatpush.bf16.msra.mxu0 %v6605
        %6629 = vmatmul.bf16.gmra.mxu0 %v6537
        %v6630 = vpop.f32.mrf.mxu0
        %v6631 = vadd.f32 %v6571, %v6630
        %v6632 = vpop.f32.mrf.mxu0
        %v6633 = vadd.f32 %v6571, %v6632
        %6634 = vmatmul.bf16.gmra.mxu0 %v6538
        %v6635 = vpop.f32.mrf.mxu0
        %v6636 = vadd.f32 %v6571, %v6635
        %v6637 = vpop.f32.mrf.mxu0
        %v6638 = vadd.f32 %v6571, %v6637
        %6639 = vmatmul.bf16.gmra.mxu0 %v6539
        %v6640 = vpop.f32.mrf.mxu0
        %v6641 = vadd.f32 %v6571, %v6640
        %v6642 = vpop.f32.mrf.mxu0
        %v6643 = vadd.f32 %v6571, %v6642
        %6644 = vmatmul.bf16.gmra.mxu0 %v6540
        %v6645 = vpop.f32.mrf.mxu0
        %v6646 = vadd.f32 %v6571, %v6645
        %v6647 = vpop.f32.mrf.mxu0
        %v6648 = vadd.f32 %v6571, %v6647
        %6649 = vmatmul.bf16.gmra.mxu0 %v6541
        %v6650 = vpop.f32.mrf.mxu0
        %v6651 = vadd.f32 %v6571, %v6650
        %v6652 = vpop.f32.mrf.mxu0
        %v6653 = vadd.f32 %v6571, %v6652
        %6654 = vmatmul.bf16.gmra.mxu0 %v6542
        %v6655 = vpop.f32.mrf.mxu0
        %v6656 = vadd.f32 %v6571, %v6655
        %v6657 = vpop.f32.mrf.mxu0
        %v6658 = vadd.f32 %v6571, %v6657
        %6659 = vmatmul.bf16.gmra.mxu0 %v6543
        %v6660 = vpop.f32.mrf.mxu0
        %v6661 = vadd.f32 %v6571, %v6660
        %v6662 = vpop.f32.mrf.mxu0
        %v6663 = vadd.f32 %v6571, %v6662
        %6664 = vmatmul.bf16.gmra.mxu0 %v6544
        %v6665 = vpop.f32.mrf.mxu0
        %v6666 = vadd.f32 %v6571, %v6665
        %v6667 = vpop.f32.mrf.mxu0
        %v6668 = vadd.f32 %v6571, %v6667
        %6669 = vmatmul.bf16.gmra.mxu0 %v6545
        %v6670 = vpop.f32.mrf.mxu0
        %v6671 = vadd.f32 %v6571, %v6670
        %v6672 = vpop.f32.mrf.mxu0
        %v6673 = vadd.f32 %v6571, %v6672
        %6674 = vmatmul.bf16.gmra.mxu0 %v6546
        %v6675 = vpop.f32.mrf.mxu0
        %v6676 = vadd.f32 %v6571, %v6675
        %v6677 = vpop.f32.mrf.mxu0
        %v6678 = vadd.f32 %v6571, %v6677
        %6679 = vmatmul.bf16.gmra.mxu0 %v6547
        %v6680 = vpop.f32.mrf.mxu0
        %v6681 = vadd.f32 %v6571, %v6680
        %v6682 = vpop.f32.mrf.mxu0
        %v6683 = vadd.f32 %v6571, %v6682
        %6684 = vmatmul.bf16.gmra.mxu0 %v6548
        %v6685 = vpop.f32.mrf.mxu0
        %v6686 = vadd.f32 %v6571, %v6685
        %v6687 = vpop.f32.mrf.mxu0
        %v6688 = vadd.f32 %v6571, %v6687
        %6689 = vmatmul.bf16.gmra.mxu0 %v6549
        %v6690 = vpop.f32.mrf.mxu0
        %v6691 = vadd.f32 %v6571, %v6690
        %v6692 = vpop.f32.mrf.mxu0
        %v6693 = vadd.f32 %v6571, %v6692
        %6694 = vmatmul.bf16.gmra.mxu0 %v6550
        %v6695 = vpop.f32.mrf.mxu0
        %v6696 = vadd.f32 %v6571, %v6695
        %v6697 = vpop.f32.mrf.mxu0
        %v6698 = vadd.f32 %v6571, %v6697
        %6699 = vmatmul.bf16.gmra.mxu0 %v6551
        %v6700 = vpop.f32.mrf.mxu0
        %v6701 = vadd.f32 %v6571, %v6700
        %v6702 = vpop.f32.mrf.mxu0
        %v6703 = vadd.f32 %v6571, %v6702
        %6704 = vmatmul.bf16.gmra.mxu0 %v6552
        %v6705 = vpop.f32.mrf.mxu0
        %v6706 = vadd.f32 %v6571, %v6705
        %v6707 = vpop.f32.mrf.mxu0
        %v6708 = vadd.f32 %v6571, %v6707
        %6709 = vdwg.mxu0
        %6710 = vst [vmem:[%s245] sm:$0xff] %v6631
        %6711 = vst [vmem:[%s245 + $0x8] sm:$0xff] %v6633
        %6712 = vst [vmem:[%s245 + $0x10] sm:$0xff] %v6636
        %6713 = vst [vmem:[%s245 + $0x18] sm:$0xff] %v6638
        %6714 = vst [vmem:[%s245 + $0x20] sm:$0xff] %v6641
        %6715 = vst [vmem:[%s245 + $0x28] sm:$0xff] %v6643
        %6716 = vst [vmem:[%s245 + $0x30] sm:$0xff] %v6646
        %6717 = vst [vmem:[%s245 + $0x38] sm:$0xff] %v6648
        %6718 = vst [vmem:[%s245 + $0x40] sm:$0xff] %v6651
        %6719 = vst [vmem:[%s245 + $0x48] sm:$0xff] %v6653
        %6720 = vst [vmem:[%s245 + $0x50] sm:$0xff] %v6656
        %6721 = vst [vmem:[%s245 + $0x58] sm:$0xff] %v6658
        %6722 = vst [vmem:[%s245 + $0x60] sm:$0xff] %v6661
        %6723 = vst [vmem:[%s245 + $0x68] sm:$0xff] %v6663
        %6724 = vst [vmem:[%s245 + $0x70] sm:$0xff] %v6666
        %6725 = vst [vmem:[%s245 + $0x78] sm:$0xff] %v6668
        %6726 = vst [vmem:[%s245 + $0x80] sm:$0xff] %v6671
        %6727 = vst [vmem:[%s245 + $0x88] sm:$0xff] %v6673
        %6728 = vst [vmem:[%s245 + $0x90] sm:$0xff] %v6676
        %6729 = vst [vmem:[%s245 + $0x98] sm:$0xff] %v6678
        %6730 = vst [vmem:[%s245 + $0xa0] sm:$0xff] %v6681
        %6731 = vst [vmem:[%s245 + $0xa8] sm:$0xff] %v6683
        %6732 = vst [vmem:[%s245 + $0xb0] sm:$0xff] %v6686
        %6733 = vst [vmem:[%s245 + $0xb8] sm:$0xff] %v6688
        %6734 = vst [vmem:[%s245 + $0xc0] sm:$0xff] %v6691
        %6735 = vst [vmem:[%s245 + $0xc8] sm:$0xff] %v6693
        %6736 = vst [vmem:[%s245 + $0xd0] sm:$0xff] %v6696
        %6737 = vst [vmem:[%s245 + $0xd8] sm:$0xff] %v6698
        %6738 = vst [vmem:[%s245 + $0xe0] sm:$0xff] %v6701
        %6739 = vst [vmem:[%s245 + $0xe8] sm:$0xff] %v6703
        %6740 = vst [vmem:[%s245 + $0xf0] sm:$0xff] %v6706
        %6741 = vst [vmem:[%s245 + $0xf8] sm:$0xff] %v6708
        %s6742 = sand.u32 %s159, 1
        %s6743 = scalar_lea.sflag [#allocation3], %s6742
        %s6744 = sand.u32 %s159, 1
        %s6745 = smul.addr %s6744, 256
        %s6746 = scalar_lea.vmem [#allocation2], %s6745
        // Predicated region
        $region45: #{levit_attention_forward.1} parent=43 // pred_check
          %p6747 = pneg %p169
        $region46: #{levit_attention_forward.1} parent=43 // pred_check_branch
          %6749 = sbr.rel (%p6747) target = $region48
        $region47: #{levit_attention_forward.1} parent=43 // pred_region
          %s6750 = smul.u32 32, %s20
          %6752 = vsyncadd %s6743, 0
          %s6753 = smul.addr %s6750, 8
          %s6754 = scalar_lea.hbm %s6, %s6753
          %s6755 = sshll.u32 %s6746, 4
          %s6756 = int_to_ptr.vmem [resolvable:$true] %s6755
          %s6757 = sshll.u32 %s6754, 4
          %s6758 = int_to_ptr.hbm [resolvable:$true] %s6757
          %6763 = dma.vmem_to_hbm [thread:$0]  %s6756, 4096, %s6758, %s6743, 128, 128, 8
        $region48: #{levit_attention_forward.1} parent=43 // pred_fallthru
          _
      $region44: #{levit_attention_forward.1} parent=5 // pred_fallthru
        _
      %p6764 = scmp.le.s32.totalorder 2, %s15
      // Predicated region
      $region49: #{levit_attention_forward.1} parent=5 // pred_check
        %p6765 = pneg %p6764
      $region50: #{levit_attention_forward.1} parent=5 // pred_check_branch
        %6767 = sbr.rel (%p6765) target = $region52
      $region51: #{levit_attention_forward.1} parent=5 // pred_region
        %s6768 = ssub.s32 %s15, 2
        // Predicated region
        $region53: #{levit_attention_forward.1} parent=51 // pred_check
          %p6769 = pneg %p175
        $region54: #{levit_attention_forward.1} parent=51 // pred_check_branch
          %6771 = sbr.rel (%p6769) target = $region56
        $region55: #{levit_attention_forward.1} parent=51 // pred_region
          %s6772 = sand.u32 %s160, 1
          %s6773 = scalar_lea.sflag [#allocation3], %s6772
          %s6774 = sand.u32 %s160, 1
          %s6775 = smul.addr %s6774, 256
          %s6776 = scalar_lea.vmem [#allocation2], %s6775
          %6778 = dma.done %s6773, 4096
        $region56: #{levit_attention_forward.1} parent=51 // pred_fallthru
          _
      $region52: #{levit_attention_forward.1} parent=5 // pred_fallthru
        _
    $region6: #{levit_attention_forward.1} parent=1 // loop_footer
      %s19 = sadd.s32 1, %s15
    $region7: #{levit_attention_forward.1} parent=1 // loop_footer_branch
      %14 = sbr.rel target = $region3
    $region8: #{levit_attention_forward.1} parent=1 // loop_exit
      _
    %6779 = vsyncpa [#allocation3], 1
    %s6780 = scalar_lea.sflag [#allocation3], 1
    %6781 = vsyncpa %s6780, 1

</llo_original>
